<compile_context>
chip_gen: v7x
topology: tpu7x:2x2x1
jax: 0.10.0
libtpu: 0.0.40
codegen_flags: <defaults>
</compile_context>

<pallas_src>
import jax
import jax.numpy as jnp
from jax import lax
from jax.experimental import pallas as pl
from jax.experimental.pallas import tpu as pltpu

# ---- small, self-consistent hyper-parameters (scaled down from the module) --
VOCAB_SIZE = 65
VOCAB_PAD = 128      # lm_head lane-padded to a full 128-lane vreg
N_EMBD = 48          # module uses 384; scaled down, still divisible by n_head
N_HEAD = 6
HEAD_SIZE = N_EMBD // N_HEAD
N_LAYER = 2          # module uses 6; scaled down for a quick run
BLOCK_SIZE = 32      # module uses 256
LN_EPS = 1e-5


def _layernorm(v, g, b):
    mu = jnp.mean(v, axis=-1, keepdims=True)
    var = jnp.mean((v - mu) ** 2, axis=-1, keepdims=True)
    return (v - mu) * lax.rsqrt(var + LN_EPS) * g + b


# ----------------------------- fused Pallas kernel ---------------------------
def gpt_forward_kernel(
    tok_ref, pos_ref,
    ln1_g_ref, ln1_b_ref, wqkv_ref, wproj_ref, bproj_ref,
    ln2_g_ref, ln2_b_ref, w1_ref, b1_ref, w2_ref, b2_ref,
    lnf_g_ref, lnf_b_ref, lm_w_ref, lm_b_ref,
    logits_ref,
):
    """GPT forward for one batch-tile (B_TILE, T); activations stay in VMEM.

    Reference block semantics (LN output replaces x before the residual, as in
    the PyTorch TransformerBlock):
        x = ln1(x); x = x + sa(x); x = ln2(x); x = x + ffwd(x)
    """
    Bt, T, C = tok_ref.shape
    L = wqkv_ref.shape[0]
    H, hs = N_HEAD, C // N_HEAD
    N = Bt * T
    G = Bt * H
    f32, bf16 = jnp.float32, jnp.bfloat16

    # token + position embedding add, fused (bf16 in, f32 math).
    x = (tok_ref[...].astype(f32) + pos_ref[...].astype(f32)[None]).reshape(N, C)

    # Single (T, T) causal mask; attention never mixes batch elements because
    # heads/batches are separate leading batch dims of the score einsum.
    row = lax.broadcasted_iota(jnp.int32, (T, T), 0)
    col = lax.broadcasted_iota(jnp.int32, (T, T), 1)
    causal = row >= col

    def split_heads(a):          # (N, C) -> (Bt*H, T, hs), head-major lanes
        a = a.reshape(Bt, T, H, hs)
        a = jnp.transpose(a, (0, 2, 1, 3))
        return a.reshape(G, T, hs)

    for l in range(L):           # static unroll; all layer weights VMEM-resident
        # --- ln1 ---
        h = _layernorm(x, ln1_g_ref[l], ln1_b_ref[l])                    # (N, C) f32

        # --- fused QKV projection: one lane-dense MXU matmul ---
        qkv = jnp.dot(h.astype(bf16), wqkv_ref[l],
                      preferred_element_type=f32)                        # (N, 3C)
        # (attention scale n_embd**-0.5 was folded into the wq columns on host)
        q = split_heads(qkv[:, 0 * C:1 * C])                             # (G, T, hs)
        k = split_heads(qkv[:, 1 * C:2 * C])
        v = split_heads(qkv[:, 2 * C:3 * C])

        # --- per-(batch, head) causal attention ---
        s = jnp.einsum('gqd,gkd->gqk', q.astype(bf16), k.astype(bf16),
                       preferred_element_type=f32)                       # (G, T, T)
        s = jnp.where(causal[None], s, -1e30)
        m = jnp.max(s, axis=-1, keepdims=True)
        e = jnp.exp(s - m)
        p = e * pl.reciprocal(jnp.sum(e, axis=-1, keepdims=True), approx=True)
        o = jnp.einsum('gqk,gkd->gqd', p.astype(bf16), v.astype(bf16),
                       preferred_element_type=f32)                       # (G, T, hs)

        # heads packed back along lanes -> one (N,C)x(C,C) projection matmul
        o = jnp.transpose(o.reshape(Bt, H, T, hs), (0, 2, 1, 3)).reshape(N, C)
        sa = jnp.dot(o.astype(bf16), wproj_ref[l],
                     preferred_element_type=f32) + bproj_ref[l]
        x = h + sa

        # --- ln2 + feed-forward ---
        h2 = _layernorm(x, ln2_g_ref[l], ln2_b_ref[l])
        ff = jnp.dot(h2.astype(bf16), w1_ref[l],
                     preferred_element_type=f32) + b1_ref[l]
        ff = jnp.maximum(ff, 0.0)
        ff = jnp.dot(ff.astype(bf16), w2_ref[l],
                     preferred_element_type=f32) + b2_ref[l]
        x = h2 + ff

    # --- final LayerNorm + lm_head (vocab padded to 128 lanes, lane-dense store) ---
    xn = _layernorm(x, lnf_g_ref[...], lnf_b_ref[...])
    logits = jnp.dot(xn.astype(bf16), lm_w_ref[...],
                     preferred_element_type=f32) + lm_b_ref[...]
    logits_ref[...] = logits.reshape(Bt, T, VOCAB_PAD).astype(logits_ref.dtype)


# ----------------------------- wrapper ---------------------------------------
@jax.jit
def gpt_forward(idx, kp):
    """idx: (B, T) int32 token ids -> logits (B, T, vocab_size)."""
    B, T = idx.shape
    C = N_EMBD
    tok = kp["tok_emb"][idx]            # (B, T, C) bf16 embedding gather (plain JAX)
    pos = kp["pos_emb"][:T]             # (T, C) bf16

    def rep(shape):                     # same (whole-array) block every grid step
        nd = len(shape)
        return pl.BlockSpec(shape, lambda b, _nd=nd: (0,) * _nd)

    in_specs = [
        pl.BlockSpec((1, T, C), lambda b: (b, 0, 0)),        # tok: one batch / step
        rep((T, C)),                                         # pos
        rep(kp["ln1_g"].shape), rep(kp["ln1_b"].shape),
        rep(kp["wqkv"].shape), rep(kp["wproj"].shape), rep(kp["bproj"].shape),
        rep(kp["ln2_g"].shape), rep(kp["ln2_b"].shape),
        rep(kp["w1"].shape), rep(kp["b1"].shape),
        rep(kp["w2"].shape), rep(kp["b2"].shape),
        rep(kp["lnf_g"].shape), rep(kp["lnf_b"].shape),
        rep(kp["lm_w"].shape), rep(kp["lm_b"].shape),
    ]

    logits_padded = pl.pallas_call(
        gpt_forward_kernel,
        grid=(B,),                                           # batch-parallel axis
        in_specs=in_specs,
        out_specs=pl.BlockSpec((1, T, VOCAB_PAD), lambda b: (b, 0, 0)),
        out_shape=jax.ShapeDtypeStruct((B, T, VOCAB_PAD), jnp.float32),
        compiler_params=pltpu.CompilerParams(
            dimension_semantics=("parallel",),
            vmem_limit_bytes=32 * 1024 * 1024),
    )(tok, pos,
      kp["ln1_g"], kp["ln1_b"], kp["wqkv"], kp["wproj"], kp["bproj"],
      kp["ln2_g"], kp["ln2_b"], kp["w1"], kp["b1"], kp["w2"], kp["b2"],
      kp["lnf_g"], kp["lnf_b"], kp["lm_w"], kp["lm_b"])
    return logits_padded[:, :, :VOCAB_SIZE]


# ----------------------------- parameters ------------------------------------
def init_params(key):
    """f32 'master' parameters mirroring the PyTorch module. Linear weights are
    stored (in_features, out_features) so y = x @ W + b."""
    def nrm(k, shape, scale=0.02):
        return (scale * jax.random.normal(k, shape)).astype(jnp.float32)

    keys = iter(jax.random.split(key, 64))
    C = N_EMBD
    P = {
        "tok_emb": nrm(next(keys), (VOCAB_SIZE, C)),
        "pos_emb": nrm(next(keys), (BLOCK_SIZE, C)),
        "lnf_g": 1.0 + nrm(next(keys), (C,)),
        "lnf_b": nrm(next(keys), (C,)),
        "lm_w": nrm(next(keys), (C, VOCAB_SIZE)),
        "lm_b": nrm(next(keys), (VOCAB_SIZE,)),
        "blocks": [],
    }
    for _ in range(N_LAYER):
        P["blocks"].append({
            "ln1_g": 1.0 + nrm(next(keys), (C,)),
            "ln1_b": nrm(next(keys), (C,)),
            "wq": nrm(next(keys), (C, C)),
            "wk": nrm(next(keys), (C, C)),
            "wv": nrm(next(keys), (C, C)),
            "wproj": nrm(next(keys), (C, C)),
            "bproj": nrm(next(keys), (C,)),
            "ln2_g": 1.0 + nrm(next(keys), (C,)),
            "ln2_b": nrm(next(keys), (C,)),
            "w1": nrm(next(keys), (C, 4 * C)),
            "b1": nrm(next(keys), (4 * C,)),
            "w2": nrm(next(keys), (4 * C, C)),
            "b2": nrm(next(keys), (C,)),
        })
    return P


def pack_kernel_params(P):
    """Kernel-layout params: per-layer stacking, fused wq|wk|wv (scale folded
    into wq), bf16 matmul weights and embeddings, vocab padding for lm_head."""
    C = N_EMBD
    bf16 = jnp.bfloat16
    scale = C ** (-0.5)   # reference Head scales by n_embd**-0.5 (C == x.shape[-1])

    def stack(name):
        return jnp.stack([blk[name] for blk in P["blocks"]])

    wqkv = jnp.stack([
        jnp.concatenate([b["wq"] * scale, b["wk"], b["wv"]], axis=1)
        for b in P["blocks"]]).astype(bf16)                      # (L, C, 3C)

    return {
        "tok_emb": P["tok_emb"].astype(bf16),
        "pos_emb": P["pos_emb"].astype(bf16),
        "ln1_g": stack("ln1_g")[:, None, :],
        "ln1_b": stack("ln1_b")[:, None, :],
        "wqkv": wqkv,
        "wproj": stack("wproj").astype(bf16),
        "bproj": stack("bproj")[:, None, :],
        "ln2_g": stack("ln2_g")[:, None, :],
        "ln2_b": stack("ln2_b")[:, None, :],
        "w1": stack("w1").astype(bf16),
        "b1": stack("b1")[:, None, :],
        "w2": stack("w2").astype(bf16),
        "b2": stack("b2")[:, None, :],
        "lnf_g": P["lnf_g"][None, :],
        "lnf_b": P["lnf_b"][None, :],
        "lm_w": jnp.pad(P["lm_w"], ((0, 0), (0, VOCAB_PAD - VOCAB_SIZE))).astype(bf16),
        "lm_b": jnp.pad(P["lm_b"], (0, VOCAB_PAD - VOCAB_SIZE))[None, :],
    }


# ----------------------------- pure-JAX reference ----------------------------
def reference_forward(idx, P):
    """f32 reference mirroring the PyTorch module (weights rounded through bf16
    to match the kernel's weight storage precision)."""
    r = lambda w: w.astype(jnp.bfloat16).astype(jnp.float32)
    B, T = idx.shape
    x = P["tok_emb"][idx] + P["pos_emb"][:T][None]
    tril = jnp.tril(jnp.ones((T, T), bool))
    scale = N_EMBD ** (-0.5)
    for blk in P["blocks"]:
        h = _layernorm(x, blk["ln1_g"], blk["ln1_b"])
        q, k, v = h @ r(blk["wq"]), h @ r(blk["wk"]), h @ r(blk["wv"])
        outs = []
        for hh in range(N_HEAD):
            sl = slice(hh * HEAD_SIZE, (hh + 1) * HEAD_SIZE)
            s = q[..., sl] @ jnp.swapaxes(k[..., sl], -1, -2) * scale
            s = jnp.where(tril, s, -jnp.inf)
            outs.append(jax.nn.softmax(s, axis=-1) @ v[..., sl])
        sa = jnp.concatenate(outs, axis=-1) @ r(blk["wproj"]) + blk["bproj"]
        x = h + sa
        h2 = _layernorm(x, blk["ln2_g"], blk["ln2_b"])
        ff = jnp.maximum(h2 @ r(blk["w1"]) + blk["b1"], 0.0)
        x = h2 + ff @ r(blk["w2"]) + blk["b2"]
    xn = _layernorm(x, P["lnf_g"], P["lnf_b"])
    return xn @ r(P["lm_w"]) + P["lm_b"]


if __name__ == "__main__":
    key = jax.random.PRNGKey(0)
    pkey, dkey = jax.random.split(key)
    P = init_params(pkey)
    kp = pack_kernel_params(P)

    B, T = 2, 8
    idx = jax.random.randint(dkey, (B, T), 0, VOCAB_SIZE, dtype=jnp.int32)

    logits = gpt_forward(idx, kp)
    jax.block_until_ready(logits)

    assert logits.shape == (B, T, VOCAB_SIZE), logits.shape
    assert bool(jnp.all(jnp.isfinite(logits)))

    ref = reference_forward(idx, P)
    max_err = float(jnp.max(jnp.abs(logits - ref)))
    assert max_err < 5e-2, f"max |kernel - reference| = {max_err}"

    print("KERNEL_OK")
</pallas_src>

<mosaic_0001>
module attributes {stable_mosaic.version = 11 : i64} {
  func.func @gpt_forward_kernel(%arg0: i32, %arg1: memref<1x8x48xbf16, #tpu.memory_space<vmem>>, %arg2: memref<8x48xbf16, #tpu.memory_space<vmem>>, %arg3: memref<2x1x48xf32, #tpu.memory_space<vmem>>, %arg4: memref<2x1x48xf32, #tpu.memory_space<vmem>>, %arg5: memref<2x48x144xbf16, #tpu.memory_space<vmem>>, %arg6: memref<2x48x48xbf16, #tpu.memory_space<vmem>>, %arg7: memref<2x1x48xf32, #tpu.memory_space<vmem>>, %arg8: memref<2x1x48xf32, #tpu.memory_space<vmem>>, %arg9: memref<2x1x48xf32, #tpu.memory_space<vmem>>, %arg10: memref<2x48x192xbf16, #tpu.memory_space<vmem>>, %arg11: memref<2x1x192xf32, #tpu.memory_space<vmem>>, %arg12: memref<2x192x48xbf16, #tpu.memory_space<vmem>>, %arg13: memref<2x1x48xf32, #tpu.memory_space<vmem>>, %arg14: memref<1x48xf32, #tpu.memory_space<vmem>>, %arg15: memref<1x48xf32, #tpu.memory_space<vmem>>, %arg16: memref<48x128xbf16, #tpu.memory_space<vmem>>, %arg17: memref<1x128xf32, #tpu.memory_space<vmem>>, %arg18: memref<1x8x128xf32, #tpu.memory_space<vmem>>) attributes {dimension_semantics = [#tpu.dimension_semantics<parallel>], iteration_bounds = array<i64: 2>, scalar_prefetch = 0 : i64, scratch_operands = 0 : i64, tpu.core_type = #tpu.core_type<tc>, window_params = [{transform_indices = @transform_0, window_bounds = array<i64: 1, 8, 48>}, {pipeline_mode = #tpu.pipeline_mode<synchronous>, transform_indices = @transform_1, window_bounds = array<i64: 8, 48>}, {pipeline_mode = #tpu.pipeline_mode<synchronous>, transform_indices = @transform_2, window_bounds = array<i64: 2, 1, 48>}, {pipeline_mode = #tpu.pipeline_mode<synchronous>, transform_indices = @transform_3, window_bounds = array<i64: 2, 1, 48>}, {pipeline_mode = #tpu.pipeline_mode<synchronous>, transform_indices = @transform_4, window_bounds = array<i64: 2, 48, 144>}, {pipeline_mode = #tpu.pipeline_mode<synchronous>, transform_indices = @transform_5, window_bounds = array<i64: 2, 48, 48>}, {pipeline_mode = #tpu.pipeline_mode<synchronous>, transform_indices = @transform_6, window_bounds = array<i64: 2, 1, 48>}, {pipeline_mode = #tpu.pipeline_mode<synchronous>, transform_indices = @transform_7, window_bounds = array<i64: 2, 1, 48>}, {pipeline_mode = #tpu.pipeline_mode<synchronous>, transform_indices = @transform_8, window_bounds = array<i64: 2, 1, 48>}, {pipeline_mode = #tpu.pipeline_mode<synchronous>, transform_indices = @transform_9, window_bounds = array<i64: 2, 48, 192>}, {pipeline_mode = #tpu.pipeline_mode<synchronous>, transform_indices = @transform_10, window_bounds = array<i64: 2, 1, 192>}, {pipeline_mode = #tpu.pipeline_mode<synchronous>, transform_indices = @transform_11, window_bounds = array<i64: 2, 192, 48>}, {pipeline_mode = #tpu.pipeline_mode<synchronous>, transform_indices = @transform_12, window_bounds = array<i64: 2, 1, 48>}, {pipeline_mode = #tpu.pipeline_mode<synchronous>, transform_indices = @transform_13, window_bounds = array<i64: 1, 48>}, {pipeline_mode = #tpu.pipeline_mode<synchronous>, transform_indices = @transform_14, window_bounds = array<i64: 1, 48>}, {pipeline_mode = #tpu.pipeline_mode<synchronous>, transform_indices = @transform_15, window_bounds = array<i64: 48, 128>}, {pipeline_mode = #tpu.pipeline_mode<synchronous>, transform_indices = @transform_16, window_bounds = array<i64: 1, 128>}, {transform_indices = @transform_17, window_bounds = array<i64: 1, 8, 128>}]} {
    %c0 = arith.constant 0 : index
    %c0_0 = arith.constant 0 : index
    %c0_1 = arith.constant 0 : index
    %0 = vector.load %arg1[%c0, %c0_0, %c0_1] : memref<1x8x48xbf16, #tpu.memory_space<vmem>>, vector<1x8x48xbf16>
    %1 = arith.extf %0 : vector<1x8x48xbf16> to vector<1x8x48xf32>
    %c0_2 = arith.constant 0 : index
    %c0_3 = arith.constant 0 : index
    %2 = vector.load %arg2[%c0_2, %c0_3] : memref<8x48xbf16, #tpu.memory_space<vmem>>, vector<8x48xbf16>
    %3 = arith.extf %2 : vector<8x48xbf16> to vector<8x48xf32>
    %4 = vector.shape_cast %3 : vector<8x48xf32> to vector<1x8x48xf32>
    %5 = arith.addf %1, %4 : vector<1x8x48xf32>
    %6 = vector.shape_cast %5 : vector<1x8x48xf32> to vector<8x48xf32>
    %7 = tpu.iota {dimensions = array<i32: 0>} : vector<8x8xi32>
    %8 = tpu.iota {dimensions = array<i32: 1>} : vector<8x8xi32>
    %9 = arith.cmpi sge, %7, %8 : vector<8x8xi32>
    %c0_4 = arith.constant 0 : index
    %c0_5 = arith.constant 0 : index
    %c0_6 = arith.constant 0 : index
    %10 = vector.load %arg3[%c0_4, %c0_5, %c0_6] : memref<2x1x48xf32, #tpu.memory_space<vmem>>, vector<1x1x48xf32>
    %11 = vector.shape_cast %10 : vector<1x1x48xf32> to vector<1x48xf32>
    %c0_7 = arith.constant 0 : index
    %c0_8 = arith.constant 0 : index
    %c0_9 = arith.constant 0 : index
    %12 = vector.load %arg4[%c0_7, %c0_8, %c0_9] : memref<2x1x48xf32, #tpu.memory_space<vmem>>, vector<1x1x48xf32>
    %13 = vector.shape_cast %12 : vector<1x1x48xf32> to vector<1x48xf32>
    %cst = arith.constant dense<0.000000e+00> : vector<8xf32>
    %14 = vector.multi_reduction <add>, %6, %cst [1] : vector<8x48xf32> to vector<8xf32>
    %15 = vector.shape_cast %14 : vector<8xf32> to vector<8x1xf32>
    %cst_10 = arith.constant 4.800000e+01 : f32
    %16 = vector.broadcast %cst_10 : f32 to vector<8x1xf32>
    %17 = arith.divf %15, %16 : vector<8x1xf32>
    %18 = vector.broadcast %17 : vector<8x1xf32> to vector<8x48xf32>
    %19 = arith.subf %6, %18 : vector<8x48xf32>
    %20 = arith.mulf %19, %19 : vector<8x48xf32>
    %cst_11 = arith.constant dense<0.000000e+00> : vector<8xf32>
    %21 = vector.multi_reduction <add>, %20, %cst_11 [1] : vector<8x48xf32> to vector<8xf32>
    %22 = vector.shape_cast %21 : vector<8xf32> to vector<8x1xf32>
    %cst_12 = arith.constant 4.800000e+01 : f32
    %23 = vector.broadcast %cst_12 : f32 to vector<8x1xf32>
    %24 = arith.divf %22, %23 : vector<8x1xf32>
    %25 = vector.broadcast %17 : vector<8x1xf32> to vector<8x48xf32>
    %26 = arith.subf %6, %25 : vector<8x48xf32>
    %cst_13 = arith.constant 9.99999974E-6 : f32
    %27 = vector.broadcast %cst_13 : f32 to vector<8x1xf32>
    %28 = arith.addf %24, %27 : vector<8x1xf32>
    %29 = math.rsqrt %28 : vector<8x1xf32>
    %30 = vector.broadcast %29 : vector<8x1xf32> to vector<8x48xf32>
    %31 = arith.mulf %26, %30 : vector<8x48xf32>
    %32 = vector.broadcast %11 : vector<1x48xf32> to vector<8x48xf32>
    %33 = arith.mulf %31, %32 : vector<8x48xf32>
    %34 = vector.broadcast %13 : vector<1x48xf32> to vector<8x48xf32>
    %35 = arith.addf %33, %34 : vector<8x48xf32>
    %36 = arith.truncf %35 : vector<8x48xf32> to vector<8x48xbf16>
    %c0_14 = arith.constant 0 : index
    %c0_15 = arith.constant 0 : index
    %c0_16 = arith.constant 0 : index
    %37 = vector.load %arg5[%c0_14, %c0_15, %c0_16] : memref<2x48x144xbf16, #tpu.memory_space<vmem>>, vector<1x48x144xbf16>
    %38 = vector.shape_cast %37 : vector<1x48x144xbf16> to vector<48x144xbf16>
    %cst_17 = arith.constant dense<0.000000e+00> : vector<8x144xf32>
    %39 = tpu.matmul %36, %38, %cst_17 {dimension_numbers = #tpu.dot_dimension_numbers<[1], [0], [0], [1], [0, 0, 1, 1], [], []>} : vector<8x48xbf16>, vector<48x144xbf16>, vector<8x144xf32> -> vector<8x144xf32>
    %40 = vector.extract_strided_slice %39 {offsets = [0, 0], sizes = [8, 48], strides = [1, 1]} : vector<8x144xf32> to vector<8x48xf32>
    %41 = vector.shape_cast %40 : vector<8x48xf32> to vector<1x8x6x8xf32>
    %42 = tpu.transpose %41, [0, 2, 1, 3] : vector<1x8x6x8xf32> -> vector<1x6x8x8xf32>
    %43 = vector.shape_cast %42 : vector<1x6x8x8xf32> to vector<6x8x8xf32>
    %44 = vector.extract_strided_slice %39 {offsets = [0, 48], sizes = [8, 48], strides = [1, 1]} : vector<8x144xf32> to vector<8x48xf32>
    %45 = vector.shape_cast %44 : vector<8x48xf32> to vector<1x8x6x8xf32>
    %46 = tpu.transpose %45, [0, 2, 1, 3] : vector<1x8x6x8xf32> -> vector<1x6x8x8xf32>
    %47 = vector.shape_cast %46 : vector<1x6x8x8xf32> to vector<6x8x8xf32>
    %48 = vector.extract_strided_slice %39 {offsets = [0, 96], sizes = [8, 48], strides = [1, 1]} : vector<8x144xf32> to vector<8x48xf32>
    %49 = vector.shape_cast %48 : vector<8x48xf32> to vector<1x8x6x8xf32>
    %50 = tpu.transpose %49, [0, 2, 1, 3] : vector<1x8x6x8xf32> -> vector<1x6x8x8xf32>
    %51 = vector.shape_cast %50 : vector<1x6x8x8xf32> to vector<6x8x8xf32>
    %52 = arith.truncf %43 : vector<6x8x8xf32> to vector<6x8x8xbf16>
    %53 = arith.truncf %47 : vector<6x8x8xf32> to vector<6x8x8xbf16>
    "tpu.trace_start"() <{level = 10 : i32, message = "gqd,gkd->gqk"}> : () -> ()
    %cst_18 = arith.constant dense<0.000000e+00> : vector<6x8x8xf32>
    %54 = tpu.matmul %52, %53, %cst_18 {dimension_numbers = #tpu.dot_dimension_numbers<[2], [2], [1], [1], [0, 0, 0, 1, 1, 1], [0], [0]>} : vector<6x8x8xbf16>, vector<6x8x8xbf16>, vector<6x8x8xf32> -> vector<6x8x8xf32>
    "tpu.trace_stop"() : () -> ()
    %55 = vector.shape_cast %9 : vector<8x8xi1> to vector<1x8x8xi1>
    %cst_19 = arith.constant -1.000000e+30 : f32
    %56 = vector.shape_cast %55 : vector<1x8x8xi1> to vector<1x8x8xi1>
    %57 = vector.broadcast %56 : vector<1x8x8xi1> to vector<6x8x8xi1>
    %58 = vector.broadcast %cst_19 : f32 to vector<6x8x8xf32>
    %59 = arith.select %57, %54, %58 : vector<6x8x8xi1>, vector<6x8x8xf32>
    %cst_20 = arith.constant dense<0xFF800000> : vector<6x8xf32>
    %60 = vector.multi_reduction <maximumf>, %59, %cst_20 [2] : vector<6x8x8xf32> to vector<6x8xf32>
    %61 = vector.shape_cast %60 : vector<6x8xf32> to vector<6x8x1xf32>
    %62 = vector.broadcast %61 : vector<6x8x1xf32> to vector<6x8x8xf32>
    %63 = arith.subf %59, %62 : vector<6x8x8xf32>
    %64 = math.exp %63 : vector<6x8x8xf32>
    %cst_21 = arith.constant dense<0.000000e+00> : vector<6x8xf32>
    %65 = vector.multi_reduction <add>, %64, %cst_21 [2] : vector<6x8x8xf32> to vector<6x8xf32>
    %66 = vector.shape_cast %65 : vector<6x8xf32> to vector<6x8x1xf32>
    %67 = tpu.reciprocal %66 {approx = true} : vector<6x8x1xf32> -> vector<6x8x1xf32>
    %68 = vector.broadcast %67 : vector<6x8x1xf32> to vector<6x8x8xf32>
    %69 = arith.mulf %64, %68 : vector<6x8x8xf32>
    %70 = arith.truncf %69 : vector<6x8x8xf32> to vector<6x8x8xbf16>
    %71 = arith.truncf %51 : vector<6x8x8xf32> to vector<6x8x8xbf16>
    "tpu.trace_start"() <{level = 10 : i32, message = "gqk,gkd->gqd"}> : () -> ()
    %cst_22 = arith.constant dense<0.000000e+00> : vector<6x8x8xf32>
    %72 = tpu.matmul %70, %71, %cst_22 {dimension_numbers = #tpu.dot_dimension_numbers<[2], [1], [1], [2], [0, 0, 0, 1, 1, 2], [0], [0]>} : vector<6x8x8xbf16>, vector<6x8x8xbf16>, vector<6x8x8xf32> -> vector<6x8x8xf32>
    "tpu.trace_stop"() : () -> ()
    %73 = vector.shape_cast %72 : vector<6x8x8xf32> to vector<1x6x8x8xf32>
    %74 = tpu.transpose %73, [0, 2, 1, 3] : vector<1x6x8x8xf32> -> vector<1x8x6x8xf32>
    %75 = vector.shape_cast %74 : vector<1x8x6x8xf32> to vector<8x48xf32>
    %76 = arith.truncf %75 : vector<8x48xf32> to vector<8x48xbf16>
    %c0_23 = arith.constant 0 : index
    %c0_24 = arith.constant 0 : index
    %c0_25 = arith.constant 0 : index
    %77 = vector.load %arg6[%c0_23, %c0_24, %c0_25] : memref<2x48x48xbf16, #tpu.memory_space<vmem>>, vector<1x48x48xbf16>
    %78 = vector.shape_cast %77 : vector<1x48x48xbf16> to vector<48x48xbf16>
    %cst_26 = arith.constant dense<0.000000e+00> : vector<8x48xf32>
    %79 = tpu.matmul %76, %78, %cst_26 {dimension_numbers = #tpu.dot_dimension_numbers<[1], [0], [0], [1], [0, 0, 1, 1], [], []>} : vector<8x48xbf16>, vector<48x48xbf16>, vector<8x48xf32> -> vector<8x48xf32>
    %c0_27 = arith.constant 0 : index
    %c0_28 = arith.constant 0 : index
    %c0_29 = arith.constant 0 : index
    %80 = vector.load %arg7[%c0_27, %c0_28, %c0_29] : memref<2x1x48xf32, #tpu.memory_space<vmem>>, vector<1x1x48xf32>
    %81 = vector.shape_cast %80 : vector<1x1x48xf32> to vector<1x48xf32>
    %82 = vector.broadcast %81 : vector<1x48xf32> to vector<8x48xf32>
    %83 = arith.addf %79, %82 : vector<8x48xf32>
    %84 = arith.addf %35, %83 : vector<8x48xf32>
    %c0_30 = arith.constant 0 : index
    %c0_31 = arith.constant 0 : index
    %c0_32 = arith.constant 0 : index
    %85 = vector.load %arg8[%c0_30, %c0_31, %c0_32] : memref<2x1x48xf32, #tpu.memory_space<vmem>>, vector<1x1x48xf32>
    %86 = vector.shape_cast %85 : vector<1x1x48xf32> to vector<1x48xf32>
    %c0_33 = arith.constant 0 : index
    %c0_34 = arith.constant 0 : index
    %c0_35 = arith.constant 0 : index
    %87 = vector.load %arg9[%c0_33, %c0_34, %c0_35] : memref<2x1x48xf32, #tpu.memory_space<vmem>>, vector<1x1x48xf32>
    %88 = vector.shape_cast %87 : vector<1x1x48xf32> to vector<1x48xf32>
    %cst_36 = arith.constant dense<0.000000e+00> : vector<8xf32>
    %89 = vector.multi_reduction <add>, %84, %cst_36 [1] : vector<8x48xf32> to vector<8xf32>
    %90 = vector.shape_cast %89 : vector<8xf32> to vector<8x1xf32>
    %cst_37 = arith.constant 4.800000e+01 : f32
    %91 = vector.broadcast %cst_37 : f32 to vector<8x1xf32>
    %92 = arith.divf %90, %91 : vector<8x1xf32>
    %93 = vector.broadcast %92 : vector<8x1xf32> to vector<8x48xf32>
    %94 = arith.subf %84, %93 : vector<8x48xf32>
    %95 = arith.mulf %94, %94 : vector<8x48xf32>
    %cst_38 = arith.constant dense<0.000000e+00> : vector<8xf32>
    %96 = vector.multi_reduction <add>, %95, %cst_38 [1] : vector<8x48xf32> to vector<8xf32>
    %97 = vector.shape_cast %96 : vector<8xf32> to vector<8x1xf32>
    %cst_39 = arith.constant 4.800000e+01 : f32
    %98 = vector.broadcast %cst_39 : f32 to vector<8x1xf32>
    %99 = arith.divf %97, %98 : vector<8x1xf32>
    %100 = vector.broadcast %92 : vector<8x1xf32> to vector<8x48xf32>
    %101 = arith.subf %84, %100 : vector<8x48xf32>
    %cst_40 = arith.constant 9.99999974E-6 : f32
    %102 = vector.broadcast %cst_40 : f32 to vector<8x1xf32>
    %103 = arith.addf %99, %102 : vector<8x1xf32>
    %104 = math.rsqrt %103 : vector<8x1xf32>
    %105 = vector.broadcast %104 : vector<8x1xf32> to vector<8x48xf32>
    %106 = arith.mulf %101, %105 : vector<8x48xf32>
    %107 = vector.broadcast %86 : vector<1x48xf32> to vector<8x48xf32>
    %108 = arith.mulf %106, %107 : vector<8x48xf32>
    %109 = vector.broadcast %88 : vector<1x48xf32> to vector<8x48xf32>
    %110 = arith.addf %108, %109 : vector<8x48xf32>
    %111 = arith.truncf %110 : vector<8x48xf32> to vector<8x48xbf16>
    %c0_41 = arith.constant 0 : index
    %c0_42 = arith.constant 0 : index
    %c0_43 = arith.constant 0 : index
    %112 = vector.load %arg10[%c0_41, %c0_42, %c0_43] : memref<2x48x192xbf16, #tpu.memory_space<vmem>>, vector<1x48x192xbf16>
    %113 = vector.shape_cast %112 : vector<1x48x192xbf16> to vector<48x192xbf16>
    %cst_44 = arith.constant dense<0.000000e+00> : vector<8x192xf32>
    %114 = tpu.matmul %111, %113, %cst_44 {dimension_numbers = #tpu.dot_dimension_numbers<[1], [0], [0], [1], [0, 0, 1, 1], [], []>} : vector<8x48xbf16>, vector<48x192xbf16>, vector<8x192xf32> -> vector<8x192xf32>
    %c0_45 = arith.constant 0 : index
    %c0_46 = arith.constant 0 : index
    %c0_47 = arith.constant 0 : index
    %115 = vector.load %arg11[%c0_45, %c0_46, %c0_47] : memref<2x1x192xf32, #tpu.memory_space<vmem>>, vector<1x1x192xf32>
    %116 = vector.shape_cast %115 : vector<1x1x192xf32> to vector<1x192xf32>
    %117 = vector.broadcast %116 : vector<1x192xf32> to vector<8x192xf32>
    %118 = arith.addf %114, %117 : vector<8x192xf32>
    %cst_48 = arith.constant 0.000000e+00 : f32
    %119 = vector.broadcast %cst_48 : f32 to vector<8x192xf32>
    %120 = arith.maximumf %118, %119 : vector<8x192xf32>
    %121 = arith.truncf %120 : vector<8x192xf32> to vector<8x192xbf16>
    %c0_49 = arith.constant 0 : index
    %c0_50 = arith.constant 0 : index
    %c0_51 = arith.constant 0 : index
    %122 = vector.load %arg12[%c0_49, %c0_50, %c0_51] : memref<2x192x48xbf16, #tpu.memory_space<vmem>>, vector<1x192x48xbf16>
    %123 = vector.shape_cast %122 : vector<1x192x48xbf16> to vector<192x48xbf16>
    %cst_52 = arith.constant dense<0.000000e+00> : vector<8x48xf32>
    %124 = tpu.matmul %121, %123, %cst_52 {dimension_numbers = #tpu.dot_dimension_numbers<[1], [0], [0], [1], [0, 0, 1, 1], [], []>} : vector<8x192xbf16>, vector<192x48xbf16>, vector<8x48xf32> -> vector<8x48xf32>
    %c0_53 = arith.constant 0 : index
    %c0_54 = arith.constant 0 : index
    %c0_55 = arith.constant 0 : index
    %125 = vector.load %arg13[%c0_53, %c0_54, %c0_55] : memref<2x1x48xf32, #tpu.memory_space<vmem>>, vector<1x1x48xf32>
    %126 = vector.shape_cast %125 : vector<1x1x48xf32> to vector<1x48xf32>
    %127 = vector.broadcast %126 : vector<1x48xf32> to vector<8x48xf32>
    %128 = arith.addf %124, %127 : vector<8x48xf32>
    %129 = arith.addf %110, %128 : vector<8x48xf32>
    %c1 = arith.constant 1 : index
    %c0_56 = arith.constant 0 : index
    %c0_57 = arith.constant 0 : index
    %130 = vector.load %arg3[%c1, %c0_56, %c0_57] : memref<2x1x48xf32, #tpu.memory_space<vmem>>, vector<1x1x48xf32>
    %131 = vector.shape_cast %130 : vector<1x1x48xf32> to vector<1x48xf32>
    %c1_58 = arith.constant 1 : index
    %c0_59 = arith.constant 0 : index
    %c0_60 = arith.constant 0 : index
    %132 = vector.load %arg4[%c1_58, %c0_59, %c0_60] : memref<2x1x48xf32, #tpu.memory_space<vmem>>, vector<1x1x48xf32>
    %133 = vector.shape_cast %132 : vector<1x1x48xf32> to vector<1x48xf32>
    %cst_61 = arith.constant dense<0.000000e+00> : vector<8xf32>
    %134 = vector.multi_reduction <add>, %129, %cst_61 [1] : vector<8x48xf32> to vector<8xf32>
    %135 = vector.shape_cast %134 : vector<8xf32> to vector<8x1xf32>
    %cst_62 = arith.constant 4.800000e+01 : f32
    %136 = vector.broadcast %cst_62 : f32 to vector<8x1xf32>
    %137 = arith.divf %135, %136 : vector<8x1xf32>
    %138 = vector.broadcast %137 : vector<8x1xf32> to vector<8x48xf32>
    %139 = arith.subf %129, %138 : vector<8x48xf32>
    %140 = arith.mulf %139, %139 : vector<8x48xf32>
    %cst_63 = arith.constant dense<0.000000e+00> : vector<8xf32>
    %141 = vector.multi_reduction <add>, %140, %cst_63 [1] : vector<8x48xf32> to vector<8xf32>
    %142 = vector.shape_cast %141 : vector<8xf32> to vector<8x1xf32>
    %cst_64 = arith.constant 4.800000e+01 : f32
    %143 = vector.broadcast %cst_64 : f32 to vector<8x1xf32>
    %144 = arith.divf %142, %143 : vector<8x1xf32>
    %145 = vector.broadcast %137 : vector<8x1xf32> to vector<8x48xf32>
    %146 = arith.subf %129, %145 : vector<8x48xf32>
    %cst_65 = arith.constant 9.99999974E-6 : f32
    %147 = vector.broadcast %cst_65 : f32 to vector<8x1xf32>
    %148 = arith.addf %144, %147 : vector<8x1xf32>
    %149 = math.rsqrt %148 : vector<8x1xf32>
    %150 = vector.broadcast %149 : vector<8x1xf32> to vector<8x48xf32>
    %151 = arith.mulf %146, %150 : vector<8x48xf32>
    %152 = vector.broadcast %131 : vector<1x48xf32> to vector<8x48xf32>
    %153 = arith.mulf %151, %152 : vector<8x48xf32>
    %154 = vector.broadcast %133 : vector<1x48xf32> to vector<8x48xf32>
    %155 = arith.addf %153, %154 : vector<8x48xf32>
    %156 = arith.truncf %155 : vector<8x48xf32> to vector<8x48xbf16>
    %c1_66 = arith.constant 1 : index
    %c0_67 = arith.constant 0 : index
    %c0_68 = arith.constant 0 : index
    %157 = vector.load %arg5[%c1_66, %c0_67, %c0_68] : memref<2x48x144xbf16, #tpu.memory_space<vmem>>, vector<1x48x144xbf16>
    %158 = vector.shape_cast %157 : vector<1x48x144xbf16> to vector<48x144xbf16>
    %cst_69 = arith.constant dense<0.000000e+00> : vector<8x144xf32>
    %159 = tpu.matmul %156, %158, %cst_69 {dimension_numbers = #tpu.dot_dimension_numbers<[1], [0], [0], [1], [0, 0, 1, 1], [], []>} : vector<8x48xbf16>, vector<48x144xbf16>, vector<8x144xf32> -> vector<8x144xf32>
    %160 = vector.extract_strided_slice %159 {offsets = [0, 0], sizes = [8, 48], strides = [1, 1]} : vector<8x144xf32> to vector<8x48xf32>
    %161 = vector.shape_cast %160 : vector<8x48xf32> to vector<1x8x6x8xf32>
    %162 = tpu.transpose %161, [0, 2, 1, 3] : vector<1x8x6x8xf32> -> vector<1x6x8x8xf32>
    %163 = vector.shape_cast %162 : vector<1x6x8x8xf32> to vector<6x8x8xf32>
    %164 = vector.extract_strided_slice %159 {offsets = [0, 48], sizes = [8, 48], strides = [1, 1]} : vector<8x144xf32> to vector<8x48xf32>
    %165 = vector.shape_cast %164 : vector<8x48xf32> to vector<1x8x6x8xf32>
    %166 = tpu.transpose %165, [0, 2, 1, 3] : vector<1x8x6x8xf32> -> vector<1x6x8x8xf32>
    %167 = vector.shape_cast %166 : vector<1x6x8x8xf32> to vector<6x8x8xf32>
    %168 = vector.extract_strided_slice %159 {offsets = [0, 96], sizes = [8, 48], strides = [1, 1]} : vector<8x144xf32> to vector<8x48xf32>
    %169 = vector.shape_cast %168 : vector<8x48xf32> to vector<1x8x6x8xf32>
    %170 = tpu.transpose %169, [0, 2, 1, 3] : vector<1x8x6x8xf32> -> vector<1x6x8x8xf32>
    %171 = vector.shape_cast %170 : vector<1x6x8x8xf32> to vector<6x8x8xf32>
    %172 = arith.truncf %163 : vector<6x8x8xf32> to vector<6x8x8xbf16>
    %173 = arith.truncf %167 : vector<6x8x8xf32> to vector<6x8x8xbf16>
    "tpu.trace_start"() <{level = 10 : i32, message = "gqd,gkd->gqk"}> : () -> ()
    %cst_70 = arith.constant dense<0.000000e+00> : vector<6x8x8xf32>
    %174 = tpu.matmul %172, %173, %cst_70 {dimension_numbers = #tpu.dot_dimension_numbers<[2], [2], [1], [1], [0, 0, 0, 1, 1, 1], [0], [0]>} : vector<6x8x8xbf16>, vector<6x8x8xbf16>, vector<6x8x8xf32> -> vector<6x8x8xf32>
    "tpu.trace_stop"() : () -> ()
    %175 = vector.shape_cast %9 : vector<8x8xi1> to vector<1x8x8xi1>
    %cst_71 = arith.constant -1.000000e+30 : f32
    %176 = vector.shape_cast %175 : vector<1x8x8xi1> to vector<1x8x8xi1>
    %177 = vector.broadcast %176 : vector<1x8x8xi1> to vector<6x8x8xi1>
    %178 = vector.broadcast %cst_71 : f32 to vector<6x8x8xf32>
    %179 = arith.select %177, %174, %178 : vector<6x8x8xi1>, vector<6x8x8xf32>
    %cst_72 = arith.constant dense<0xFF800000> : vector<6x8xf32>
    %180 = vector.multi_reduction <maximumf>, %179, %cst_72 [2] : vector<6x8x8xf32> to vector<6x8xf32>
    %181 = vector.shape_cast %180 : vector<6x8xf32> to vector<6x8x1xf32>
    %182 = vector.broadcast %181 : vector<6x8x1xf32> to vector<6x8x8xf32>
    %183 = arith.subf %179, %182 : vector<6x8x8xf32>
    %184 = math.exp %183 : vector<6x8x8xf32>
    %cst_73 = arith.constant dense<0.000000e+00> : vector<6x8xf32>
    %185 = vector.multi_reduction <add>, %184, %cst_73 [2] : vector<6x8x8xf32> to vector<6x8xf32>
    %186 = vector.shape_cast %185 : vector<6x8xf32> to vector<6x8x1xf32>
    %187 = tpu.reciprocal %186 {approx = true} : vector<6x8x1xf32> -> vector<6x8x1xf32>
    %188 = vector.broadcast %187 : vector<6x8x1xf32> to vector<6x8x8xf32>
    %189 = arith.mulf %184, %188 : vector<6x8x8xf32>
    %190 = arith.truncf %189 : vector<6x8x8xf32> to vector<6x8x8xbf16>
    %191 = arith.truncf %171 : vector<6x8x8xf32> to vector<6x8x8xbf16>
    "tpu.trace_start"() <{level = 10 : i32, message = "gqk,gkd->gqd"}> : () -> ()
    %cst_74 = arith.constant dense<0.000000e+00> : vector<6x8x8xf32>
    %192 = tpu.matmul %190, %191, %cst_74 {dimension_numbers = #tpu.dot_dimension_numbers<[2], [1], [1], [2], [0, 0, 0, 1, 1, 2], [0], [0]>} : vector<6x8x8xbf16>, vector<6x8x8xbf16>, vector<6x8x8xf32> -> vector<6x8x8xf32>
    "tpu.trace_stop"() : () -> ()
    %193 = vector.shape_cast %192 : vector<6x8x8xf32> to vector<1x6x8x8xf32>
    %194 = tpu.transpose %193, [0, 2, 1, 3] : vector<1x6x8x8xf32> -> vector<1x8x6x8xf32>
    %195 = vector.shape_cast %194 : vector<1x8x6x8xf32> to vector<8x48xf32>
    %196 = arith.truncf %195 : vector<8x48xf32> to vector<8x48xbf16>
    %c1_75 = arith.constant 1 : index
    %c0_76 = arith.constant 0 : index
    %c0_77 = arith.constant 0 : index
    %197 = vector.load %arg6[%c1_75, %c0_76, %c0_77] : memref<2x48x48xbf16, #tpu.memory_space<vmem>>, vector<1x48x48xbf16>
    %198 = vector.shape_cast %197 : vector<1x48x48xbf16> to vector<48x48xbf16>
    %cst_78 = arith.constant dense<0.000000e+00> : vector<8x48xf32>
    %199 = tpu.matmul %196, %198, %cst_78 {dimension_numbers = #tpu.dot_dimension_numbers<[1], [0], [0], [1], [0, 0, 1, 1], [], []>} : vector<8x48xbf16>, vector<48x48xbf16>, vector<8x48xf32> -> vector<8x48xf32>
    %c1_79 = arith.constant 1 : index
    %c0_80 = arith.constant 0 : index
    %c0_81 = arith.constant 0 : index
    %200 = vector.load %arg7[%c1_79, %c0_80, %c0_81] : memref<2x1x48xf32, #tpu.memory_space<vmem>>, vector<1x1x48xf32>
    %201 = vector.shape_cast %200 : vector<1x1x48xf32> to vector<1x48xf32>
    %202 = vector.broadcast %201 : vector<1x48xf32> to vector<8x48xf32>
    %203 = arith.addf %199, %202 : vector<8x48xf32>
    %204 = arith.addf %155, %203 : vector<8x48xf32>
    %c1_82 = arith.constant 1 : index
    %c0_83 = arith.constant 0 : index
    %c0_84 = arith.constant 0 : index
    %205 = vector.load %arg8[%c1_82, %c0_83, %c0_84] : memref<2x1x48xf32, #tpu.memory_space<vmem>>, vector<1x1x48xf32>
    %206 = vector.shape_cast %205 : vector<1x1x48xf32> to vector<1x48xf32>
    %c1_85 = arith.constant 1 : index
    %c0_86 = arith.constant 0 : index
    %c0_87 = arith.constant 0 : index
    %207 = vector.load %arg9[%c1_85, %c0_86, %c0_87] : memref<2x1x48xf32, #tpu.memory_space<vmem>>, vector<1x1x48xf32>
    %208 = vector.shape_cast %207 : vector<1x1x48xf32> to vector<1x48xf32>
    %cst_88 = arith.constant dense<0.000000e+00> : vector<8xf32>
    %209 = vector.multi_reduction <add>, %204, %cst_88 [1] : vector<8x48xf32> to vector<8xf32>
    %210 = vector.shape_cast %209 : vector<8xf32> to vector<8x1xf32>
    %cst_89 = arith.constant 4.800000e+01 : f32
    %211 = vector.broadcast %cst_89 : f32 to vector<8x1xf32>
    %212 = arith.divf %210, %211 : vector<8x1xf32>
    %213 = vector.broadcast %212 : vector<8x1xf32> to vector<8x48xf32>
    %214 = arith.subf %204, %213 : vector<8x48xf32>
    %215 = arith.mulf %214, %214 : vector<8x48xf32>
    %cst_90 = arith.constant dense<0.000000e+00> : vector<8xf32>
    %216 = vector.multi_reduction <add>, %215, %cst_90 [1] : vector<8x48xf32> to vector<8xf32>
    %217 = vector.shape_cast %216 : vector<8xf32> to vector<8x1xf32>
    %cst_91 = arith.constant 4.800000e+01 : f32
    %218 = vector.broadcast %cst_91 : f32 to vector<8x1xf32>
    %219 = arith.divf %217, %218 : vector<8x1xf32>
    %220 = vector.broadcast %212 : vector<8x1xf32> to vector<8x48xf32>
    %221 = arith.subf %204, %220 : vector<8x48xf32>
    %cst_92 = arith.constant 9.99999974E-6 : f32
    %222 = vector.broadcast %cst_92 : f32 to vector<8x1xf32>
    %223 = arith.addf %219, %222 : vector<8x1xf32>
    %224 = math.rsqrt %223 : vector<8x1xf32>
    %225 = vector.broadcast %224 : vector<8x1xf32> to vector<8x48xf32>
    %226 = arith.mulf %221, %225 : vector<8x48xf32>
    %227 = vector.broadcast %206 : vector<1x48xf32> to vector<8x48xf32>
    %228 = arith.mulf %226, %227 : vector<8x48xf32>
    %229 = vector.broadcast %208 : vector<1x48xf32> to vector<8x48xf32>
    %230 = arith.addf %228, %229 : vector<8x48xf32>
    %231 = arith.truncf %230 : vector<8x48xf32> to vector<8x48xbf16>
    %c1_93 = arith.constant 1 : index
    %c0_94 = arith.constant 0 : index
    %c0_95 = arith.constant 0 : index
    %232 = vector.load %arg10[%c1_93, %c0_94, %c0_95] : memref<2x48x192xbf16, #tpu.memory_space<vmem>>, vector<1x48x192xbf16>
    %233 = vector.shape_cast %232 : vector<1x48x192xbf16> to vector<48x192xbf16>
    %cst_96 = arith.constant dense<0.000000e+00> : vector<8x192xf32>
    %234 = tpu.matmul %231, %233, %cst_96 {dimension_numbers = #tpu.dot_dimension_numbers<[1], [0], [0], [1], [0, 0, 1, 1], [], []>} : vector<8x48xbf16>, vector<48x192xbf16>, vector<8x192xf32> -> vector<8x192xf32>
    %c1_97 = arith.constant 1 : index
    %c0_98 = arith.constant 0 : index
    %c0_99 = arith.constant 0 : index
    %235 = vector.load %arg11[%c1_97, %c0_98, %c0_99] : memref<2x1x192xf32, #tpu.memory_space<vmem>>, vector<1x1x192xf32>
    %236 = vector.shape_cast %235 : vector<1x1x192xf32> to vector<1x192xf32>
    %237 = vector.broadcast %236 : vector<1x192xf32> to vector<8x192xf32>
    %238 = arith.addf %234, %237 : vector<8x192xf32>
    %cst_100 = arith.constant 0.000000e+00 : f32
    %239 = vector.broadcast %cst_100 : f32 to vector<8x192xf32>
    %240 = arith.maximumf %238, %239 : vector<8x192xf32>
    %241 = arith.truncf %240 : vector<8x192xf32> to vector<8x192xbf16>
    %c1_101 = arith.constant 1 : index
    %c0_102 = arith.constant 0 : index
    %c0_103 = arith.constant 0 : index
    %242 = vector.load %arg12[%c1_101, %c0_102, %c0_103] : memref<2x192x48xbf16, #tpu.memory_space<vmem>>, vector<1x192x48xbf16>
    %243 = vector.shape_cast %242 : vector<1x192x48xbf16> to vector<192x48xbf16>
    %cst_104 = arith.constant dense<0.000000e+00> : vector<8x48xf32>
    %244 = tpu.matmul %241, %243, %cst_104 {dimension_numbers = #tpu.dot_dimension_numbers<[1], [0], [0], [1], [0, 0, 1, 1], [], []>} : vector<8x192xbf16>, vector<192x48xbf16>, vector<8x48xf32> -> vector<8x48xf32>
    %c1_105 = arith.constant 1 : index
    %c0_106 = arith.constant 0 : index
    %c0_107 = arith.constant 0 : index
    %245 = vector.load %arg13[%c1_105, %c0_106, %c0_107] : memref<2x1x48xf32, #tpu.memory_space<vmem>>, vector<1x1x48xf32>
    %246 = vector.shape_cast %245 : vector<1x1x48xf32> to vector<1x48xf32>
    %247 = vector.broadcast %246 : vector<1x48xf32> to vector<8x48xf32>
    %248 = arith.addf %244, %247 : vector<8x48xf32>
    %249 = arith.addf %230, %248 : vector<8x48xf32>
    %c0_108 = arith.constant 0 : index
    %c0_109 = arith.constant 0 : index
    %250 = vector.load %arg14[%c0_108, %c0_109] : memref<1x48xf32, #tpu.memory_space<vmem>>, vector<1x48xf32>
    %c0_110 = arith.constant 0 : index
    %c0_111 = arith.constant 0 : index
    %251 = vector.load %arg15[%c0_110, %c0_111] : memref<1x48xf32, #tpu.memory_space<vmem>>, vector<1x48xf32>
    %cst_112 = arith.constant dense<0.000000e+00> : vector<8xf32>
    %252 = vector.multi_reduction <add>, %249, %cst_112 [1] : vector<8x48xf32> to vector<8xf32>
    %253 = vector.shape_cast %252 : vector<8xf32> to vector<8x1xf32>
    %cst_113 = arith.constant 4.800000e+01 : f32
    %254 = vector.broadcast %cst_113 : f32 to vector<8x1xf32>
    %255 = arith.divf %253, %254 : vector<8x1xf32>
    %256 = vector.broadcast %255 : vector<8x1xf32> to vector<8x48xf32>
    %257 = arith.subf %249, %256 : vector<8x48xf32>
    %258 = arith.mulf %257, %257 : vector<8x48xf32>
    %cst_114 = arith.constant dense<0.000000e+00> : vector<8xf32>
    %259 = vector.multi_reduction <add>, %258, %cst_114 [1] : vector<8x48xf32> to vector<8xf32>
    %260 = vector.shape_cast %259 : vector<8xf32> to vector<8x1xf32>
    %cst_115 = arith.constant 4.800000e+01 : f32
    %261 = vector.broadcast %cst_115 : f32 to vector<8x1xf32>
    %262 = arith.divf %260, %261 : vector<8x1xf32>
    %263 = vector.broadcast %255 : vector<8x1xf32> to vector<8x48xf32>
    %264 = arith.subf %249, %263 : vector<8x48xf32>
    %cst_116 = arith.constant 9.99999974E-6 : f32
    %265 = vector.broadcast %cst_116 : f32 to vector<8x1xf32>
    %266 = arith.addf %262, %265 : vector<8x1xf32>
    %267 = math.rsqrt %266 : vector<8x1xf32>
    %268 = vector.broadcast %267 : vector<8x1xf32> to vector<8x48xf32>
    %269 = arith.mulf %264, %268 : vector<8x48xf32>
    %270 = vector.broadcast %250 : vector<1x48xf32> to vector<8x48xf32>
    %271 = arith.mulf %269, %270 : vector<8x48xf32>
    %272 = vector.broadcast %251 : vector<1x48xf32> to vector<8x48xf32>
    %273 = arith.addf %271, %272 : vector<8x48xf32>
    %274 = arith.truncf %273 : vector<8x48xf32> to vector<8x48xbf16>
    %c0_117 = arith.constant 0 : index
    %c0_118 = arith.constant 0 : index
    %275 = vector.load %arg16[%c0_117, %c0_118] : memref<48x128xbf16, #tpu.memory_space<vmem>>, vector<48x128xbf16>
    %cst_119 = arith.constant dense<0.000000e+00> : vector<8x128xf32>
    %276 = tpu.matmul %274, %275, %cst_119 {dimension_numbers = #tpu.dot_dimension_numbers<[1], [0], [0], [1], [0, 0, 1, 1], [], []>} : vector<8x48xbf16>, vector<48x128xbf16>, vector<8x128xf32> -> vector<8x128xf32>
    %c0_120 = arith.constant 0 : index
    %c0_121 = arith.constant 0 : index
    %277 = vector.load %arg17[%c0_120, %c0_121] : memref<1x128xf32, #tpu.memory_space<vmem>>, vector<1x128xf32>
    %278 = vector.broadcast %277 : vector<1x128xf32> to vector<8x128xf32>
    %279 = arith.addf %276, %278 : vector<8x128xf32>
    %280 = vector.shape_cast %279 : vector<8x128xf32> to vector<1x8x128xf32>
    %c0_122 = arith.constant 0 : index
    %c0_123 = arith.constant 0 : index
    %c0_124 = arith.constant 0 : index
    %281 = vector.load %arg18[%c0_122, %c0_123, %c0_124] : memref<1x8x128xf32, #tpu.memory_space<vmem>>, vector<1x8x128xf32>
    tpu.vector_store %arg18[%c0_122, %c0_123, %c0_124], %280 {strides = array<i32>} : memref<1x8x128xf32, #tpu.memory_space<vmem>>, vector<1x8x128xf32>,
    return
  }
  func.func @transform_0(%arg0: i32) -> (i32, i32, i32) {
    %c0_i32 = arith.constant 0 : i32
    %c0_i32_0 = arith.constant 0 : i32
    %c0_i32_1 = arith.constant 0 : i32
    return %arg0, %c0_i32, %c0_i32_0 : i32, i32, i32
  }
  func.func @transform_1(%arg0: i32) -> (i32, i32) {
    %c0_i32 = arith.constant 0 : i32
    %c0_i32_0 = arith.constant 0 : i32
    %c0_i32_1 = arith.constant 0 : i32
    return %c0_i32, %c0_i32_0 : i32, i32
  }
  func.func @transform_2(%arg0: i32) -> (i32, i32, i32) {
    %c0_i32 = arith.constant 0 : i32
    %c0_i32_0 = arith.constant 0 : i32
    %c0_i32_1 = arith.constant 0 : i32
    %c0_i32_2 = arith.constant 0 : i32
    return %c0_i32, %c0_i32_0, %c0_i32_1 : i32, i32, i32
  }
  func.func @transform_3(%arg0: i32) -> (i32, i32, i32) {
    %c0_i32 = arith.constant 0 : i32
    %c0_i32_0 = arith.constant 0 : i32
    %c0_i32_1 = arith.constant 0 : i32
    %c0_i32_2 = arith.constant 0 : i32
    return %c0_i32, %c0_i32_0, %c0_i32_1 : i32, i32, i32
  }
  func.func @transform_4(%arg0: i32) -> (i32, i32, i32) {
    %c0_i32 = arith.constant 0 : i32
    %c0_i32_0 = arith.constant 0 : i32
    %c0_i32_1 = arith.constant 0 : i32
    %c0_i32_2 = arith.constant 0 : i32
    return %c0_i32, %c0_i32_0, %c0_i32_1 : i32, i32, i32
  }
  func.func @transform_5(%arg0: i32) -> (i32, i32, i32) {
    %c0_i32 = arith.constant 0 : i32
    %c0_i32_0 = arith.constant 0 : i32
    %c0_i32_1 = arith.constant 0 : i32
    %c0_i32_2 = arith.constant 0 : i32
    return %c0_i32, %c0_i32_0, %c0_i32_1 : i32, i32, i32
  }
  func.func @transform_6(%arg0: i32) -> (i32, i32, i32) {
    %c0_i32 = arith.constant 0 : i32
    %c0_i32_0 = arith.constant 0 : i32
    %c0_i32_1 = arith.constant 0 : i32
    %c0_i32_2 = arith.constant 0 : i32
    return %c0_i32, %c0_i32_0, %c0_i32_1 : i32, i32, i32
  }
  func.func @transform_7(%arg0: i32) -> (i32, i32, i32) {
    %c0_i32 = arith.constant 0 : i32
    %c0_i32_0 = arith.constant 0 : i32
    %c0_i32_1 = arith.constant 0 : i32
    %c0_i32_2 = arith.constant 0 : i32
    return %c0_i32, %c0_i32_0, %c0_i32_1 : i32, i32, i32
  }
  func.func @transform_8(%arg0: i32) -> (i32, i32, i32) {
    %c0_i32 = arith.constant 0 : i32
    %c0_i32_0 = arith.constant 0 : i32
    %c0_i32_1 = arith.constant 0 : i32
    %c0_i32_2 = arith.constant 0 : i32
    return %c0_i32, %c0_i32_0, %c0_i32_1 : i32, i32, i32
  }
  func.func @transform_9(%arg0: i32) -> (i32, i32, i32) {
    %c0_i32 = arith.constant 0 : i32
    %c0_i32_0 = arith.constant 0 : i32
    %c0_i32_1 = arith.constant 0 : i32
    %c0_i32_2 = arith.constant 0 : i32
    return %c0_i32, %c0_i32_0, %c0_i32_1 : i32, i32, i32
  }
  func.func @transform_10(%arg0: i32) -> (i32, i32, i32) {
    %c0_i32 = arith.constant 0 : i32
    %c0_i32_0 = arith.constant 0 : i32
    %c0_i32_1 = arith.constant 0 : i32
    %c0_i32_2 = arith.constant 0 : i32
    return %c0_i32, %c0_i32_0, %c0_i32_1 : i32, i32, i32
  }
  func.func @transform_11(%arg0: i32) -> (i32, i32, i32) {
    %c0_i32 = arith.constant 0 : i32
    %c0_i32_0 = arith.constant 0 : i32
    %c0_i32_1 = arith.constant 0 : i32
    %c0_i32_2 = arith.constant 0 : i32
    return %c0_i32, %c0_i32_0, %c0_i32_1 : i32, i32, i32
  }
  func.func @transform_12(%arg0: i32) -> (i32, i32, i32) {
    %c0_i32 = arith.constant 0 : i32
    %c0_i32_0 = arith.constant 0 : i32
    %c0_i32_1 = arith.constant 0 : i32
    %c0_i32_2 = arith.constant 0 : i32
    return %c0_i32, %c0_i32_0, %c0_i32_1 : i32, i32, i32
  }
  func.func @transform_13(%arg0: i32) -> (i32, i32) {
    %c0_i32 = arith.constant 0 : i32
    %c0_i32_0 = arith.constant 0 : i32
    %c0_i32_1 = arith.constant 0 : i32
    return %c0_i32, %c0_i32_0 : i32, i32
  }
  func.func @transform_14(%arg0: i32) -> (i32, i32) {
    %c0_i32 = arith.constant 0 : i32
    %c0_i32_0 = arith.constant 0 : i32
    %c0_i32_1 = arith.constant 0 : i32
    return %c0_i32, %c0_i32_0 : i32, i32
  }
  func.func @transform_15(%arg0: i32) -> (i32, i32) {
    %c0_i32 = arith.constant 0 : i32
    %c0_i32_0 = arith.constant 0 : i32
    %c0_i32_1 = arith.constant 0 : i32
    return %c0_i32, %c0_i32_0 : i32, i32
  }
  func.func @transform_16(%arg0: i32) -> (i32, i32) {
    %c0_i32 = arith.constant 0 : i32
    %c0_i32_0 = arith.constant 0 : i32
    %c0_i32_1 = arith.constant 0 : i32
    return %c0_i32, %c0_i32_0 : i32, i32
  }
  func.func @transform_17(%arg0: i32) -> (i32, i32, i32) {
    %c0_i32 = arith.constant 0 : i32
    %c0_i32_0 = arith.constant 0 : i32
    %c0_i32_1 = arith.constant 0 : i32
    return %arg0, %c0_i32, %c0_i32_0 : i32, i32, i32
  }
}

</mosaic_0001>

<llo_original>
// kernel: gpt_forward.1
$region0: #{gpt_forward.1}
  #allocation0 [shape = 'u32[]', space=smem, size = 0x4, offset = 0x4, fixed_abs, tag = 'smem constant byte address 0x4 - core index']
  #allocation1 [shape = 'u32[144,128]{1,0:T(1,128)}', space=vmem, size = 0x12000, scoped, tag = 'internal scratch']
  %s0 = inlined_call_operand.vmem [shape: bf16[2,8,48], index: 0, kind: input, shape index: {}]
  %s1 = inlined_call_operand.vmem [shape: bf16[8,48], index: 1, kind: input, shape index: {}]
  %s2 = inlined_call_operand.vmem [shape: f32[2,1,48], index: 2, kind: input, shape index: {}]
  %s3 = inlined_call_operand.vmem [shape: f32[2,1,48], index: 3, kind: input, shape index: {}]
  %s4 = inlined_call_operand.vmem [shape: bf16[2,48,144], index: 4, kind: input, shape index: {}]
  %s5 = inlined_call_operand.vmem [shape: bf16[2,48,48], index: 5, kind: input, shape index: {}]
  %s6 = inlined_call_operand.vmem [shape: f32[2,1,48], index: 6, kind: input, shape index: {}]
  %s7 = inlined_call_operand.vmem [shape: f32[2,1,48], index: 7, kind: input, shape index: {}]
  %s8 = inlined_call_operand.vmem [shape: f32[2,1,48], index: 8, kind: input, shape index: {}]
  %s9 = inlined_call_operand.vmem [shape: bf16[2,48,192], index: 9, kind: input, shape index: {}]
  %s10 = inlined_call_operand.vmem [shape: f32[2,1,192], index: 10, kind: input, shape index: {}]
  %s11 = inlined_call_operand.vmem [shape: bf16[2,192,48], index: 11, kind: input, shape index: {}]
  %s12 = inlined_call_operand.vmem [shape: f32[2,1,48], index: 12, kind: input, shape index: {}]
  %s13 = inlined_call_operand.vmem [shape: f32[1,48], index: 13, kind: input, shape index: {}]
  %s14 = inlined_call_operand.vmem [shape: f32[1,48], index: 14, kind: input, shape index: {}]
  %s15 = inlined_call_operand.vmem [shape: bf16[48,128], index: 15, kind: input, shape index: {}]
  %s16 = inlined_call_operand.vmem [shape: f32[1,128], index: 16, kind: input, shape index: {}]
  %s17 = inlined_call_operand.hbm [shape: f32[2,8,128], index: 17, kind: output, shape index: {}]
  %s18 = sld [smem:[#allocation0]]
  $region101: #{gpt_forward.1} parent=0
    _
  %s20 = ssub.s32 1, %s18
  %s21 = scalar_select 0, %s20, %s18
  $region1: #{gpt_forward.1} parent=0
    #allocation2 [shape = 'u8[8192]{0}', space=vmem, size = 0x2000, scoped, tag = 'output window, operand 0']
    #allocation3 [shape = 's32[2]{0}', space=sflag, size = 0x8, scoped, tag = 'scoped memory for gpt_forward.1']
    %22 = vsyncpa [#allocation3], 0
    %s23 = scalar_lea.sflag [#allocation3], 1
    %24 = vsyncpa %s23, 0
    loop: start=0, step=1, limit=4
    $region2: #{gpt_forward.1} parent=1 // loop_pre_header
      _
    $region3: #{gpt_forward.1} parent=1 // loop_header
      %s26 = sphi 0, %s30
      %p27 = scmp.ge.s32.totalorder %s26, 4
      %s36 = sphi 0, %s38
      %s39 = sphi 0, %s36
      %s40 = sphi 0, %s39
      %s56 = sphi 0, %s40
      %s60 = sphi 0, %s60
      %s62 = sphi 0, %s60
      %s63 = sphi 0, %s62
      %s77 = sphi 0, %s63
      %s81 = sphi 0, %s81
      %s83 = sphi 0, %s81
      %s84 = sphi 0, %s83
      %s98 = sphi 0, %s84
      %s102 = sphi 0, %s102
      %s104 = sphi 0, %s102
      %s105 = sphi 0, %s104
      %s119 = sphi 0, %s105
      %s123 = sphi 0, %s123
      %s125 = sphi 0, %s123
      %s126 = sphi 0, %s125
      %s140 = sphi 0, %s126
      %s144 = sphi 0, %s144
      %s146 = sphi 0, %s144
      %s147 = sphi 0, %s146
      %s161 = sphi 0, %s147
      %s165 = sphi 0, %s165
      %s167 = sphi 0, %s165
      %s168 = sphi 0, %s167
      %s182 = sphi 0, %s168
      %s186 = sphi 0, %s186
      %s188 = sphi 0, %s186
      %s189 = sphi 0, %s188
      %s203 = sphi 0, %s189
      %s207 = sphi 0, %s207
      %s209 = sphi 0, %s207
      %s210 = sphi 0, %s209
      %s224 = sphi 0, %s210
      %s228 = sphi 0, %s228
      %s230 = sphi 0, %s228
      %s231 = sphi 0, %s230
      %s245 = sphi 0, %s231
      %s249 = sphi 0, %s249
      %s251 = sphi 0, %s249
      %s252 = sphi 0, %s251
      %s266 = sphi 0, %s252
      %s270 = sphi 0, %s270
      %s272 = sphi 0, %s270
      %s273 = sphi 0, %s272
      %s287 = sphi 0, %s273
      %s291 = sphi 0, %s291
      %s293 = sphi 0, %s291
      %s294 = sphi 0, %s293
      %s308 = sphi 0, %s294
      %s312 = sphi 0, %s312
      %s314 = sphi 0, %s312
      %s315 = sphi 0, %s314
      %s329 = sphi 0, %s315
      %s333 = sphi 0, %s333
      %s335 = sphi 0, %s333
      %s336 = sphi 0, %s335
      %s350 = sphi 0, %s336
      %s354 = sphi 0, %s354
      %s356 = sphi 0, %s354
      %s357 = sphi 0, %s356
      %s371 = sphi 0, %s357
      %s375 = sphi 0, %s375
      %s377 = sphi 0, %s375
      %s378 = sphi 0, %s377
      %s392 = sphi 0, %s378
      %s398 = sphi 0, %s400
      %s401 = sphi 0, %s398
      %s402 = sphi 0, %s401
      %s418 = sphi 0, %s402
    $region4: #{gpt_forward.1} parent=1 // loop_header_branch
      %29 = sbr.rel (%p27) target = $region8
    $region5: #{gpt_forward.1} parent=1 // loop_body
      %s31 = ssub.s32 %s26, 1
      %s32 = ssub.s32 %s26, 2
      %s33 = sadd.s32 %s26, 1
      %s34 = ssub.s32 %s26, %s33
      %p35 = scmp.eq.s32.totalorder %s34, 0
      %s37 = sadd.s32 %s36, 1
      %s38 = scalar_select %p35, %s36, %s37
      %p41 = pneg %p35
      %p42 = scmp.eq.s32.totalorder %s26, 1
      %p43 = por %p41, %p42
      %p44 = scmp.ne.s32.totalorder %s36, %s39
      %p45 = scmp.eq.s32.totalorder %s26, 0
      %p46 = por %p44, %p45
      %p47 = scmp.ne.s32.totalorder %s36, %s39
      %p48 = scmp.eq.s32.totalorder %s31, 1
      %p49 = por %p47, %p48
      %p50 = scmp.ne.s32.totalorder %s39, %s40
      %p51 = scmp.eq.s32.totalorder %s31, 0
      %p52 = por %p50, %p51
      %p53 = scmp.ne.s32.totalorder %s39, %s40
      %p54 = scmp.eq.s32.totalorder %s32, 1
      %p55 = por %p53, %p54
      %p57 = scmp.ne.s32.totalorder %s40, %s56
      %p58 = scmp.eq.s32.totalorder %s32, 0
      %p59 = por %p57, %p58
      %s61 = sadd.s32 %s60, 1
      %p64 = scmp.eq.s32.totalorder %s26, 1
      %p65 = scmp.ne.s32.totalorder %s60, %s62
      %p66 = scmp.eq.s32.totalorder %s26, 0
      %p67 = por %p65, %p66
      %p68 = scmp.ne.s32.totalorder %s60, %s62
      %p69 = scmp.eq.s32.totalorder %s31, 1
      %p70 = por %p68, %p69
      %p71 = scmp.ne.s32.totalorder %s62, %s63
      %p72 = scmp.eq.s32.totalorder %s31, 0
      %p73 = por %p71, %p72
      %p74 = scmp.ne.s32.totalorder %s62, %s63
      %p75 = scmp.eq.s32.totalorder %s32, 1
      %p76 = por %p74, %p75
      %p78 = scmp.ne.s32.totalorder %s63, %s77
      %p79 = scmp.eq.s32.totalorder %s32, 0
      %p80 = por %p78, %p79
      %s82 = sadd.s32 %s81, 1
      %p85 = scmp.eq.s32.totalorder %s26, 1
      %p86 = scmp.ne.s32.totalorder %s81, %s83
      %p87 = scmp.eq.s32.totalorder %s26, 0
      %p88 = por %p86, %p87
      %p89 = scmp.ne.s32.totalorder %s81, %s83
      %p90 = scmp.eq.s32.totalorder %s31, 1
      %p91 = por %p89, %p90
      %p92 = scmp.ne.s32.totalorder %s83, %s84
      %p93 = scmp.eq.s32.totalorder %s31, 0
      %p94 = por %p92, %p93
      %p95 = scmp.ne.s32.totalorder %s83, %s84
      %p96 = scmp.eq.s32.totalorder %s32, 1
      %p97 = por %p95, %p96
      %p99 = scmp.ne.s32.totalorder %s84, %s98
      %p100 = scmp.eq.s32.totalorder %s32, 0
      %p101 = por %p99, %p100
      %s103 = sadd.s32 %s102, 1
      %p106 = scmp.eq.s32.totalorder %s26, 1
      %p107 = scmp.ne.s32.totalorder %s102, %s104
      %p108 = scmp.eq.s32.totalorder %s26, 0
      %p109 = por %p107, %p108
      %p110 = scmp.ne.s32.totalorder %s102, %s104
      %p111 = scmp.eq.s32.totalorder %s31, 1
      %p112 = por %p110, %p111
      %p113 = scmp.ne.s32.totalorder %s104, %s105
      %p114 = scmp.eq.s32.totalorder %s31, 0
      %p115 = por %p113, %p114
      %p116 = scmp.ne.s32.totalorder %s104, %s105
      %p117 = scmp.eq.s32.totalorder %s32, 1
      %p118 = por %p116, %p117
      %p120 = scmp.ne.s32.totalorder %s105, %s119
      %p121 = scmp.eq.s32.totalorder %s32, 0
      %p122 = por %p120, %p121
      %s124 = sadd.s32 %s123, 1
      %p127 = scmp.eq.s32.totalorder %s26, 1
      %p128 = scmp.ne.s32.totalorder %s123, %s125
      %p129 = scmp.eq.s32.totalorder %s26, 0
      %p130 = por %p128, %p129
      %p131 = scmp.ne.s32.totalorder %s123, %s125
      %p132 = scmp.eq.s32.totalorder %s31, 1
      %p133 = por %p131, %p132
      %p134 = scmp.ne.s32.totalorder %s125, %s126
      %p135 = scmp.eq.s32.totalorder %s31, 0
      %p136 = por %p134, %p135
      %p137 = scmp.ne.s32.totalorder %s125, %s126
      %p138 = scmp.eq.s32.totalorder %s32, 1
      %p139 = por %p137, %p138
      %p141 = scmp.ne.s32.totalorder %s126, %s140
      %p142 = scmp.eq.s32.totalorder %s32, 0
      %p143 = por %p141, %p142
      %s145 = sadd.s32 %s144, 1
      %p148 = scmp.eq.s32.totalorder %s26, 1
      %p149 = scmp.ne.s32.totalorder %s144, %s146
      %p150 = scmp.eq.s32.totalorder %s26, 0
      %p151 = por %p149, %p150
      %p152 = scmp.ne.s32.totalorder %s144, %s146
      %p153 = scmp.eq.s32.totalorder %s31, 1
      %p154 = por %p152, %p153
      %p155 = scmp.ne.s32.totalorder %s146, %s147
      %p156 = scmp.eq.s32.totalorder %s31, 0
      %p157 = por %p155, %p156
      %p158 = scmp.ne.s32.totalorder %s146, %s147
      %p159 = scmp.eq.s32.totalorder %s32, 1
      %p160 = por %p158, %p159
      %p162 = scmp.ne.s32.totalorder %s147, %s161
      %p163 = scmp.eq.s32.totalorder %s32, 0
      %p164 = por %p162, %p163
      %s166 = sadd.s32 %s165, 1
      %p169 = scmp.eq.s32.totalorder %s26, 1
      %p170 = scmp.ne.s32.totalorder %s165, %s167
      %p171 = scmp.eq.s32.totalorder %s26, 0
      %p172 = por %p170, %p171
      %p173 = scmp.ne.s32.totalorder %s165, %s167
      %p174 = scmp.eq.s32.totalorder %s31, 1
      %p175 = por %p173, %p174
      %p176 = scmp.ne.s32.totalorder %s167, %s168
      %p177 = scmp.eq.s32.totalorder %s31, 0
      %p178 = por %p176, %p177
      %p179 = scmp.ne.s32.totalorder %s167, %s168
      %p180 = scmp.eq.s32.totalorder %s32, 1
      %p181 = por %p179, %p180
      %p183 = scmp.ne.s32.totalorder %s168, %s182
      %p184 = scmp.eq.s32.totalorder %s32, 0
      %p185 = por %p183, %p184
      %s187 = sadd.s32 %s186, 1
      %p190 = scmp.eq.s32.totalorder %s26, 1
      %p191 = scmp.ne.s32.totalorder %s186, %s188
      %p192 = scmp.eq.s32.totalorder %s26, 0
      %p193 = por %p191, %p192
      %p194 = scmp.ne.s32.totalorder %s186, %s188
      %p195 = scmp.eq.s32.totalorder %s31, 1
      %p196 = por %p194, %p195
      %p197 = scmp.ne.s32.totalorder %s188, %s189
      %p198 = scmp.eq.s32.totalorder %s31, 0
      %p199 = por %p197, %p198
      %p200 = scmp.ne.s32.totalorder %s188, %s189
      %p201 = scmp.eq.s32.totalorder %s32, 1
      %p202 = por %p200, %p201
      %p204 = scmp.ne.s32.totalorder %s189, %s203
      %p205 = scmp.eq.s32.totalorder %s32, 0
      %p206 = por %p204, %p205
      %s208 = sadd.s32 %s207, 1
      %p211 = scmp.eq.s32.totalorder %s26, 1
      %p212 = scmp.ne.s32.totalorder %s207, %s209
      %p213 = scmp.eq.s32.totalorder %s26, 0
      %p214 = por %p212, %p213
      %p215 = scmp.ne.s32.totalorder %s207, %s209
      %p216 = scmp.eq.s32.totalorder %s31, 1
      %p217 = por %p215, %p216
      %p218 = scmp.ne.s32.totalorder %s209, %s210
      %p219 = scmp.eq.s32.totalorder %s31, 0
      %p220 = por %p218, %p219
      %p221 = scmp.ne.s32.totalorder %s209, %s210
      %p222 = scmp.eq.s32.totalorder %s32, 1
      %p223 = por %p221, %p222
      %p225 = scmp.ne.s32.totalorder %s210, %s224
      %p226 = scmp.eq.s32.totalorder %s32, 0
      %p227 = por %p225, %p226
      %s229 = sadd.s32 %s228, 1
      %p232 = scmp.eq.s32.totalorder %s26, 1
      %p233 = scmp.ne.s32.totalorder %s228, %s230
      %p234 = scmp.eq.s32.totalorder %s26, 0
      %p235 = por %p233, %p234
      %p236 = scmp.ne.s32.totalorder %s228, %s230
      %p237 = scmp.eq.s32.totalorder %s31, 1
      %p238 = por %p236, %p237
      %p239 = scmp.ne.s32.totalorder %s230, %s231
      %p240 = scmp.eq.s32.totalorder %s31, 0
      %p241 = por %p239, %p240
      %p242 = scmp.ne.s32.totalorder %s230, %s231
      %p243 = scmp.eq.s32.totalorder %s32, 1
      %p244 = por %p242, %p243
      %p246 = scmp.ne.s32.totalorder %s231, %s245
      %p247 = scmp.eq.s32.totalorder %s32, 0
      %p248 = por %p246, %p247
      %s250 = sadd.s32 %s249, 1
      %p253 = scmp.eq.s32.totalorder %s26, 1
      %p254 = scmp.ne.s32.totalorder %s249, %s251
      %p255 = scmp.eq.s32.totalorder %s26, 0
      %p256 = por %p254, %p255
      %p257 = scmp.ne.s32.totalorder %s249, %s251
      %p258 = scmp.eq.s32.totalorder %s31, 1
      %p259 = por %p257, %p258
      %p260 = scmp.ne.s32.totalorder %s251, %s252
      %p261 = scmp.eq.s32.totalorder %s31, 0
      %p262 = por %p260, %p261
      %p263 = scmp.ne.s32.totalorder %s251, %s252
      %p264 = scmp.eq.s32.totalorder %s32, 1
      %p265 = por %p263, %p264
      %p267 = scmp.ne.s32.totalorder %s252, %s266
      %p268 = scmp.eq.s32.totalorder %s32, 0
      %p269 = por %p267, %p268
      %s271 = sadd.s32 %s270, 1
      %p274 = scmp.eq.s32.totalorder %s26, 1
      %p275 = scmp.ne.s32.totalorder %s270, %s272
      %p276 = scmp.eq.s32.totalorder %s26, 0
      %p277 = por %p275, %p276
      %p278 = scmp.ne.s32.totalorder %s270, %s272
      %p279 = scmp.eq.s32.totalorder %s31, 1
      %p280 = por %p278, %p279
      %p281 = scmp.ne.s32.totalorder %s272, %s273
      %p282 = scmp.eq.s32.totalorder %s31, 0
      %p283 = por %p281, %p282
      %p284 = scmp.ne.s32.totalorder %s272, %s273
      %p285 = scmp.eq.s32.totalorder %s32, 1
      %p286 = por %p284, %p285
      %p288 = scmp.ne.s32.totalorder %s273, %s287
      %p289 = scmp.eq.s32.totalorder %s32, 0
      %p290 = por %p288, %p289
      %s292 = sadd.s32 %s291, 1
      %p295 = scmp.eq.s32.totalorder %s26, 1
      %p296 = scmp.ne.s32.totalorder %s291, %s293
      %p297 = scmp.eq.s32.totalorder %s26, 0
      %p298 = por %p296, %p297
      %p299 = scmp.ne.s32.totalorder %s291, %s293
      %p300 = scmp.eq.s32.totalorder %s31, 1
      %p301 = por %p299, %p300
      %p302 = scmp.ne.s32.totalorder %s293, %s294
      %p303 = scmp.eq.s32.totalorder %s31, 0
      %p304 = por %p302, %p303
      %p305 = scmp.ne.s32.totalorder %s293, %s294
      %p306 = scmp.eq.s32.totalorder %s32, 1
      %p307 = por %p305, %p306
      %p309 = scmp.ne.s32.totalorder %s294, %s308
      %p310 = scmp.eq.s32.totalorder %s32, 0
      %p311 = por %p309, %p310
      %s313 = sadd.s32 %s312, 1
      %p316 = scmp.eq.s32.totalorder %s26, 1
      %p317 = scmp.ne.s32.totalorder %s312, %s314
      %p318 = scmp.eq.s32.totalorder %s26, 0
      %p319 = por %p317, %p318
      %p320 = scmp.ne.s32.totalorder %s312, %s314
      %p321 = scmp.eq.s32.totalorder %s31, 1
      %p322 = por %p320, %p321
      %p323 = scmp.ne.s32.totalorder %s314, %s315
      %p324 = scmp.eq.s32.totalorder %s31, 0
      %p325 = por %p323, %p324
      %p326 = scmp.ne.s32.totalorder %s314, %s315
      %p327 = scmp.eq.s32.totalorder %s32, 1
      %p328 = por %p326, %p327
      %p330 = scmp.ne.s32.totalorder %s315, %s329
      %p331 = scmp.eq.s32.totalorder %s32, 0
      %p332 = por %p330, %p331
      %s334 = sadd.s32 %s333, 1
      %p337 = scmp.eq.s32.totalorder %s26, 1
      %p338 = scmp.ne.s32.totalorder %s333, %s335
      %p339 = scmp.eq.s32.totalorder %s26, 0
      %p340 = por %p338, %p339
      %p341 = scmp.ne.s32.totalorder %s333, %s335
      %p342 = scmp.eq.s32.totalorder %s31, 1
      %p343 = por %p341, %p342
      %p344 = scmp.ne.s32.totalorder %s335, %s336
      %p345 = scmp.eq.s32.totalorder %s31, 0
      %p346 = por %p344, %p345
      %p347 = scmp.ne.s32.totalorder %s335, %s336
      %p348 = scmp.eq.s32.totalorder %s32, 1
      %p349 = por %p347, %p348
      %p351 = scmp.ne.s32.totalorder %s336, %s350
      %p352 = scmp.eq.s32.totalorder %s32, 0
      %p353 = por %p351, %p352
      %s355 = sadd.s32 %s354, 1
      %p358 = scmp.eq.s32.totalorder %s26, 1
      %p359 = scmp.ne.s32.totalorder %s354, %s356
      %p360 = scmp.eq.s32.totalorder %s26, 0
      %p361 = por %p359, %p360
      %p362 = scmp.ne.s32.totalorder %s354, %s356
      %p363 = scmp.eq.s32.totalorder %s31, 1
      %p364 = por %p362, %p363
      %p365 = scmp.ne.s32.totalorder %s356, %s357
      %p366 = scmp.eq.s32.totalorder %s31, 0
      %p367 = por %p365, %p366
      %p368 = scmp.ne.s32.totalorder %s356, %s357
      %p369 = scmp.eq.s32.totalorder %s32, 1
      %p370 = por %p368, %p369
      %p372 = scmp.ne.s32.totalorder %s357, %s371
      %p373 = scmp.eq.s32.totalorder %s32, 0
      %p374 = por %p372, %p373
      %s376 = sadd.s32 %s375, 1
      %p379 = scmp.eq.s32.totalorder %s26, 1
      %p380 = scmp.ne.s32.totalorder %s375, %s377
      %p381 = scmp.eq.s32.totalorder %s26, 0
      %p382 = por %p380, %p381
      %p383 = scmp.ne.s32.totalorder %s375, %s377
      %p384 = scmp.eq.s32.totalorder %s31, 1
      %p385 = por %p383, %p384
      %p386 = scmp.ne.s32.totalorder %s377, %s378
      %p387 = scmp.eq.s32.totalorder %s31, 0
      %p388 = por %p386, %p387
      %p389 = scmp.ne.s32.totalorder %s377, %s378
      %p390 = scmp.eq.s32.totalorder %s32, 1
      %p391 = por %p389, %p390
      %p393 = scmp.ne.s32.totalorder %s378, %s392
      %p394 = scmp.eq.s32.totalorder %s32, 0
      %p395 = por %p393, %p394
      %s396 = ssub.s32 %s26, %s33
      %p397 = scmp.eq.s32.totalorder %s396, 0
      %s399 = sadd.s32 %s398, 1
      %s400 = scalar_select %p397, %s398, %s399
      %p403 = pneg %p397
      %p404 = scmp.eq.s32.totalorder %s26, 1
      %p405 = por %p403, %p404
      %p406 = scmp.ne.s32.totalorder %s398, %s401
      %p407 = scmp.eq.s32.totalorder %s26, 0
      %p408 = por %p406, %p407
      %p409 = scmp.ne.s32.totalorder %s398, %s401
      %p410 = scmp.eq.s32.totalorder %s31, 1
      %p411 = por %p409, %p410
      %p412 = scmp.ne.s32.totalorder %s401, %s402
      %p413 = scmp.eq.s32.totalorder %s31, 0
      %p414 = por %p412, %p413
      %p415 = scmp.ne.s32.totalorder %s401, %s402
      %p416 = scmp.eq.s32.totalorder %s32, 1
      %p417 = por %p415, %p416
      %p419 = scmp.ne.s32.totalorder %s402, %s418
      %p420 = scmp.eq.s32.totalorder %s32, 0
      %p421 = por %p419, %p420
      %p422 = scmp.le.s32.totalorder 1, %s26
      %p423 = scmp.lt.s32.totalorder %s26, 3
      %p424 = pnand %p422, %p423
      %p425 = pneg %p424
      // Predicated region
      $region9: #{gpt_forward.1} parent=5 // pred_check
        _
      $region10: #{gpt_forward.1} parent=5 // pred_check_branch
        %427 = sbr.rel (%p424) target = $region12
      $region11: #{gpt_forward.1} parent=5 // pred_region
        %s428 = ssub.s32 %s26, 1
        // Predicated region
        $region13: #{gpt_forward.1} parent=11 // pred_check
          %p429 = pneg %p73
        $region14: #{gpt_forward.1} parent=11 // pred_check_branch
          %431 = sbr.rel (%p429) target = $region16
        $region15: #{gpt_forward.1} parent=11 // pred_region
          _
        $region16: #{gpt_forward.1} parent=11 // pred_fallthru
          _
        // Predicated region
        $region17: #{gpt_forward.1} parent=11 // pred_check
          %p432 = pneg %p94
        $region18: #{gpt_forward.1} parent=11 // pred_check_branch
          %434 = sbr.rel (%p432) target = $region20
        $region19: #{gpt_forward.1} parent=11 // pred_region
          _
        $region20: #{gpt_forward.1} parent=11 // pred_fallthru
          _
        // Predicated region
        $region21: #{gpt_forward.1} parent=11 // pred_check
          %p435 = pneg %p115
        $region22: #{gpt_forward.1} parent=11 // pred_check_branch
          %437 = sbr.rel (%p435) target = $region24
        $region23: #{gpt_forward.1} parent=11 // pred_region
          _
        $region24: #{gpt_forward.1} parent=11 // pred_fallthru
          _
        // Predicated region
        $region25: #{gpt_forward.1} parent=11 // pred_check
          %p438 = pneg %p136
        $region26: #{gpt_forward.1} parent=11 // pred_check_branch
          %440 = sbr.rel (%p438) target = $region28
        $region27: #{gpt_forward.1} parent=11 // pred_region
          _
        $region28: #{gpt_forward.1} parent=11 // pred_fallthru
          _
        // Predicated region
        $region29: #{gpt_forward.1} parent=11 // pred_check
          %p441 = pneg %p157
        $region30: #{gpt_forward.1} parent=11 // pred_check_branch
          %443 = sbr.rel (%p441) target = $region32
        $region31: #{gpt_forward.1} parent=11 // pred_region
          _
        $region32: #{gpt_forward.1} parent=11 // pred_fallthru
          _
        // Predicated region
        $region33: #{gpt_forward.1} parent=11 // pred_check
          %p444 = pneg %p178
        $region34: #{gpt_forward.1} parent=11 // pred_check_branch
          %446 = sbr.rel (%p444) target = $region36
        $region35: #{gpt_forward.1} parent=11 // pred_region
          _
        $region36: #{gpt_forward.1} parent=11 // pred_fallthru
          _
        // Predicated region
        $region37: #{gpt_forward.1} parent=11 // pred_check
          %p447 = pneg %p199
        $region38: #{gpt_forward.1} parent=11 // pred_check_branch
          %449 = sbr.rel (%p447) target = $region40
        $region39: #{gpt_forward.1} parent=11 // pred_region
          _
        $region40: #{gpt_forward.1} parent=11 // pred_fallthru
          _
        // Predicated region
        $region41: #{gpt_forward.1} parent=11 // pred_check
          %p450 = pneg %p220
        $region42: #{gpt_forward.1} parent=11 // pred_check_branch
          %452 = sbr.rel (%p450) target = $region44
        $region43: #{gpt_forward.1} parent=11 // pred_region
          _
        $region44: #{gpt_forward.1} parent=11 // pred_fallthru
          _
        // Predicated region
        $region45: #{gpt_forward.1} parent=11 // pred_check
          %p453 = pneg %p241
        $region46: #{gpt_forward.1} parent=11 // pred_check_branch
          %455 = sbr.rel (%p453) target = $region48
        $region47: #{gpt_forward.1} parent=11 // pred_region
          _
        $region48: #{gpt_forward.1} parent=11 // pred_fallthru
          _
        // Predicated region
        $region49: #{gpt_forward.1} parent=11 // pred_check
          %p456 = pneg %p262
        $region50: #{gpt_forward.1} parent=11 // pred_check_branch
          %458 = sbr.rel (%p456) target = $region52
        $region51: #{gpt_forward.1} parent=11 // pred_region
          _
        $region52: #{gpt_forward.1} parent=11 // pred_fallthru
          _
        // Predicated region
        $region53: #{gpt_forward.1} parent=11 // pred_check
          %p459 = pneg %p283
        $region54: #{gpt_forward.1} parent=11 // pred_check_branch
          %461 = sbr.rel (%p459) target = $region56
        $region55: #{gpt_forward.1} parent=11 // pred_region
          _
        $region56: #{gpt_forward.1} parent=11 // pred_fallthru
          _
        // Predicated region
        $region57: #{gpt_forward.1} parent=11 // pred_check
          %p462 = pneg %p304
        $region58: #{gpt_forward.1} parent=11 // pred_check_branch
          %464 = sbr.rel (%p462) target = $region60
        $region59: #{gpt_forward.1} parent=11 // pred_region
          _
        $region60: #{gpt_forward.1} parent=11 // pred_fallthru
          _
        // Predicated region
        $region61: #{gpt_forward.1} parent=11 // pred_check
          %p465 = pneg %p325
        $region62: #{gpt_forward.1} parent=11 // pred_check_branch
          %467 = sbr.rel (%p465) target = $region64
        $region63: #{gpt_forward.1} parent=11 // pred_region
          _
        $region64: #{gpt_forward.1} parent=11 // pred_fallthru
          _
        // Predicated region
        $region65: #{gpt_forward.1} parent=11 // pred_check
          %p468 = pneg %p346
        $region66: #{gpt_forward.1} parent=11 // pred_check_branch
          %470 = sbr.rel (%p468) target = $region68
        $region67: #{gpt_forward.1} parent=11 // pred_region
          _
        $region68: #{gpt_forward.1} parent=11 // pred_fallthru
          _
        // Predicated region
        $region69: #{gpt_forward.1} parent=11 // pred_check
          %p471 = pneg %p367
        $region70: #{gpt_forward.1} parent=11 // pred_check_branch
          %473 = sbr.rel (%p471) target = $region72
        $region71: #{gpt_forward.1} parent=11 // pred_region
          _
        $region72: #{gpt_forward.1} parent=11 // pred_fallthru
          _
        // Predicated region
        $region73: #{gpt_forward.1} parent=11 // pred_check
          %p474 = pneg %p388
        $region74: #{gpt_forward.1} parent=11 // pred_check_branch
          %476 = sbr.rel (%p474) target = $region76
        $region75: #{gpt_forward.1} parent=11 // pred_region
          _
        $region76: #{gpt_forward.1} parent=11 // pred_fallthru
          _
      $region12: #{gpt_forward.1} parent=5 // pred_fallthru
        _
      %p477 = scmp.lt.s32.totalorder %s26, 2
      // Predicated region
      $region77: #{gpt_forward.1} parent=5 // pred_check
        %p478 = pneg %p477
      $region78: #{gpt_forward.1} parent=5 // pred_check_branch
        %480 = sbr.rel (%p478) target = $region80
      $region79: #{gpt_forward.1} parent=5 // pred_region
        // Predicated region
        $region81: #{gpt_forward.1} parent=79 // pred_check
          %p481 = pneg %p46
        $region82: #{gpt_forward.1} parent=79 // pred_check_branch
          %483 = sbr.rel (%p481) target = $region84
        $region83: #{gpt_forward.1} parent=79 // pred_region
          %p484 = scmp.lt.s32.totalorder %s26, 1
          %s485 = scalar_select %p484, %s26, 1
          %s486 = smul.addr %s485, 4
          %s487 = scalar_lea.vmem %s0, %s486
        $region84: #{gpt_forward.1} parent=79 // pred_fallthru
          _
      $region80: #{gpt_forward.1} parent=5 // pred_fallthru
        _
      %p488 = scmp.le.s32.totalorder 1, %s26
      %p489 = scmp.lt.s32.totalorder %s26, 3
      %p490 = pnand %p488, %p489
      %p491 = pneg %p490
      // Predicated region
      $region85: #{gpt_forward.1} parent=5 // pred_check
        _
      $region86: #{gpt_forward.1} parent=5 // pred_check_branch
        %493 = sbr.rel (%p490) target = $region88
      $region87: #{gpt_forward.1} parent=5 // pred_region
        %s494 = ssub.s32 %s26, 1
        %p495 = scmp.lt.s32.totalorder %s31, 1
        %s496 = scalar_select %p495, %s31, 1
        %s497 = smul.addr %s496, 4
        %s498 = scalar_lea.vmem %s0, %s497
        %p499 = pneg %p52
        %p500 = pneg %p49
        %p501 = pneg %p73
        %p502 = pneg %p70
        %p503 = pneg %p94
        %p504 = pneg %p91
        %p505 = pneg %p115
        %p506 = pneg %p112
        %p507 = pneg %p136
        %p508 = pneg %p133
        %p509 = pneg %p157
        %p510 = pneg %p154
        %p511 = pneg %p178
        %p512 = pneg %p175
        %p513 = pneg %p199
        %p514 = pneg %p196
        %p515 = pneg %p220
        %p516 = pneg %p217
        %p517 = pneg %p241
        %p518 = pneg %p238
        %p519 = pneg %p262
        %p520 = pneg %p259
        %p521 = pneg %p283
        %p522 = pneg %p280
        %p523 = pneg %p304
        %p524 = pneg %p301
        %p525 = pneg %p325
        %p526 = pneg %p322
        %p527 = pneg %p346
        %p528 = pneg %p343
        %p529 = pneg %p367
        %p530 = pneg %p364
        %p531 = pneg %p388
        %p532 = pneg %p385
        %p533 = pneg %p414
        %p534 = pneg %p411
        %s535 = sand.u32 %s401, 1
        %s536 = scalar_lea.sflag [#allocation3], %s535
        %s537 = sand.u32 %s401, 1
        %s538 = smul.addr %s537, 8
        %s539 = scalar_lea.vmem [#allocation2], %s538
        %p540 = scmp.lt.s32.totalorder %s31, 1
        %s541 = scalar_select %p540, %s31, 1
        %s542 = smul.addr %s541, 4
        %s543 = scalar_lea.vmem %s0, %s542
        %v545 = vld [vmem:[%s543] sm:$0xf]
        %v546 = vunpack.c.l.bf16 %v545
        %v547 = vld [vmem:[%s1] sm:$0xf]
        %v548 = vunpack.c.l.bf16 %v547
        %v549 = vadd.f32 %v546, %v548
        %v550 = vlaneseq
        %v551 = vshrl.u32 %v550, 7
        %v552 = vlaneseq
        %v553 = vand.u32 %v552, 127
        %vm554 = vcmp.ge.s32.totalorder %v551, %v553
        %v555 = vld [vmem:[%s2] sm:$0x1]
        %v556 = vld [vmem:[%s3] sm:$0x1]
        %vm557 = vcmask 392192
        %v558 = vsel %vm557, %v549, 0.0
        %559 = vadd.xlane.f32.xlu0 %v558
        %v560 = vpop.xlane.xlu0 %559
        %v561 = vrcp.pop 48.0
        %v562 = vmul.f32 %v560, %v561
        %v563 = vsub.f32 %v549, %v562
        %v564 = vmul.f32 %v563, %v563
        %v565 = vsel %vm557, %v564, 0.0
        %566 = vadd.xlane.f32.xlu0 %v565
        %v567 = vpop.xlane.xlu0 %566
        %v568 = vmul.f32 %v567, %v561
        %v569 = vadd.f32 %v568, 1e-05
        %v570 = vrsqrt.pop %v569
        %v571 = vmul.f32 %v563, %v570
        %v573 = vlaneseq
        %v574 = vshrl.u32 %v573, 7
        %v575 = vsub.s32 0, %v574
        %v576 = vrot.slane %v555, %v575
        %v578 = vmul.f32 %v571, %v576
        %v580 = vlaneseq
        %v581 = vshrl.u32 %v580, 7
        %v582 = vsub.s32 0, %v581
        %v583 = vrot.slane %v556, %v582
        %v585 = vadd.f32 %v578, %v583
        %v586 = vpack.c.bf16 %v585, %v585
        %v587 = vld [vmem:[%s4] sm:$0xff]
        %v588 = vld [vmem:[%s4 + $0x8] sm:$0xff]
        %v589 = vld [vmem:[%s4 + $0x10] sm:$0xff]
        %v590 = vld [vmem:[%s4 + $0x18] sm:$0xff]
        %v591 = vld [vmem:[%s4 + $0x20] sm:$0xff]
        %v592 = vld [vmem:[%s4 + $0x28] sm:$0xff]
        %v599 = vunpack.c.l.b16 %v587
        %v600 = vunpack.c.h.b16 %v587
        %v601 = vunpack.c.l.b16 %v588
        %v602 = vunpack.c.h.b16 %v588
        %v603 = vunpack.c.l.b16 %v589
        %v604 = vunpack.c.h.b16 %v589
        %v605 = vunpack.c.l.b16 %v590
        %v606 = vunpack.c.h.b16 %v590
        %v607 = vunpack.c.l.b16 %v591
        %v608 = vunpack.c.h.b16 %v591
        %v609 = vunpack.c.l.b16 %v592
        %v610 = vunpack.c.h.b16 %v592
        %v611 = vpack.c.b16 %v601, %v599
        %v612 = vpack.c.b16 %v602, %v600
        %v613 = vpack.c.b16 %v605, %v603
        %v614 = vpack.c.b16 %v606, %v604
        %v615 = vpack.c.b16 %v609, %v607
        %v616 = vpack.c.b16 %v610, %v608
        %v624 = vsel %vm557, %v586, 0
        %626 = vmatprep.subr.bf16.mxu0 %v612
        %627 = vmatpush1.bf16.msra.mxu0 %v611
        %628 = vmatprep.subr.bf16.mxu0 %v614
        %629 = vmatpush1.bf16.msra.mxu0 %v613
        %630 = vmatprep.subr.bf16.mxu0 %v616
        %631 = vmatpush1.bf16.msra.mxu0 %v615
        %632 = vmatprep.subr.bf16.mxu0 0
        %633 = vmatpush1.bf16.msra.mxu0 0
        %634 = vmatprep.subr.bf16.mxu0 0
        %635 = vmatpush1.bf16.msra.mxu0 0
        %636 = vmatprep.subr.bf16.mxu0 0
        %637 = vmatpush1.bf16.msra.mxu0 0
        %638 = vmatprep.subr.bf16.mxu0 0
        %639 = vmatpush1.bf16.msra.mxu0 0
        %640 = vmatprep.subr.bf16.mxu0 0
        %641 = vmatpush1.bf16.msra.mxu0 0
        %642 = vmatprep.subr.bf16.mxu0 0
        %643 = vmatpush1.bf16.msra.mxu0 0
        %644 = vmatprep.subr.bf16.mxu0 0
        %645 = vmatpush1.bf16.msra.mxu0 0
        %646 = vmatprep.subr.bf16.mxu0 0
        %647 = vmatpush1.bf16.msra.mxu0 0
        %648 = vmatprep.subr.bf16.mxu0 0
        %649 = vmatpush1.bf16.msra.mxu0 0
        %650 = vmatprep.subr.bf16.mxu0 0
        %651 = vmatpush1.bf16.msra.mxu0 0
        %652 = vmatprep.subr.bf16.mxu0 0
        %653 = vmatpush1.bf16.msra.mxu0 0
        %654 = vmatprep.subr.bf16.mxu0 0
        %655 = vmatpush1.bf16.msra.mxu0 0
        %656 = vmatprep.subr.bf16.mxu0 0
        %657 = vmatpush1.bf16.msra.mxu0 0
        %658 = vmatprep.mubr.bf16.mxu0 0
        %659 = vmatmul.mubr.bf16.gmra.mrb[0].mxu0 %v624
        %v660 = vpop.f32.mrb[0].mxu0
        %v661 = vadd.f32 0.0, %v660
        %v662 = vpop.f32.mrb[0].mxu0
        %v663 = vadd.f32 0.0, %v662
        %v664 = vpop.f32.mrb[0].mxu0
        %v665 = vpop.f32.mrb[0].mxu0
        %666 = vdwg.mxu0
        %668 = vrot.lane.b32.xlu0 %v661, 120
        %v669 = vpop.permute.xlu0 %668
        %671 = vrot.lane.b32.xlu0 %v661, 112
        %v672 = vpop.permute.xlu0 %671
        %674 = vrot.lane.b32.xlu0 %v661, 104
        %v675 = vpop.permute.xlu0 %674
        %677 = vrot.lane.b32.xlu0 %v661, 96
        %v678 = vpop.permute.xlu0 %677
        %680 = vrot.lane.b32.xlu0 %v661, 88
        %v681 = vpop.permute.xlu0 %680
        %v683 = vcombine.low %v661, %v672
        %v684 = vcombine.high %v661, %v672
        %v686 = vunpack.c.l.s4 1983009808
        %v687 = vunpack.c.0.s8 %v686
        %v688 = vlaneseq
        %v689 = vshrl.u32 %v688, 7
        %v690 = vsub.s32 %v687, %v689
        %v691 = vrot.slane %v683, %v690
        %v693 = vunpack.c.l.s4 1983009808
        %v694 = vunpack.c.0.s8 %v693
        %v695 = vlaneseq
        %v696 = vshrl.u32 %v695, 7
        %v697 = vsub.s32 %v694, %v696
        %v698 = vrot.slane %v684, %v697
        %v699 = vcombine.low %v669, %v675
        %v700 = vcombine.high %v669, %v675
        %v702 = vunpack.c.l.s4 1983009808
        %v703 = vunpack.c.0.s8 %v702
        %v704 = vlaneseq
        %v705 = vshrl.u32 %v704, 7
        %v706 = vsub.s32 %v703, %v705
        %v707 = vrot.slane %v699, %v706
        %v709 = vunpack.c.l.s4 1983009808
        %v710 = vunpack.c.0.s8 %v709
        %v711 = vlaneseq
        %v712 = vshrl.u32 %v711, 7
        %v713 = vsub.s32 %v710, %v712
        %v714 = vrot.slane %v700, %v713
        %v715 = vcombine.high %v678, 0.0
        %v717 = vunpack.c.l.s4 1983009808
        %v718 = vunpack.c.0.s8 %v717
        %v719 = vlaneseq
        %v720 = vshrl.u32 %v719, 7
        %v721 = vsub.s32 %v718, %v720
        %v722 = vrot.slane %v678, %v721
        %v724 = vunpack.c.l.s4 1983009808
        %v725 = vunpack.c.0.s8 %v724
        %v726 = vlaneseq
        %v727 = vshrl.u32 %v726, 7
        %v728 = vsub.s32 %v725, %v727
        %v729 = vrot.slane %v715, %v728
        %v730 = vcombine.high %v681, 0.0
        %v732 = vunpack.c.l.s4 1983009808
        %v733 = vunpack.c.0.s8 %v732
        %v734 = vlaneseq
        %v735 = vshrl.u32 %v734, 7
        %v736 = vsub.s32 %v733, %v735
        %v737 = vrot.slane %v681, %v736
        %v739 = vunpack.c.l.s4 1983009808
        %v740 = vunpack.c.0.s8 %v739
        %v741 = vlaneseq
        %v742 = vshrl.u32 %v741, 7
        %v743 = vsub.s32 %v740, %v742
        %v744 = vrot.slane %v730, %v743
        %v745 = vcombine.low %v691, %v707
        %v746 = vcombine.high %v691, %v707
        %v748 = vunpack.c.l.s4 1934713408
        %v749 = vunpack.c.0.s8 %v748
        %v750 = vlaneseq
        %v751 = vshrl.u32 %v750, 7
        %v752 = vsub.s32 %v749, %v751
        %v753 = vrot.slane %v745, %v752
        %v755 = vunpack.c.l.s4 1934713408
        %v756 = vunpack.c.0.s8 %v755
        %v757 = vlaneseq
        %v758 = vshrl.u32 %v757, 7
        %v759 = vsub.s32 %v756, %v758
        %v760 = vrot.slane %v746, %v759
        %v761 = vcombine.low %v698, %v714
        %v762 = vcombine.high %v698, %v714
        %v764 = vunpack.c.l.s4 1934713408
        %v765 = vunpack.c.0.s8 %v764
        %v766 = vlaneseq
        %v767 = vshrl.u32 %v766, 7
        %v768 = vsub.s32 %v765, %v767
        %v769 = vrot.slane %v761, %v768
        %v771 = vunpack.c.l.s4 1934713408
        %v772 = vunpack.c.0.s8 %v771
        %v773 = vlaneseq
        %v774 = vshrl.u32 %v773, 7
        %v775 = vsub.s32 %v772, %v774
        %v776 = vrot.slane %v762, %v775
        %v777 = vcombine.low %v722, %v737
        %v778 = vcombine.high %v722, %v737
        %v780 = vunpack.c.l.s4 1934713408
        %v781 = vunpack.c.0.s8 %v780
        %v782 = vlaneseq
        %v783 = vshrl.u32 %v782, 7
        %v784 = vsub.s32 %v781, %v783
        %v785 = vrot.slane %v777, %v784
        %v787 = vunpack.c.l.s4 1934713408
        %v788 = vunpack.c.0.s8 %v787
        %v789 = vlaneseq
        %v790 = vshrl.u32 %v789, 7
        %v791 = vsub.s32 %v788, %v790
        %v792 = vrot.slane %v778, %v791
        %v793 = vcombine.low %v729, %v744
        %v794 = vcombine.high %v729, %v744
        %v796 = vunpack.c.l.s4 1934713408
        %v797 = vunpack.c.0.s8 %v796
        %v798 = vlaneseq
        %v799 = vshrl.u32 %v798, 7
        %v800 = vsub.s32 %v797, %v799
        %v801 = vrot.slane %v793, %v800
        %v803 = vunpack.c.l.s4 1934713408
        %v804 = vunpack.c.0.s8 %v803
        %v805 = vlaneseq
        %v806 = vshrl.u32 %v805, 7
        %v807 = vsub.s32 %v804, %v806
        %v808 = vrot.slane %v794, %v807
        %v809 = vcombine.low %v753, %v785
        %v810 = vcombine.high %v753, %v785
        %v811 = vcombine.low %v760, %v792
        %v812 = vcombine.high %v760, %v792
        %v813 = vcombine.low %v769, %v801
        %v814 = vcombine.high %v769, %v801
        %v815 = vcombine.low %v776, %v808
        %v816 = vcombine.high %v776, %v808
        %v817 = vcombine.low %v809, %v811
        %v818 = vcombine.high %v809, %v811
        %v820 = vunpack.c.l.s4 1983009808
        %v821 = vunpack.c.0.s8 %v820
        %v822 = vlaneseq
        %v823 = vshrl.u32 %v822, 7
        %v824 = vsub.s32 %v821, %v823
        %v825 = vrot.slane %v817, %v824
        %v827 = vunpack.c.l.s4 1983009808
        %v828 = vunpack.c.0.s8 %v827
        %v829 = vlaneseq
        %v830 = vshrl.u32 %v829, 7
        %v831 = vsub.s32 %v828, %v830
        %v832 = vrot.slane %v818, %v831
        %v833 = vcombine.low %v810, %v812
        %v834 = vcombine.high %v810, %v812
        %v836 = vunpack.c.l.s4 1983009808
        %v837 = vunpack.c.0.s8 %v836
        %v838 = vlaneseq
        %v839 = vshrl.u32 %v838, 7
        %v840 = vsub.s32 %v837, %v839
        %v841 = vrot.slane %v833, %v840
        %v843 = vunpack.c.l.s4 1983009808
        %v844 = vunpack.c.0.s8 %v843
        %v845 = vlaneseq
        %v846 = vshrl.u32 %v845, 7
        %v847 = vsub.s32 %v844, %v846
        %v848 = vrot.slane %v834, %v847
        %v849 = vcombine.low %v813, %v815
        %v850 = vcombine.high %v813, %v815
        %v852 = vunpack.c.l.s4 1983009808
        %v853 = vunpack.c.0.s8 %v852
        %v854 = vlaneseq
        %v855 = vshrl.u32 %v854, 7
        %v856 = vsub.s32 %v853, %v855
        %v857 = vrot.slane %v849, %v856
        %v859 = vunpack.c.l.s4 1983009808
        %v860 = vunpack.c.0.s8 %v859
        %v861 = vlaneseq
        %v862 = vshrl.u32 %v861, 7
        %v863 = vsub.s32 %v860, %v862
        %v864 = vrot.slane %v850, %v863
        %v865 = vcombine.low %v814, %v816
        %v866 = vcombine.high %v814, %v816
        %v868 = vunpack.c.l.s4 1983009808
        %v869 = vunpack.c.0.s8 %v868
        %v870 = vlaneseq
        %v871 = vshrl.u32 %v870, 7
        %v872 = vsub.s32 %v869, %v871
        %v873 = vrot.slane %v865, %v872
        %v875 = vunpack.c.l.s4 1983009808
        %v876 = vunpack.c.0.s8 %v875
        %v877 = vlaneseq
        %v878 = vshrl.u32 %v877, 7
        %v879 = vsub.s32 %v876, %v878
        %v880 = vrot.slane %v866, %v879
        %v881 = vcombine.low %v825, %v841
        %v882 = vcombine.high %v825, %v841
        %v884 = vunpack.c.l.s4 1934713408
        %v885 = vunpack.c.0.s8 %v884
        %v886 = vlaneseq
        %v887 = vshrl.u32 %v886, 7
        %v888 = vsub.s32 %v885, %v887
        %v889 = vrot.slane %v881, %v888
        %v891 = vunpack.c.l.s4 1934713408
        %v892 = vunpack.c.0.s8 %v891
        %v893 = vlaneseq
        %v894 = vshrl.u32 %v893, 7
        %v895 = vsub.s32 %v892, %v894
        %v896 = vrot.slane %v882, %v895
        %v897 = vcombine.low %v832, %v848
        %v899 = vunpack.c.l.s4 1934713408
        %v900 = vunpack.c.0.s8 %v899
        %v901 = vlaneseq
        %v902 = vshrl.u32 %v901, 7
        %v903 = vsub.s32 %v900, %v902
        %v904 = vrot.slane %v897, %v903
        %v905 = vcombine.low %v857, %v873
        %v906 = vcombine.high %v857, %v873
        %v908 = vunpack.c.l.s4 1934713408
        %v909 = vunpack.c.0.s8 %v908
        %v910 = vlaneseq
        %v911 = vshrl.u32 %v910, 7
        %v912 = vsub.s32 %v909, %v911
        %v913 = vrot.slane %v905, %v912
        %v915 = vunpack.c.l.s4 1934713408
        %v916 = vunpack.c.0.s8 %v915
        %v917 = vlaneseq
        %v918 = vshrl.u32 %v917, 7
        %v919 = vsub.s32 %v916, %v918
        %v920 = vrot.slane %v906, %v919
        %v921 = vcombine.low %v864, %v880
        %v923 = vunpack.c.l.s4 1934713408
        %v924 = vunpack.c.0.s8 %v923
        %v925 = vlaneseq
        %v926 = vshrl.u32 %v925, 7
        %v927 = vsub.s32 %v924, %v926
        %v928 = vrot.slane %v921, %v927
        %v929 = vcombine.low %v889, %v913
        %v930 = vcombine.high %v889, %v913
        %v931 = vcombine.low %v896, %v920
        %v932 = vcombine.high %v896, %v920
        %v933 = vcombine.low %v904, %v928
        %v934 = vcombine.high %v904, %v928
        %935 = vrot.lane.b32.xlu0 %v661, 80
        %v936 = vpop.permute.xlu0 %935
        %937 = vrot.lane.b32.xlu0 %v669, 80
        %v938 = vpop.permute.xlu0 %937
        %939 = vrot.lane.b32.xlu0 %v672, 80
        %v940 = vpop.permute.xlu0 %939
        %941 = vrot.lane.b32.xlu0 %v675, 80
        %v942 = vpop.permute.xlu0 %941
        %943 = vrot.lane.b32.xlu0 %v678, 80
        %v944 = vpop.permute.xlu0 %943
        %945 = vrot.lane.b32.xlu0 %v681, 80
        %v946 = vpop.permute.xlu0 %945
        %v953 = vcombine.low %v936, %v940
        %v954 = vcombine.high %v936, %v940
        %v956 = vunpack.c.l.s4 1983009808
        %v957 = vunpack.c.0.s8 %v956
        %v958 = vlaneseq
        %v959 = vshrl.u32 %v958, 7
        %v960 = vsub.s32 %v957, %v959
        %v961 = vrot.slane %v953, %v960
        %v963 = vunpack.c.l.s4 1983009808
        %v964 = vunpack.c.0.s8 %v963
        %v965 = vlaneseq
        %v966 = vshrl.u32 %v965, 7
        %v967 = vsub.s32 %v964, %v966
        %v968 = vrot.slane %v954, %v967
        %v969 = vcombine.low %v938, %v942
        %v970 = vcombine.high %v938, %v942
        %v972 = vunpack.c.l.s4 1983009808
        %v973 = vunpack.c.0.s8 %v972
        %v974 = vlaneseq
        %v975 = vshrl.u32 %v974, 7
        %v976 = vsub.s32 %v973, %v975
        %v977 = vrot.slane %v969, %v976
        %v979 = vunpack.c.l.s4 1983009808
        %v980 = vunpack.c.0.s8 %v979
        %v981 = vlaneseq
        %v982 = vshrl.u32 %v981, 7
        %v983 = vsub.s32 %v980, %v982
        %v984 = vrot.slane %v970, %v983
        %v985 = vcombine.high %v944, 0.0
        %v987 = vunpack.c.l.s4 1983009808
        %v988 = vunpack.c.0.s8 %v987
        %v989 = vlaneseq
        %v990 = vshrl.u32 %v989, 7
        %v991 = vsub.s32 %v988, %v990
        %v992 = vrot.slane %v944, %v991
        %v994 = vunpack.c.l.s4 1983009808
        %v995 = vunpack.c.0.s8 %v994
        %v996 = vlaneseq
        %v997 = vshrl.u32 %v996, 7
        %v998 = vsub.s32 %v995, %v997
        %v999 = vrot.slane %v985, %v998
        %v1000 = vcombine.high %v946, 0.0
        %v1002 = vunpack.c.l.s4 1983009808
        %v1003 = vunpack.c.0.s8 %v1002
        %v1004 = vlaneseq
        %v1005 = vshrl.u32 %v1004, 7
        %v1006 = vsub.s32 %v1003, %v1005
        %v1007 = vrot.slane %v946, %v1006
        %v1009 = vunpack.c.l.s4 1983009808
        %v1010 = vunpack.c.0.s8 %v1009
        %v1011 = vlaneseq
        %v1012 = vshrl.u32 %v1011, 7
        %v1013 = vsub.s32 %v1010, %v1012
        %v1014 = vrot.slane %v1000, %v1013
        %v1015 = vcombine.low %v961, %v977
        %v1016 = vcombine.high %v961, %v977
        %v1018 = vunpack.c.l.s4 1934713408
        %v1019 = vunpack.c.0.s8 %v1018
        %v1020 = vlaneseq
        %v1021 = vshrl.u32 %v1020, 7
        %v1022 = vsub.s32 %v1019, %v1021
        %v1023 = vrot.slane %v1015, %v1022
        %v1025 = vunpack.c.l.s4 1934713408
        %v1026 = vunpack.c.0.s8 %v1025
        %v1027 = vlaneseq
        %v1028 = vshrl.u32 %v1027, 7
        %v1029 = vsub.s32 %v1026, %v1028
        %v1030 = vrot.slane %v1016, %v1029
        %v1031 = vcombine.low %v968, %v984
        %v1032 = vcombine.high %v968, %v984
        %v1034 = vunpack.c.l.s4 1934713408
        %v1035 = vunpack.c.0.s8 %v1034
        %v1036 = vlaneseq
        %v1037 = vshrl.u32 %v1036, 7
        %v1038 = vsub.s32 %v1035, %v1037
        %v1039 = vrot.slane %v1031, %v1038
        %v1041 = vunpack.c.l.s4 1934713408
        %v1042 = vunpack.c.0.s8 %v1041
        %v1043 = vlaneseq
        %v1044 = vshrl.u32 %v1043, 7
        %v1045 = vsub.s32 %v1042, %v1044
        %v1046 = vrot.slane %v1032, %v1045
        %v1047 = vcombine.low %v992, %v1007
        %v1048 = vcombine.high %v992, %v1007
        %v1050 = vunpack.c.l.s4 1934713408
        %v1051 = vunpack.c.0.s8 %v1050
        %v1052 = vlaneseq
        %v1053 = vshrl.u32 %v1052, 7
        %v1054 = vsub.s32 %v1051, %v1053
        %v1055 = vrot.slane %v1047, %v1054
        %v1057 = vunpack.c.l.s4 1934713408
        %v1058 = vunpack.c.0.s8 %v1057
        %v1059 = vlaneseq
        %v1060 = vshrl.u32 %v1059, 7
        %v1061 = vsub.s32 %v1058, %v1060
        %v1062 = vrot.slane %v1048, %v1061
        %v1063 = vcombine.low %v999, %v1014
        %v1064 = vcombine.high %v999, %v1014
        %v1066 = vunpack.c.l.s4 1934713408
        %v1067 = vunpack.c.0.s8 %v1066
        %v1068 = vlaneseq
        %v1069 = vshrl.u32 %v1068, 7
        %v1070 = vsub.s32 %v1067, %v1069
        %v1071 = vrot.slane %v1063, %v1070
        %v1073 = vunpack.c.l.s4 1934713408
        %v1074 = vunpack.c.0.s8 %v1073
        %v1075 = vlaneseq
        %v1076 = vshrl.u32 %v1075, 7
        %v1077 = vsub.s32 %v1074, %v1076
        %v1078 = vrot.slane %v1064, %v1077
        %v1079 = vcombine.low %v1023, %v1055
        %v1080 = vcombine.high %v1023, %v1055
        %v1081 = vcombine.low %v1030, %v1062
        %v1082 = vcombine.high %v1030, %v1062
        %v1083 = vcombine.low %v1039, %v1071
        %v1084 = vcombine.high %v1039, %v1071
        %v1085 = vcombine.low %v1046, %v1078
        %v1086 = vcombine.high %v1046, %v1078
        %v1087 = vcombine.low %v1079, %v1081
        %v1088 = vcombine.high %v1079, %v1081
        %v1090 = vunpack.c.l.s4 1983009808
        %v1091 = vunpack.c.0.s8 %v1090
        %v1092 = vlaneseq
        %v1093 = vshrl.u32 %v1092, 7
        %v1094 = vsub.s32 %v1091, %v1093
        %v1095 = vrot.slane %v1087, %v1094
        %v1097 = vunpack.c.l.s4 1983009808
        %v1098 = vunpack.c.0.s8 %v1097
        %v1099 = vlaneseq
        %v1100 = vshrl.u32 %v1099, 7
        %v1101 = vsub.s32 %v1098, %v1100
        %v1102 = vrot.slane %v1088, %v1101
        %v1103 = vcombine.low %v1080, %v1082
        %v1104 = vcombine.high %v1080, %v1082
        %v1106 = vunpack.c.l.s4 1983009808
        %v1107 = vunpack.c.0.s8 %v1106
        %v1108 = vlaneseq
        %v1109 = vshrl.u32 %v1108, 7
        %v1110 = vsub.s32 %v1107, %v1109
        %v1111 = vrot.slane %v1103, %v1110
        %v1113 = vunpack.c.l.s4 1983009808
        %v1114 = vunpack.c.0.s8 %v1113
        %v1115 = vlaneseq
        %v1116 = vshrl.u32 %v1115, 7
        %v1117 = vsub.s32 %v1114, %v1116
        %v1118 = vrot.slane %v1104, %v1117
        %v1119 = vcombine.low %v1083, %v1085
        %v1120 = vcombine.high %v1083, %v1085
        %v1122 = vunpack.c.l.s4 1983009808
        %v1123 = vunpack.c.0.s8 %v1122
        %v1124 = vlaneseq
        %v1125 = vshrl.u32 %v1124, 7
        %v1126 = vsub.s32 %v1123, %v1125
        %v1127 = vrot.slane %v1119, %v1126
        %v1129 = vunpack.c.l.s4 1983009808
        %v1130 = vunpack.c.0.s8 %v1129
        %v1131 = vlaneseq
        %v1132 = vshrl.u32 %v1131, 7
        %v1133 = vsub.s32 %v1130, %v1132
        %v1134 = vrot.slane %v1120, %v1133
        %v1135 = vcombine.low %v1084, %v1086
        %v1136 = vcombine.high %v1084, %v1086
        %v1138 = vunpack.c.l.s4 1983009808
        %v1139 = vunpack.c.0.s8 %v1138
        %v1140 = vlaneseq
        %v1141 = vshrl.u32 %v1140, 7
        %v1142 = vsub.s32 %v1139, %v1141
        %v1143 = vrot.slane %v1135, %v1142
        %v1145 = vunpack.c.l.s4 1983009808
        %v1146 = vunpack.c.0.s8 %v1145
        %v1147 = vlaneseq
        %v1148 = vshrl.u32 %v1147, 7
        %v1149 = vsub.s32 %v1146, %v1148
        %v1150 = vrot.slane %v1136, %v1149
        %v1151 = vcombine.low %v1095, %v1111
        %v1152 = vcombine.high %v1095, %v1111
        %v1154 = vunpack.c.l.s4 1934713408
        %v1155 = vunpack.c.0.s8 %v1154
        %v1156 = vlaneseq
        %v1157 = vshrl.u32 %v1156, 7
        %v1158 = vsub.s32 %v1155, %v1157
        %v1159 = vrot.slane %v1151, %v1158
        %v1161 = vunpack.c.l.s4 1934713408
        %v1162 = vunpack.c.0.s8 %v1161
        %v1163 = vlaneseq
        %v1164 = vshrl.u32 %v1163, 7
        %v1165 = vsub.s32 %v1162, %v1164
        %v1166 = vrot.slane %v1152, %v1165
        %v1167 = vcombine.low %v1102, %v1118
        %v1169 = vunpack.c.l.s4 1934713408
        %v1170 = vunpack.c.0.s8 %v1169
        %v1171 = vlaneseq
        %v1172 = vshrl.u32 %v1171, 7
        %v1173 = vsub.s32 %v1170, %v1172
        %v1174 = vrot.slane %v1167, %v1173
        %v1175 = vcombine.low %v1127, %v1143
        %v1176 = vcombine.high %v1127, %v1143
        %v1178 = vunpack.c.l.s4 1934713408
        %v1179 = vunpack.c.0.s8 %v1178
        %v1180 = vlaneseq
        %v1181 = vshrl.u32 %v1180, 7
        %v1182 = vsub.s32 %v1179, %v1181
        %v1183 = vrot.slane %v1175, %v1182
        %v1185 = vunpack.c.l.s4 1934713408
        %v1186 = vunpack.c.0.s8 %v1185
        %v1187 = vlaneseq
        %v1188 = vshrl.u32 %v1187, 7
        %v1189 = vsub.s32 %v1186, %v1188
        %v1190 = vrot.slane %v1176, %v1189
        %v1191 = vcombine.low %v1134, %v1150
        %v1193 = vunpack.c.l.s4 1934713408
        %v1194 = vunpack.c.0.s8 %v1193
        %v1195 = vlaneseq
        %v1196 = vshrl.u32 %v1195, 7
        %v1197 = vsub.s32 %v1194, %v1196
        %v1198 = vrot.slane %v1191, %v1197
        %v1199 = vcombine.low %v1159, %v1183
        %v1200 = vcombine.high %v1159, %v1183
        %v1201 = vcombine.low %v1166, %v1190
        %v1202 = vcombine.high %v1166, %v1190
        %v1203 = vcombine.low %v1174, %v1198
        %v1204 = vcombine.high %v1174, %v1198
        %1206 = vrot.lane.b32.xlu0 %v663, 96
        %v1207 = vpop.permute.xlu0 %1206
        %1208 = vrot.lane.b32.xlu0 %v663, 88
        %v1209 = vpop.permute.xlu0 %1208
        %1210 = vrot.lane.b32.xlu0 %v661, 32
        %v1211 = vpop.permute.xlu0 %1210
        %1212 = vrot.lane.b32.xlu0 %v669, 32
        %v1213 = vpop.permute.xlu0 %1212
        %1214 = vrot.lane.b32.xlu0 %v672, 32
        %v1215 = vpop.permute.xlu0 %1214
        %1216 = vrot.lane.b32.xlu0 %v675, 32
        %v1217 = vpop.permute.xlu0 %1216
        %1218 = vrot.lane.b32.xlu0 %v1207, 32
        %v1219 = vpop.permute.xlu0 %1218
        %1220 = vrot.lane.b32.xlu0 %v1209, 32
        %v1221 = vpop.permute.xlu0 %1220
        %v1228 = vcombine.low %v1211, %v1215
        %v1229 = vcombine.high %v1211, %v1215
        %v1231 = vunpack.c.l.s4 1983009808
        %v1232 = vunpack.c.0.s8 %v1231
        %v1233 = vlaneseq
        %v1234 = vshrl.u32 %v1233, 7
        %v1235 = vsub.s32 %v1232, %v1234
        %v1236 = vrot.slane %v1228, %v1235
        %v1238 = vunpack.c.l.s4 1983009808
        %v1239 = vunpack.c.0.s8 %v1238
        %v1240 = vlaneseq
        %v1241 = vshrl.u32 %v1240, 7
        %v1242 = vsub.s32 %v1239, %v1241
        %v1243 = vrot.slane %v1229, %v1242
        %v1244 = vcombine.low %v1213, %v1217
        %v1245 = vcombine.high %v1213, %v1217
        %v1247 = vunpack.c.l.s4 1983009808
        %v1248 = vunpack.c.0.s8 %v1247
        %v1249 = vlaneseq
        %v1250 = vshrl.u32 %v1249, 7
        %v1251 = vsub.s32 %v1248, %v1250
        %v1252 = vrot.slane %v1244, %v1251
        %v1254 = vunpack.c.l.s4 1983009808
        %v1255 = vunpack.c.0.s8 %v1254
        %v1256 = vlaneseq
        %v1257 = vshrl.u32 %v1256, 7
        %v1258 = vsub.s32 %v1255, %v1257
        %v1259 = vrot.slane %v1245, %v1258
        %v1260 = vcombine.high %v1219, 0.0
        %v1262 = vunpack.c.l.s4 1983009808
        %v1263 = vunpack.c.0.s8 %v1262
        %v1264 = vlaneseq
        %v1265 = vshrl.u32 %v1264, 7
        %v1266 = vsub.s32 %v1263, %v1265
        %v1267 = vrot.slane %v1219, %v1266
        %v1269 = vunpack.c.l.s4 1983009808
        %v1270 = vunpack.c.0.s8 %v1269
        %v1271 = vlaneseq
        %v1272 = vshrl.u32 %v1271, 7
        %v1273 = vsub.s32 %v1270, %v1272
        %v1274 = vrot.slane %v1260, %v1273
        %v1275 = vcombine.high %v1221, 0.0
        %v1277 = vunpack.c.l.s4 1983009808
        %v1278 = vunpack.c.0.s8 %v1277
        %v1279 = vlaneseq
        %v1280 = vshrl.u32 %v1279, 7
        %v1281 = vsub.s32 %v1278, %v1280
        %v1282 = vrot.slane %v1221, %v1281
        %v1284 = vunpack.c.l.s4 1983009808
        %v1285 = vunpack.c.0.s8 %v1284
        %v1286 = vlaneseq
        %v1287 = vshrl.u32 %v1286, 7
        %v1288 = vsub.s32 %v1285, %v1287
        %v1289 = vrot.slane %v1275, %v1288
        %v1290 = vcombine.low %v1236, %v1252
        %v1291 = vcombine.high %v1236, %v1252
        %v1293 = vunpack.c.l.s4 1934713408
        %v1294 = vunpack.c.0.s8 %v1293
        %v1295 = vlaneseq
        %v1296 = vshrl.u32 %v1295, 7
        %v1297 = vsub.s32 %v1294, %v1296
        %v1298 = vrot.slane %v1290, %v1297
        %v1300 = vunpack.c.l.s4 1934713408
        %v1301 = vunpack.c.0.s8 %v1300
        %v1302 = vlaneseq
        %v1303 = vshrl.u32 %v1302, 7
        %v1304 = vsub.s32 %v1301, %v1303
        %v1305 = vrot.slane %v1291, %v1304
        %v1306 = vcombine.low %v1243, %v1259
        %v1307 = vcombine.high %v1243, %v1259
        %v1309 = vunpack.c.l.s4 1934713408
        %v1310 = vunpack.c.0.s8 %v1309
        %v1311 = vlaneseq
        %v1312 = vshrl.u32 %v1311, 7
        %v1313 = vsub.s32 %v1310, %v1312
        %v1314 = vrot.slane %v1306, %v1313
        %v1316 = vunpack.c.l.s4 1934713408
        %v1317 = vunpack.c.0.s8 %v1316
        %v1318 = vlaneseq
        %v1319 = vshrl.u32 %v1318, 7
        %v1320 = vsub.s32 %v1317, %v1319
        %v1321 = vrot.slane %v1307, %v1320
        %v1322 = vcombine.low %v1267, %v1282
        %v1323 = vcombine.high %v1267, %v1282
        %v1325 = vunpack.c.l.s4 1934713408
        %v1326 = vunpack.c.0.s8 %v1325
        %v1327 = vlaneseq
        %v1328 = vshrl.u32 %v1327, 7
        %v1329 = vsub.s32 %v1326, %v1328
        %v1330 = vrot.slane %v1322, %v1329
        %v1332 = vunpack.c.l.s4 1934713408
        %v1333 = vunpack.c.0.s8 %v1332
        %v1334 = vlaneseq
        %v1335 = vshrl.u32 %v1334, 7
        %v1336 = vsub.s32 %v1333, %v1335
        %v1337 = vrot.slane %v1323, %v1336
        %v1338 = vcombine.low %v1274, %v1289
        %v1339 = vcombine.high %v1274, %v1289
        %v1341 = vunpack.c.l.s4 1934713408
        %v1342 = vunpack.c.0.s8 %v1341
        %v1343 = vlaneseq
        %v1344 = vshrl.u32 %v1343, 7
        %v1345 = vsub.s32 %v1342, %v1344
        %v1346 = vrot.slane %v1338, %v1345
        %v1348 = vunpack.c.l.s4 1934713408
        %v1349 = vunpack.c.0.s8 %v1348
        %v1350 = vlaneseq
        %v1351 = vshrl.u32 %v1350, 7
        %v1352 = vsub.s32 %v1349, %v1351
        %v1353 = vrot.slane %v1339, %v1352
        %v1354 = vcombine.low %v1298, %v1330
        %v1355 = vcombine.high %v1298, %v1330
        %v1356 = vcombine.low %v1305, %v1337
        %v1357 = vcombine.high %v1305, %v1337
        %v1358 = vcombine.low %v1314, %v1346
        %v1359 = vcombine.high %v1314, %v1346
        %v1360 = vcombine.low %v1321, %v1353
        %v1361 = vcombine.high %v1321, %v1353
        %v1362 = vcombine.low %v1354, %v1356
        %v1363 = vcombine.high %v1354, %v1356
        %v1365 = vunpack.c.l.s4 1983009808
        %v1366 = vunpack.c.0.s8 %v1365
        %v1367 = vlaneseq
        %v1368 = vshrl.u32 %v1367, 7
        %v1369 = vsub.s32 %v1366, %v1368
        %v1370 = vrot.slane %v1362, %v1369
        %v1372 = vunpack.c.l.s4 1983009808
        %v1373 = vunpack.c.0.s8 %v1372
        %v1374 = vlaneseq
        %v1375 = vshrl.u32 %v1374, 7
        %v1376 = vsub.s32 %v1373, %v1375
        %v1377 = vrot.slane %v1363, %v1376
        %v1378 = vcombine.low %v1355, %v1357
        %v1379 = vcombine.high %v1355, %v1357
        %v1381 = vunpack.c.l.s4 1983009808
        %v1382 = vunpack.c.0.s8 %v1381
        %v1383 = vlaneseq
        %v1384 = vshrl.u32 %v1383, 7
        %v1385 = vsub.s32 %v1382, %v1384
        %v1386 = vrot.slane %v1378, %v1385
        %v1388 = vunpack.c.l.s4 1983009808
        %v1389 = vunpack.c.0.s8 %v1388
        %v1390 = vlaneseq
        %v1391 = vshrl.u32 %v1390, 7
        %v1392 = vsub.s32 %v1389, %v1391
        %v1393 = vrot.slane %v1379, %v1392
        %v1394 = vcombine.low %v1358, %v1360
        %v1395 = vcombine.high %v1358, %v1360
        %v1397 = vunpack.c.l.s4 1983009808
        %v1398 = vunpack.c.0.s8 %v1397
        %v1399 = vlaneseq
        %v1400 = vshrl.u32 %v1399, 7
        %v1401 = vsub.s32 %v1398, %v1400
        %v1402 = vrot.slane %v1394, %v1401
        %v1404 = vunpack.c.l.s4 1983009808
        %v1405 = vunpack.c.0.s8 %v1404
        %v1406 = vlaneseq
        %v1407 = vshrl.u32 %v1406, 7
        %v1408 = vsub.s32 %v1405, %v1407
        %v1409 = vrot.slane %v1395, %v1408
        %v1410 = vcombine.low %v1359, %v1361
        %v1411 = vcombine.high %v1359, %v1361
        %v1413 = vunpack.c.l.s4 1983009808
        %v1414 = vunpack.c.0.s8 %v1413
        %v1415 = vlaneseq
        %v1416 = vshrl.u32 %v1415, 7
        %v1417 = vsub.s32 %v1414, %v1416
        %v1418 = vrot.slane %v1410, %v1417
        %v1420 = vunpack.c.l.s4 1983009808
        %v1421 = vunpack.c.0.s8 %v1420
        %v1422 = vlaneseq
        %v1423 = vshrl.u32 %v1422, 7
        %v1424 = vsub.s32 %v1421, %v1423
        %v1425 = vrot.slane %v1411, %v1424
        %v1426 = vcombine.low %v1370, %v1386
        %v1427 = vcombine.high %v1370, %v1386
        %v1429 = vunpack.c.l.s4 1934713408
        %v1430 = vunpack.c.0.s8 %v1429
        %v1431 = vlaneseq
        %v1432 = vshrl.u32 %v1431, 7
        %v1433 = vsub.s32 %v1430, %v1432
        %v1434 = vrot.slane %v1426, %v1433
        %v1436 = vunpack.c.l.s4 1934713408
        %v1437 = vunpack.c.0.s8 %v1436
        %v1438 = vlaneseq
        %v1439 = vshrl.u32 %v1438, 7
        %v1440 = vsub.s32 %v1437, %v1439
        %v1441 = vrot.slane %v1427, %v1440
        %v1442 = vcombine.low %v1377, %v1393
        %v1444 = vunpack.c.l.s4 1934713408
        %v1445 = vunpack.c.0.s8 %v1444
        %v1446 = vlaneseq
        %v1447 = vshrl.u32 %v1446, 7
        %v1448 = vsub.s32 %v1445, %v1447
        %v1449 = vrot.slane %v1442, %v1448
        %v1450 = vcombine.low %v1402, %v1418
        %v1451 = vcombine.high %v1402, %v1418
        %v1453 = vunpack.c.l.s4 1934713408
        %v1454 = vunpack.c.0.s8 %v1453
        %v1455 = vlaneseq
        %v1456 = vshrl.u32 %v1455, 7
        %v1457 = vsub.s32 %v1454, %v1456
        %v1458 = vrot.slane %v1450, %v1457
        %v1460 = vunpack.c.l.s4 1934713408
        %v1461 = vunpack.c.0.s8 %v1460
        %v1462 = vlaneseq
        %v1463 = vshrl.u32 %v1462, 7
        %v1464 = vsub.s32 %v1461, %v1463
        %v1465 = vrot.slane %v1451, %v1464
        %v1466 = vcombine.low %v1409, %v1425
        %v1468 = vunpack.c.l.s4 1934713408
        %v1469 = vunpack.c.0.s8 %v1468
        %v1470 = vlaneseq
        %v1471 = vshrl.u32 %v1470, 7
        %v1472 = vsub.s32 %v1469, %v1471
        %v1473 = vrot.slane %v1466, %v1472
        %v1474 = vcombine.low %v1434, %v1458
        %v1475 = vcombine.high %v1434, %v1458
        %v1476 = vcombine.low %v1441, %v1465
        %v1477 = vcombine.high %v1441, %v1465
        %v1478 = vcombine.low %v1449, %v1473
        %v1479 = vcombine.high %v1449, %v1473
        %v1480 = vpack.c.bf16 %v929, %v929
        %v1481 = vpack.c.bf16 %v930, %v930
        %v1482 = vpack.c.bf16 %v931, %v931
        %v1483 = vpack.c.bf16 %v932, %v932
        %v1484 = vpack.c.bf16 %v933, %v933
        %v1485 = vpack.c.bf16 %v934, %v934
        %v1486 = vpack.c.bf16 %v1199, %v1199
        %v1487 = vpack.c.bf16 %v1200, %v1200
        %v1488 = vpack.c.bf16 %v1201, %v1201
        %v1489 = vpack.c.bf16 %v1202, %v1202
        %v1490 = vpack.c.bf16 %v1203, %v1203
        %v1491 = vpack.c.bf16 %v1204, %v1204
        %vm1492 = vcmask 64512
        %v1494 = vsel %vm1492, %v1480, 0
        %v1497 = vsel %vm1492, %v1486, 0
        %1499 = vmatprep.subr.bf16.mxu0 0
        %1500 = vmatpush1.bf16.xpose.msra.mxu0 %v1497
        %1501 = vmatprep.subr.bf16.mxu0 0
        %1502 = vmatpush1.bf16.xpose.msra.mxu0 0
        %1503 = vmatprep.subr.bf16.mxu0 0
        %1504 = vmatpush1.bf16.xpose.msra.mxu0 0
        %1505 = vmatprep.subr.bf16.mxu0 0
        %1506 = vmatpush1.bf16.xpose.msra.mxu0 0
        %1507 = vmatprep.subr.bf16.mxu0 0
        %1508 = vmatpush1.bf16.xpose.msra.mxu0 0
        %1509 = vmatprep.subr.bf16.mxu0 0
        %1510 = vmatpush1.bf16.xpose.msra.mxu0 0
        %1511 = vmatprep.subr.bf16.mxu0 0
        %1512 = vmatpush1.bf16.xpose.msra.mxu0 0
        %1513 = vmatprep.subr.bf16.mxu0 0
        %1514 = vmatpush1.bf16.xpose.msra.mxu0 0
        %1515 = vmatprep.subr.bf16.mxu0 0
        %1516 = vmatpush1.bf16.xpose.msra.mxu0 0
        %1517 = vmatprep.subr.bf16.mxu0 0
        %1518 = vmatpush1.bf16.xpose.msra.mxu0 0
        %1519 = vmatprep.subr.bf16.mxu0 0
        %1520 = vmatpush1.bf16.xpose.msra.mxu0 0
        %1521 = vmatprep.subr.bf16.mxu0 0
        %1522 = vmatpush1.bf16.xpose.msra.mxu0 0
        %1523 = vmatprep.subr.bf16.mxu0 0
        %1524 = vmatpush1.bf16.xpose.msra.mxu0 0
        %1525 = vmatprep.subr.bf16.mxu0 0
        %1526 = vmatpush1.bf16.xpose.msra.mxu0 0
        %1527 = vmatprep.subr.bf16.mxu0 0
        %1528 = vmatpush1.bf16.xpose.msra.mxu0 0
        %1529 = vmatprep.subr.bf16.mxu0 0
        %1530 = vmatpush1.bf16.xpose.msra.mxu0 0
        %1531 = vmatprep.mubr.bf16.mxu0 0
        %1532 = vmatmul.mubr.bf16.gmra.mrb[0].mxu0 %v1494
        %v1533 = vpop.f32.mrb[0].mxu0
        %v1534 = vadd.f32 0.0, %v1533
        %v1535 = vpop.f32.mrb[0].mxu0
        %v1536 = vpop.f32.mrb[0].mxu0
        %v1537 = vpop.f32.mrb[0].mxu0
        %1538 = vdwg.mxu0
        %v1540 = vsel %vm1492, %v1481, 0
        %v1543 = vsel %vm1492, %v1487, 0
        %1545 = vmatprep.subr.bf16.mxu0 0
        %1546 = vmatpush1.bf16.xpose.msra.mxu0 %v1543
        %1547 = vmatprep.subr.bf16.mxu0 0
        %1548 = vmatpush1.bf16.xpose.msra.mxu0 0
        %1549 = vmatprep.subr.bf16.mxu0 0
        %1550 = vmatpush1.bf16.xpose.msra.mxu0 0
        %1551 = vmatprep.subr.bf16.mxu0 0
        %1552 = vmatpush1.bf16.xpose.msra.mxu0 0
        %1553 = vmatprep.subr.bf16.mxu0 0
        %1554 = vmatpush1.bf16.xpose.msra.mxu0 0
        %1555 = vmatprep.subr.bf16.mxu0 0
        %1556 = vmatpush1.bf16.xpose.msra.mxu0 0
        %1557 = vmatprep.subr.bf16.mxu0 0
        %1558 = vmatpush1.bf16.xpose.msra.mxu0 0
        %1559 = vmatprep.subr.bf16.mxu0 0
        %1560 = vmatpush1.bf16.xpose.msra.mxu0 0
        %1561 = vmatprep.subr.bf16.mxu0 0
        %1562 = vmatpush1.bf16.xpose.msra.mxu0 0
        %1563 = vmatprep.subr.bf16.mxu0 0
        %1564 = vmatpush1.bf16.xpose.msra.mxu0 0
        %1565 = vmatprep.subr.bf16.mxu0 0
        %1566 = vmatpush1.bf16.xpose.msra.mxu0 0
        %1567 = vmatprep.subr.bf16.mxu0 0
        %1568 = vmatpush1.bf16.xpose.msra.mxu0 0
        %1569 = vmatprep.subr.bf16.mxu0 0
        %1570 = vmatpush1.bf16.xpose.msra.mxu0 0
        %1571 = vmatprep.subr.bf16.mxu0 0
        %1572 = vmatpush1.bf16.xpose.msra.mxu0 0
        %1573 = vmatprep.subr.bf16.mxu0 0
        %1574 = vmatpush1.bf16.xpose.msra.mxu0 0
        %1575 = vmatprep.subr.bf16.mxu0 0
        %1576 = vmatpush1.bf16.xpose.msra.mxu0 0
        %1577 = vmatprep.mubr.bf16.mxu0 0
        %1578 = vmatmul.mubr.bf16.gmra.mrb[0].mxu0 %v1540
        %v1579 = vpop.f32.mrb[0].mxu0
        %v1580 = vadd.f32 0.0, %v1579
        %v1581 = vpop.f32.mrb[0].mxu0
        %v1582 = vpop.f32.mrb[0].mxu0
        %v1583 = vpop.f32.mrb[0].mxu0
        %1584 = vdwg.mxu0
        %v1586 = vsel %vm1492, %v1482, 0
        %v1589 = vsel %vm1492, %v1488, 0
        %1591 = vmatprep.subr.bf16.mxu0 0
        %1592 = vmatpush1.bf16.xpose.msra.mxu0 %v1589
        %1593 = vmatprep.subr.bf16.mxu0 0
        %1594 = vmatpush1.bf16.xpose.msra.mxu0 0
        %1595 = vmatprep.subr.bf16.mxu0 0
        %1596 = vmatpush1.bf16.xpose.msra.mxu0 0
        %1597 = vmatprep.subr.bf16.mxu0 0
        %1598 = vmatpush1.bf16.xpose.msra.mxu0 0
        %1599 = vmatprep.subr.bf16.mxu0 0
        %1600 = vmatpush1.bf16.xpose.msra.mxu0 0
        %1601 = vmatprep.subr.bf16.mxu0 0
        %1602 = vmatpush1.bf16.xpose.msra.mxu0 0
        %1603 = vmatprep.subr.bf16.mxu0 0
        %1604 = vmatpush1.bf16.xpose.msra.mxu0 0
        %1605 = vmatprep.subr.bf16.mxu0 0
        %1606 = vmatpush1.bf16.xpose.msra.mxu0 0
        %1607 = vmatprep.subr.bf16.mxu0 0
        %1608 = vmatpush1.bf16.xpose.msra.mxu0 0
        %1609 = vmatprep.subr.bf16.mxu0 0
        %1610 = vmatpush1.bf16.xpose.msra.mxu0 0
        %1611 = vmatprep.subr.bf16.mxu0 0
        %1612 = vmatpush1.bf16.xpose.msra.mxu0 0
        %1613 = vmatprep.subr.bf16.mxu0 0
        %1614 = vmatpush1.bf16.xpose.msra.mxu0 0
        %1615 = vmatprep.subr.bf16.mxu0 0
        %1616 = vmatpush1.bf16.xpose.msra.mxu0 0
        %1617 = vmatprep.subr.bf16.mxu0 0
        %1618 = vmatpush1.bf16.xpose.msra.mxu0 0
        %1619 = vmatprep.subr.bf16.mxu0 0
        %1620 = vmatpush1.bf16.xpose.msra.mxu0 0
        %1621 = vmatprep.subr.bf16.mxu0 0
        %1622 = vmatpush1.bf16.xpose.msra.mxu0 0
        %1623 = vmatprep.mubr.bf16.mxu0 0
        %1624 = vmatmul.mubr.bf16.gmra.mrb[0].mxu0 %v1586
        %v1625 = vpop.f32.mrb[0].mxu0
        %v1626 = vadd.f32 0.0, %v1625
        %v1627 = vpop.f32.mrb[0].mxu0
        %v1628 = vpop.f32.mrb[0].mxu0
        %v1629 = vpop.f32.mrb[0].mxu0
        %1630 = vdwg.mxu0
        %v1632 = vsel %vm1492, %v1483, 0
        %v1635 = vsel %vm1492, %v1489, 0
        %1637 = vmatprep.subr.bf16.mxu0 0
        %1638 = vmatpush1.bf16.xpose.msra.mxu0 %v1635
        %1639 = vmatprep.subr.bf16.mxu0 0
        %1640 = vmatpush1.bf16.xpose.msra.mxu0 0
        %1641 = vmatprep.subr.bf16.mxu0 0
        %1642 = vmatpush1.bf16.xpose.msra.mxu0 0
        %1643 = vmatprep.subr.bf16.mxu0 0
        %1644 = vmatpush1.bf16.xpose.msra.mxu0 0
        %1645 = vmatprep.subr.bf16.mxu0 0
        %1646 = vmatpush1.bf16.xpose.msra.mxu0 0
        %1647 = vmatprep.subr.bf16.mxu0 0
        %1648 = vmatpush1.bf16.xpose.msra.mxu0 0
        %1649 = vmatprep.subr.bf16.mxu0 0
        %1650 = vmatpush1.bf16.xpose.msra.mxu0 0
        %1651 = vmatprep.subr.bf16.mxu0 0
        %1652 = vmatpush1.bf16.xpose.msra.mxu0 0
        %1653 = vmatprep.subr.bf16.mxu0 0
        %1654 = vmatpush1.bf16.xpose.msra.mxu0 0
        %1655 = vmatprep.subr.bf16.mxu0 0
        %1656 = vmatpush1.bf16.xpose.msra.mxu0 0
        %1657 = vmatprep.subr.bf16.mxu0 0
        %1658 = vmatpush1.bf16.xpose.msra.mxu0 0
        %1659 = vmatprep.subr.bf16.mxu0 0
        %1660 = vmatpush1.bf16.xpose.msra.mxu0 0
        %1661 = vmatprep.subr.bf16.mxu0 0
        %1662 = vmatpush1.bf16.xpose.msra.mxu0 0
        %1663 = vmatprep.subr.bf16.mxu0 0
        %1664 = vmatpush1.bf16.xpose.msra.mxu0 0
        %1665 = vmatprep.subr.bf16.mxu0 0
        %1666 = vmatpush1.bf16.xpose.msra.mxu0 0
        %1667 = vmatprep.subr.bf16.mxu0 0
        %1668 = vmatpush1.bf16.xpose.msra.mxu0 0
        %1669 = vmatprep.mubr.bf16.mxu0 0
        %1670 = vmatmul.mubr.bf16.gmra.mrb[0].mxu0 %v1632
        %v1671 = vpop.f32.mrb[0].mxu0
        %v1672 = vadd.f32 0.0, %v1671
        %v1673 = vpop.f32.mrb[0].mxu0
        %v1674 = vpop.f32.mrb[0].mxu0
        %v1675 = vpop.f32.mrb[0].mxu0
        %1676 = vdwg.mxu0
        %v1678 = vsel %vm1492, %v1484, 0
        %v1681 = vsel %vm1492, %v1490, 0
        %1683 = vmatprep.subr.bf16.mxu0 0
        %1684 = vmatpush1.bf16.xpose.msra.mxu0 %v1681
        %1685 = vmatprep.subr.bf16.mxu0 0
        %1686 = vmatpush1.bf16.xpose.msra.mxu0 0
        %1687 = vmatprep.subr.bf16.mxu0 0
        %1688 = vmatpush1.bf16.xpose.msra.mxu0 0
        %1689 = vmatprep.subr.bf16.mxu0 0
        %1690 = vmatpush1.bf16.xpose.msra.mxu0 0
        %1691 = vmatprep.subr.bf16.mxu0 0
        %1692 = vmatpush1.bf16.xpose.msra.mxu0 0
        %1693 = vmatprep.subr.bf16.mxu0 0
        %1694 = vmatpush1.bf16.xpose.msra.mxu0 0
        %1695 = vmatprep.subr.bf16.mxu0 0
        %1696 = vmatpush1.bf16.xpose.msra.mxu0 0
        %1697 = vmatprep.subr.bf16.mxu0 0
        %1698 = vmatpush1.bf16.xpose.msra.mxu0 0
        %1699 = vmatprep.subr.bf16.mxu0 0
        %1700 = vmatpush1.bf16.xpose.msra.mxu0 0
        %1701 = vmatprep.subr.bf16.mxu0 0
        %1702 = vmatpush1.bf16.xpose.msra.mxu0 0
        %1703 = vmatprep.subr.bf16.mxu0 0
        %1704 = vmatpush1.bf16.xpose.msra.mxu0 0
        %1705 = vmatprep.subr.bf16.mxu0 0
        %1706 = vmatpush1.bf16.xpose.msra.mxu0 0
        %1707 = vmatprep.subr.bf16.mxu0 0
        %1708 = vmatpush1.bf16.xpose.msra.mxu0 0
        %1709 = vmatprep.subr.bf16.mxu0 0
        %1710 = vmatpush1.bf16.xpose.msra.mxu0 0
        %1711 = vmatprep.subr.bf16.mxu0 0
        %1712 = vmatpush1.bf16.xpose.msra.mxu0 0
        %1713 = vmatprep.subr.bf16.mxu0 0
        %1714 = vmatpush1.bf16.xpose.msra.mxu0 0
        %1715 = vmatprep.mubr.bf16.mxu0 0
        %1716 = vmatmul.mubr.bf16.gmra.mrb[0].mxu0 %v1678
        %v1717 = vpop.f32.mrb[0].mxu0
        %v1718 = vadd.f32 0.0, %v1717
        %v1719 = vpop.f32.mrb[0].mxu0
        %v1720 = vpop.f32.mrb[0].mxu0
        %v1721 = vpop.f32.mrb[0].mxu0
        %1722 = vdwg.mxu0
        %v1724 = vsel %vm1492, %v1485, 0
        %v1727 = vsel %vm1492, %v1491, 0
        %1729 = vmatprep.subr.bf16.mxu0 0
        %1730 = vmatpush1.bf16.xpose.msra.mxu0 %v1727
        %1731 = vmatprep.subr.bf16.mxu0 0
        %1732 = vmatpush1.bf16.xpose.msra.mxu0 0
        %1733 = vmatprep.subr.bf16.mxu0 0
        %1734 = vmatpush1.bf16.xpose.msra.mxu0 0
        %1735 = vmatprep.subr.bf16.mxu0 0
        %1736 = vmatpush1.bf16.xpose.msra.mxu0 0
        %1737 = vmatprep.subr.bf16.mxu0 0
        %1738 = vmatpush1.bf16.xpose.msra.mxu0 0
        %1739 = vmatprep.subr.bf16.mxu0 0
        %1740 = vmatpush1.bf16.xpose.msra.mxu0 0
        %1741 = vmatprep.subr.bf16.mxu0 0
        %1742 = vmatpush1.bf16.xpose.msra.mxu0 0
        %1743 = vmatprep.subr.bf16.mxu0 0
        %1744 = vmatpush1.bf16.xpose.msra.mxu0 0
        %1745 = vmatprep.subr.bf16.mxu0 0
        %1746 = vmatpush1.bf16.xpose.msra.mxu0 0
        %1747 = vmatprep.subr.bf16.mxu0 0
        %1748 = vmatpush1.bf16.xpose.msra.mxu0 0
        %1749 = vmatprep.subr.bf16.mxu0 0
        %1750 = vmatpush1.bf16.xpose.msra.mxu0 0
        %1751 = vmatprep.subr.bf16.mxu0 0
        %1752 = vmatpush1.bf16.xpose.msra.mxu0 0
        %1753 = vmatprep.subr.bf16.mxu0 0
        %1754 = vmatpush1.bf16.xpose.msra.mxu0 0
        %1755 = vmatprep.subr.bf16.mxu0 0
        %1756 = vmatpush1.bf16.xpose.msra.mxu0 0
        %1757 = vmatprep.subr.bf16.mxu0 0
        %1758 = vmatpush1.bf16.xpose.msra.mxu0 0
        %1759 = vmatprep.subr.bf16.mxu0 0
        %1760 = vmatpush1.bf16.xpose.msra.mxu0 0
        %1761 = vmatprep.mubr.bf16.mxu0 0
        %1762 = vmatmul.mubr.bf16.gmra.mrb[0].mxu0 %v1724
        %v1763 = vpop.f32.mrb[0].mxu0
        %v1764 = vadd.f32 0.0, %v1763
        %v1765 = vpop.f32.mrb[0].mxu0
        %v1766 = vpop.f32.mrb[0].mxu0
        %v1767 = vpop.f32.mrb[0].mxu0
        %1768 = vdwg.mxu0
        %v1769 = vsel %vm554, 1, 0
        %vm1770 = vcmp.eq.s32.totalorder %v1769, 1
        %v1771 = vsel %vm1770, %v1534, -1e+30
        %v1772 = vsel %vm1770, %v1580, -1e+30
        %v1773 = vsel %vm1770, %v1626, -1e+30
        %v1774 = vsel %vm1770, %v1672, -1e+30
        %v1775 = vsel %vm1770, %v1718, -1e+30
        %v1776 = vsel %vm1770, %v1764, -1e+30
        %v1777 = vsel %vm1492, %v1771, -inf
        %1778 = vmax.xlane.f32.xlu0 %v1777
        %v1779 = vpop.xlane.xlu0 %1778
        %v1780 = vsel %vm1492, %v1772, -inf
        %1781 = vmax.xlane.f32.xlu0 %v1780
        %v1782 = vpop.xlane.xlu0 %1781
        %v1783 = vsel %vm1492, %v1773, -inf
        %1784 = vmax.xlane.f32.xlu0 %v1783
        %v1785 = vpop.xlane.xlu0 %1784
        %v1786 = vsel %vm1492, %v1774, -inf
        %1787 = vmax.xlane.f32.xlu0 %v1786
        %v1788 = vpop.xlane.xlu0 %1787
        %v1789 = vsel %vm1492, %v1775, -inf
        %1790 = vmax.xlane.f32.xlu0 %v1789
        %v1791 = vpop.xlane.xlu0 %1790
        %v1792 = vsel %vm1492, %v1776, -inf
        %1793 = vmax.xlane.f32.xlu0 %v1792
        %v1794 = vpop.xlane.xlu0 %1793
        %v1795 = vsub.f32 %v1771, %v1779
        %v1796 = vsub.f32 %v1772, %v1782
        %v1797 = vsub.f32 %v1773, %v1785
        %v1798 = vsub.f32 %v1774, %v1788
        %v1799 = vsub.f32 %v1775, %v1791
        %v1800 = vsub.f32 %v1776, %v1794
        %v1801 = vmul.f32 %v1795, 1.442695
        %v1802 = vpow.pop %v1801
        %v1803 = vmul.f32 %v1796, 1.442695
        %v1804 = vpow.pop %v1803
        %v1805 = vmul.f32 %v1797, 1.442695
        %v1806 = vpow.pop %v1805
        %v1807 = vmul.f32 %v1798, 1.442695
        %v1808 = vpow.pop %v1807
        %v1809 = vmul.f32 %v1799, 1.442695
        %v1810 = vpow.pop %v1809
        %v1811 = vmul.f32 %v1800, 1.442695
        %v1812 = vpow.pop %v1811
        %v1813 = vsel %vm1492, %v1802, 0.0
        %1814 = vadd.xlane.f32.xlu0 %v1813
        %v1815 = vpop.xlane.xlu0 %1814
        %v1816 = vsel %vm1492, %v1804, 0.0
        %1817 = vadd.xlane.f32.xlu0 %v1816
        %v1818 = vpop.xlane.xlu0 %1817
        %v1819 = vsel %vm1492, %v1806, 0.0
        %1820 = vadd.xlane.f32.xlu0 %v1819
        %v1821 = vpop.xlane.xlu0 %1820
        %v1822 = vsel %vm1492, %v1808, 0.0
        %1823 = vadd.xlane.f32.xlu0 %v1822
        %v1824 = vpop.xlane.xlu0 %1823
        %v1825 = vsel %vm1492, %v1810, 0.0
        %1826 = vadd.xlane.f32.xlu0 %v1825
        %v1827 = vpop.xlane.xlu0 %1826
        %v1828 = vsel %vm1492, %v1812, 0.0
        %1829 = vadd.xlane.f32.xlu0 %v1828
        %v1830 = vpop.xlane.xlu0 %1829
        %v1831 = vrcp.pop %v1815
        %v1832 = vrcp.pop %v1818
        %v1833 = vrcp.pop %v1821
        %v1834 = vrcp.pop %v1824
        %v1835 = vrcp.pop %v1827
        %v1836 = vrcp.pop %v1830
        %v1837 = vmul.f32 %v1802, %v1831
        %v1838 = vmul.f32 %v1804, %v1832
        %v1839 = vmul.f32 %v1806, %v1833
        %v1840 = vmul.f32 %v1808, %v1834
        %v1841 = vmul.f32 %v1810, %v1835
        %v1842 = vmul.f32 %v1812, %v1836
        %v1843 = vpack.c.bf16 %v1837, %v1837
        %v1844 = vpack.c.bf16 %v1838, %v1838
        %v1845 = vpack.c.bf16 %v1839, %v1839
        %v1846 = vpack.c.bf16 %v1840, %v1840
        %v1847 = vpack.c.bf16 %v1841, %v1841
        %v1848 = vpack.c.bf16 %v1842, %v1842
        %v1849 = vpack.c.bf16 %v1474, %v1474
        %v1850 = vpack.c.bf16 %v1475, %v1475
        %v1851 = vpack.c.bf16 %v1476, %v1476
        %v1852 = vpack.c.bf16 %v1477, %v1477
        %v1853 = vpack.c.bf16 %v1478, %v1478
        %v1854 = vpack.c.bf16 %v1479, %v1479
        %v1856 = vsel %vm1492, %v1843, 0
        %vm1858 = vcmask 1043456
        %v1860 = vsel %vm1858, %v1849, 0
        %1862 = vmatprep.subr.bf16.mxu0 0
        %1863 = vmatpush1.bf16.msra.mxu0 %v1860
        %1864 = vmatprep.subr.bf16.mxu0 0
        %1865 = vmatpush1.bf16.msra.mxu0 0
        %1866 = vmatprep.subr.bf16.mxu0 0
        %1867 = vmatpush1.bf16.msra.mxu0 0
        %1868 = vmatprep.subr.bf16.mxu0 0
        %1869 = vmatpush1.bf16.msra.mxu0 0
        %1870 = vmatprep.subr.bf16.mxu0 0
        %1871 = vmatpush1.bf16.msra.mxu0 0
        %1872 = vmatprep.subr.bf16.mxu0 0
        %1873 = vmatpush1.bf16.msra.mxu0 0
        %1874 = vmatprep.subr.bf16.mxu0 0
        %1875 = vmatpush1.bf16.msra.mxu0 0
        %1876 = vmatprep.subr.bf16.mxu0 0
        %1877 = vmatpush1.bf16.msra.mxu0 0
        %1878 = vmatprep.subr.bf16.mxu0 0
        %1879 = vmatpush1.bf16.msra.mxu0 0
        %1880 = vmatprep.subr.bf16.mxu0 0
        %1881 = vmatpush1.bf16.msra.mxu0 0
        %1882 = vmatprep.subr.bf16.mxu0 0
        %1883 = vmatpush1.bf16.msra.mxu0 0
        %1884 = vmatprep.subr.bf16.mxu0 0
        %1885 = vmatpush1.bf16.msra.mxu0 0
        %1886 = vmatprep.subr.bf16.mxu0 0
        %1887 = vmatpush1.bf16.msra.mxu0 0
        %1888 = vmatprep.subr.bf16.mxu0 0
        %1889 = vmatpush1.bf16.msra.mxu0 0
        %1890 = vmatprep.subr.bf16.mxu0 0
        %1891 = vmatpush1.bf16.msra.mxu0 0
        %1892 = vmatprep.subr.bf16.mxu0 0
        %1893 = vmatpush1.bf16.msra.mxu0 0
        %1894 = vmatprep.mubr.bf16.mxu0 0
        %1895 = vmatmul.mubr.bf16.gmra.mrb[0].mxu0 %v1856
        %v1896 = vpop.f32.mrb[0].mxu0
        %v1897 = vadd.f32 0.0, %v1896
        %v1898 = vpop.f32.mrb[0].mxu0
        %v1899 = vpop.f32.mrb[0].mxu0
        %v1900 = vpop.f32.mrb[0].mxu0
        %1901 = vdwg.mxu0
        %v1903 = vsel %vm1492, %v1844, 0
        %v1906 = vsel %vm1858, %v1850, 0
        %1908 = vmatprep.subr.bf16.mxu0 0
        %1909 = vmatpush1.bf16.msra.mxu0 %v1906
        %1910 = vmatprep.subr.bf16.mxu0 0
        %1911 = vmatpush1.bf16.msra.mxu0 0
        %1912 = vmatprep.subr.bf16.mxu0 0
        %1913 = vmatpush1.bf16.msra.mxu0 0
        %1914 = vmatprep.subr.bf16.mxu0 0
        %1915 = vmatpush1.bf16.msra.mxu0 0
        %1916 = vmatprep.subr.bf16.mxu0 0
        %1917 = vmatpush1.bf16.msra.mxu0 0
        %1918 = vmatprep.subr.bf16.mxu0 0
        %1919 = vmatpush1.bf16.msra.mxu0 0
        %1920 = vmatprep.subr.bf16.mxu0 0
        %1921 = vmatpush1.bf16.msra.mxu0 0
        %1922 = vmatprep.subr.bf16.mxu0 0
        %1923 = vmatpush1.bf16.msra.mxu0 0
        %1924 = vmatprep.subr.bf16.mxu0 0
        %1925 = vmatpush1.bf16.msra.mxu0 0
        %1926 = vmatprep.subr.bf16.mxu0 0
        %1927 = vmatpush1.bf16.msra.mxu0 0
        %1928 = vmatprep.subr.bf16.mxu0 0
        %1929 = vmatpush1.bf16.msra.mxu0 0
        %1930 = vmatprep.subr.bf16.mxu0 0
        %1931 = vmatpush1.bf16.msra.mxu0 0
        %1932 = vmatprep.subr.bf16.mxu0 0
        %1933 = vmatpush1.bf16.msra.mxu0 0
        %1934 = vmatprep.subr.bf16.mxu0 0
        %1935 = vmatpush1.bf16.msra.mxu0 0
        %1936 = vmatprep.subr.bf16.mxu0 0
        %1937 = vmatpush1.bf16.msra.mxu0 0
        %1938 = vmatprep.subr.bf16.mxu0 0
        %1939 = vmatpush1.bf16.msra.mxu0 0
        %1940 = vmatprep.mubr.bf16.mxu0 0
        %1941 = vmatmul.mubr.bf16.gmra.mrb[0].mxu0 %v1903
        %v1942 = vpop.f32.mrb[0].mxu0
        %v1943 = vadd.f32 0.0, %v1942
        %v1944 = vpop.f32.mrb[0].mxu0
        %v1945 = vpop.f32.mrb[0].mxu0
        %v1946 = vpop.f32.mrb[0].mxu0
        %1947 = vdwg.mxu0
        %v1949 = vsel %vm1492, %v1845, 0
        %v1952 = vsel %vm1858, %v1851, 0
        %1954 = vmatprep.subr.bf16.mxu0 0
        %1955 = vmatpush1.bf16.msra.mxu0 %v1952
        %1956 = vmatprep.subr.bf16.mxu0 0
        %1957 = vmatpush1.bf16.msra.mxu0 0
        %1958 = vmatprep.subr.bf16.mxu0 0
        %1959 = vmatpush1.bf16.msra.mxu0 0
        %1960 = vmatprep.subr.bf16.mxu0 0
        %1961 = vmatpush1.bf16.msra.mxu0 0
        %1962 = vmatprep.subr.bf16.mxu0 0
        %1963 = vmatpush1.bf16.msra.mxu0 0
        %1964 = vmatprep.subr.bf16.mxu0 0
        %1965 = vmatpush1.bf16.msra.mxu0 0
        %1966 = vmatprep.subr.bf16.mxu0 0
        %1967 = vmatpush1.bf16.msra.mxu0 0
        %1968 = vmatprep.subr.bf16.mxu0 0
        %1969 = vmatpush1.bf16.msra.mxu0 0
        %1970 = vmatprep.subr.bf16.mxu0 0
        %1971 = vmatpush1.bf16.msra.mxu0 0
        %1972 = vmatprep.subr.bf16.mxu0 0
        %1973 = vmatpush1.bf16.msra.mxu0 0
        %1974 = vmatprep.subr.bf16.mxu0 0
        %1975 = vmatpush1.bf16.msra.mxu0 0
        %1976 = vmatprep.subr.bf16.mxu0 0
        %1977 = vmatpush1.bf16.msra.mxu0 0
        %1978 = vmatprep.subr.bf16.mxu0 0
        %1979 = vmatpush1.bf16.msra.mxu0 0
        %1980 = vmatprep.subr.bf16.mxu0 0
        %1981 = vmatpush1.bf16.msra.mxu0 0
        %1982 = vmatprep.subr.bf16.mxu0 0
        %1983 = vmatpush1.bf16.msra.mxu0 0
        %1984 = vmatprep.subr.bf16.mxu0 0
        %1985 = vmatpush1.bf16.msra.mxu0 0
        %1986 = vmatprep.mubr.bf16.mxu0 0
        %1987 = vmatmul.mubr.bf16.gmra.mrb[0].mxu0 %v1949
        %v1988 = vpop.f32.mrb[0].mxu0
        %v1989 = vadd.f32 0.0, %v1988
        %v1990 = vpop.f32.mrb[0].mxu0
        %v1991 = vpop.f32.mrb[0].mxu0
        %v1992 = vpop.f32.mrb[0].mxu0
        %1993 = vdwg.mxu0
        %v1995 = vsel %vm1492, %v1846, 0
        %v1998 = vsel %vm1858, %v1852, 0
        %2000 = vmatprep.subr.bf16.mxu0 0
        %2001 = vmatpush1.bf16.msra.mxu0 %v1998
        %2002 = vmatprep.subr.bf16.mxu0 0
        %2003 = vmatpush1.bf16.msra.mxu0 0
        %2004 = vmatprep.subr.bf16.mxu0 0
        %2005 = vmatpush1.bf16.msra.mxu0 0
        %2006 = vmatprep.subr.bf16.mxu0 0
        %2007 = vmatpush1.bf16.msra.mxu0 0
        %2008 = vmatprep.subr.bf16.mxu0 0
        %2009 = vmatpush1.bf16.msra.mxu0 0
        %2010 = vmatprep.subr.bf16.mxu0 0
        %2011 = vmatpush1.bf16.msra.mxu0 0
        %2012 = vmatprep.subr.bf16.mxu0 0
        %2013 = vmatpush1.bf16.msra.mxu0 0
        %2014 = vmatprep.subr.bf16.mxu0 0
        %2015 = vmatpush1.bf16.msra.mxu0 0
        %2016 = vmatprep.subr.bf16.mxu0 0
        %2017 = vmatpush1.bf16.msra.mxu0 0
        %2018 = vmatprep.subr.bf16.mxu0 0
        %2019 = vmatpush1.bf16.msra.mxu0 0
        %2020 = vmatprep.subr.bf16.mxu0 0
        %2021 = vmatpush1.bf16.msra.mxu0 0
        %2022 = vmatprep.subr.bf16.mxu0 0
        %2023 = vmatpush1.bf16.msra.mxu0 0
        %2024 = vmatprep.subr.bf16.mxu0 0
        %2025 = vmatpush1.bf16.msra.mxu0 0
        %2026 = vmatprep.subr.bf16.mxu0 0
        %2027 = vmatpush1.bf16.msra.mxu0 0
        %2028 = vmatprep.subr.bf16.mxu0 0
        %2029 = vmatpush1.bf16.msra.mxu0 0
        %2030 = vmatprep.subr.bf16.mxu0 0
        %2031 = vmatpush1.bf16.msra.mxu0 0
        %2032 = vmatprep.mubr.bf16.mxu0 0
        %2033 = vmatmul.mubr.bf16.gmra.mrb[0].mxu0 %v1995
        %v2034 = vpop.f32.mrb[0].mxu0
        %v2035 = vadd.f32 0.0, %v2034
        %v2036 = vpop.f32.mrb[0].mxu0
        %v2037 = vpop.f32.mrb[0].mxu0
        %v2038 = vpop.f32.mrb[0].mxu0
        %2039 = vdwg.mxu0
        %v2041 = vsel %vm1492, %v1847, 0
        %v2044 = vsel %vm1858, %v1853, 0
        %2046 = vmatprep.subr.bf16.mxu0 0
        %2047 = vmatpush1.bf16.msra.mxu0 %v2044
        %2048 = vmatprep.subr.bf16.mxu0 0
        %2049 = vmatpush1.bf16.msra.mxu0 0
        %2050 = vmatprep.subr.bf16.mxu0 0
        %2051 = vmatpush1.bf16.msra.mxu0 0
        %2052 = vmatprep.subr.bf16.mxu0 0
        %2053 = vmatpush1.bf16.msra.mxu0 0
        %2054 = vmatprep.subr.bf16.mxu0 0
        %2055 = vmatpush1.bf16.msra.mxu0 0
        %2056 = vmatprep.subr.bf16.mxu0 0
        %2057 = vmatpush1.bf16.msra.mxu0 0
        %2058 = vmatprep.subr.bf16.mxu0 0
        %2059 = vmatpush1.bf16.msra.mxu0 0
        %2060 = vmatprep.subr.bf16.mxu0 0
        %2061 = vmatpush1.bf16.msra.mxu0 0
        %2062 = vmatprep.subr.bf16.mxu0 0
        %2063 = vmatpush1.bf16.msra.mxu0 0
        %2064 = vmatprep.subr.bf16.mxu0 0
        %2065 = vmatpush1.bf16.msra.mxu0 0
        %2066 = vmatprep.subr.bf16.mxu0 0
        %2067 = vmatpush1.bf16.msra.mxu0 0
        %2068 = vmatprep.subr.bf16.mxu0 0
        %2069 = vmatpush1.bf16.msra.mxu0 0
        %2070 = vmatprep.subr.bf16.mxu0 0
        %2071 = vmatpush1.bf16.msra.mxu0 0
        %2072 = vmatprep.subr.bf16.mxu0 0
        %2073 = vmatpush1.bf16.msra.mxu0 0
        %2074 = vmatprep.subr.bf16.mxu0 0
        %2075 = vmatpush1.bf16.msra.mxu0 0
        %2076 = vmatprep.subr.bf16.mxu0 0
        %2077 = vmatpush1.bf16.msra.mxu0 0
        %2078 = vmatprep.mubr.bf16.mxu0 0
        %2079 = vmatmul.mubr.bf16.gmra.mrb[0].mxu0 %v2041
        %v2080 = vpop.f32.mrb[0].mxu0
        %v2081 = vadd.f32 0.0, %v2080
        %v2082 = vpop.f32.mrb[0].mxu0
        %v2083 = vpop.f32.mrb[0].mxu0
        %v2084 = vpop.f32.mrb[0].mxu0
        %2085 = vdwg.mxu0
        %v2087 = vsel %vm1492, %v1848, 0
        %v2090 = vsel %vm1858, %v1854, 0
        %2092 = vmatprep.subr.bf16.mxu0 0
        %2093 = vmatpush1.bf16.msra.mxu0 %v2090
        %2094 = vmatprep.subr.bf16.mxu0 0
        %2095 = vmatpush1.bf16.msra.mxu0 0
        %2096 = vmatprep.subr.bf16.mxu0 0
        %2097 = vmatpush1.bf16.msra.mxu0 0
        %2098 = vmatprep.subr.bf16.mxu0 0
        %2099 = vmatpush1.bf16.msra.mxu0 0
        %2100 = vmatprep.subr.bf16.mxu0 0
        %2101 = vmatpush1.bf16.msra.mxu0 0
        %2102 = vmatprep.subr.bf16.mxu0 0
        %2103 = vmatpush1.bf16.msra.mxu0 0
        %2104 = vmatprep.subr.bf16.mxu0 0
        %2105 = vmatpush1.bf16.msra.mxu0 0
        %2106 = vmatprep.subr.bf16.mxu0 0
        %2107 = vmatpush1.bf16.msra.mxu0 0
        %2108 = vmatprep.subr.bf16.mxu0 0
        %2109 = vmatpush1.bf16.msra.mxu0 0
        %2110 = vmatprep.subr.bf16.mxu0 0
        %2111 = vmatpush1.bf16.msra.mxu0 0
        %2112 = vmatprep.subr.bf16.mxu0 0
        %2113 = vmatpush1.bf16.msra.mxu0 0
        %2114 = vmatprep.subr.bf16.mxu0 0
        %2115 = vmatpush1.bf16.msra.mxu0 0
        %2116 = vmatprep.subr.bf16.mxu0 0
        %2117 = vmatpush1.bf16.msra.mxu0 0
        %2118 = vmatprep.subr.bf16.mxu0 0
        %2119 = vmatpush1.bf16.msra.mxu0 0
        %2120 = vmatprep.subr.bf16.mxu0 0
        %2121 = vmatpush1.bf16.msra.mxu0 0
        %2122 = vmatprep.subr.bf16.mxu0 0
        %2123 = vmatpush1.bf16.msra.mxu0 0
        %2124 = vmatprep.mubr.bf16.mxu0 0
        %2125 = vmatmul.mubr.bf16.gmra.mrb[0].mxu0 %v2087
        %v2126 = vpop.f32.mrb[0].mxu0
        %v2127 = vadd.f32 0.0, %v2126
        %v2128 = vpop.f32.mrb[0].mxu0
        %v2129 = vpop.f32.mrb[0].mxu0
        %v2130 = vpop.f32.mrb[0].mxu0
        %2131 = vdwg.mxu0
        %v2132 = vcombine.low %v1897, %v1989
        %v2133 = vcombine.high %v1897, %v1989
        %v2135 = vunpack.c.l.s4 1983009808
        %v2136 = vunpack.c.0.s8 %v2135
        %v2137 = vlaneseq
        %v2138 = vshrl.u32 %v2137, 7
        %v2139 = vsub.s32 %v2136, %v2138
        %v2140 = vrot.slane %v2132, %v2139
        %v2142 = vunpack.c.l.s4 1983009808
        %v2143 = vunpack.c.0.s8 %v2142
        %v2144 = vlaneseq
        %v2145 = vshrl.u32 %v2144, 7
        %v2146 = vsub.s32 %v2143, %v2145
        %v2147 = vrot.slane %v2133, %v2146
        %v2148 = vcombine.low %v1943, %v2035
        %v2149 = vcombine.high %v1943, %v2035
        %v2151 = vunpack.c.l.s4 1983009808
        %v2152 = vunpack.c.0.s8 %v2151
        %v2153 = vlaneseq
        %v2154 = vshrl.u32 %v2153, 7
        %v2155 = vsub.s32 %v2152, %v2154
        %v2156 = vrot.slane %v2148, %v2155
        %v2158 = vunpack.c.l.s4 1983009808
        %v2159 = vunpack.c.0.s8 %v2158
        %v2160 = vlaneseq
        %v2161 = vshrl.u32 %v2160, 7
        %v2162 = vsub.s32 %v2159, %v2161
        %v2163 = vrot.slane %v2149, %v2162
        %v2164 = vcombine.high %v2081, 0.0
        %v2166 = vunpack.c.l.s4 1983009808
        %v2167 = vunpack.c.0.s8 %v2166
        %v2168 = vlaneseq
        %v2169 = vshrl.u32 %v2168, 7
        %v2170 = vsub.s32 %v2167, %v2169
        %v2171 = vrot.slane %v2081, %v2170
        %v2173 = vunpack.c.l.s4 1983009808
        %v2174 = vunpack.c.0.s8 %v2173
        %v2175 = vlaneseq
        %v2176 = vshrl.u32 %v2175, 7
        %v2177 = vsub.s32 %v2174, %v2176
        %v2178 = vrot.slane %v2164, %v2177
        %v2179 = vcombine.high %v2127, 0.0
        %v2181 = vunpack.c.l.s4 1983009808
        %v2182 = vunpack.c.0.s8 %v2181
        %v2183 = vlaneseq
        %v2184 = vshrl.u32 %v2183, 7
        %v2185 = vsub.s32 %v2182, %v2184
        %v2186 = vrot.slane %v2127, %v2185
        %v2188 = vunpack.c.l.s4 1983009808
        %v2189 = vunpack.c.0.s8 %v2188
        %v2190 = vlaneseq
        %v2191 = vshrl.u32 %v2190, 7
        %v2192 = vsub.s32 %v2189, %v2191
        %v2193 = vrot.slane %v2179, %v2192
        %v2194 = vcombine.low %v2140, %v2156
        %v2195 = vcombine.high %v2140, %v2156
        %v2197 = vunpack.c.l.s4 1934713408
        %v2198 = vunpack.c.0.s8 %v2197
        %v2199 = vlaneseq
        %v2200 = vshrl.u32 %v2199, 7
        %v2201 = vsub.s32 %v2198, %v2200
        %v2202 = vrot.slane %v2194, %v2201
        %v2204 = vunpack.c.l.s4 1934713408
        %v2205 = vunpack.c.0.s8 %v2204
        %v2206 = vlaneseq
        %v2207 = vshrl.u32 %v2206, 7
        %v2208 = vsub.s32 %v2205, %v2207
        %v2209 = vrot.slane %v2195, %v2208
        %v2210 = vcombine.low %v2147, %v2163
        %v2211 = vcombine.high %v2147, %v2163
        %v2213 = vunpack.c.l.s4 1934713408
        %v2214 = vunpack.c.0.s8 %v2213
        %v2215 = vlaneseq
        %v2216 = vshrl.u32 %v2215, 7
        %v2217 = vsub.s32 %v2214, %v2216
        %v2218 = vrot.slane %v2210, %v2217
        %v2220 = vunpack.c.l.s4 1934713408
        %v2221 = vunpack.c.0.s8 %v2220
        %v2222 = vlaneseq
        %v2223 = vshrl.u32 %v2222, 7
        %v2224 = vsub.s32 %v2221, %v2223
        %v2225 = vrot.slane %v2211, %v2224
        %v2226 = vcombine.low %v2171, %v2186
        %v2227 = vcombine.high %v2171, %v2186
        %v2229 = vunpack.c.l.s4 1934713408
        %v2230 = vunpack.c.0.s8 %v2229
        %v2231 = vlaneseq
        %v2232 = vshrl.u32 %v2231, 7
        %v2233 = vsub.s32 %v2230, %v2232
        %v2234 = vrot.slane %v2226, %v2233
        %v2236 = vunpack.c.l.s4 1934713408
        %v2237 = vunpack.c.0.s8 %v2236
        %v2238 = vlaneseq
        %v2239 = vshrl.u32 %v2238, 7
        %v2240 = vsub.s32 %v2237, %v2239
        %v2241 = vrot.slane %v2227, %v2240
        %v2242 = vcombine.low %v2178, %v2193
        %v2243 = vcombine.high %v2178, %v2193
        %v2245 = vunpack.c.l.s4 1934713408
        %v2246 = vunpack.c.0.s8 %v2245
        %v2247 = vlaneseq
        %v2248 = vshrl.u32 %v2247, 7
        %v2249 = vsub.s32 %v2246, %v2248
        %v2250 = vrot.slane %v2242, %v2249
        %v2252 = vunpack.c.l.s4 1934713408
        %v2253 = vunpack.c.0.s8 %v2252
        %v2254 = vlaneseq
        %v2255 = vshrl.u32 %v2254, 7
        %v2256 = vsub.s32 %v2253, %v2255
        %v2257 = vrot.slane %v2243, %v2256
        %v2258 = vcombine.low %v2202, %v2234
        %v2259 = vcombine.high %v2202, %v2234
        %v2260 = vcombine.low %v2209, %v2241
        %v2261 = vcombine.high %v2209, %v2241
        %v2262 = vcombine.low %v2218, %v2250
        %v2263 = vcombine.high %v2218, %v2250
        %v2264 = vcombine.low %v2225, %v2257
        %v2265 = vcombine.high %v2225, %v2257
        %v2266 = vcombine.low %v2258, %v2260
        %v2267 = vcombine.high %v2258, %v2260
        %v2269 = vunpack.c.l.s4 1983009808
        %v2270 = vunpack.c.0.s8 %v2269
        %v2271 = vlaneseq
        %v2272 = vshrl.u32 %v2271, 7
        %v2273 = vsub.s32 %v2270, %v2272
        %v2274 = vrot.slane %v2266, %v2273
        %v2276 = vunpack.c.l.s4 1983009808
        %v2277 = vunpack.c.0.s8 %v2276
        %v2278 = vlaneseq
        %v2279 = vshrl.u32 %v2278, 7
        %v2280 = vsub.s32 %v2277, %v2279
        %v2281 = vrot.slane %v2267, %v2280
        %v2282 = vcombine.low %v2259, %v2261
        %v2283 = vcombine.high %v2259, %v2261
        %v2285 = vunpack.c.l.s4 1983009808
        %v2286 = vunpack.c.0.s8 %v2285
        %v2287 = vlaneseq
        %v2288 = vshrl.u32 %v2287, 7
        %v2289 = vsub.s32 %v2286, %v2288
        %v2290 = vrot.slane %v2282, %v2289
        %v2292 = vunpack.c.l.s4 1983009808
        %v2293 = vunpack.c.0.s8 %v2292
        %v2294 = vlaneseq
        %v2295 = vshrl.u32 %v2294, 7
        %v2296 = vsub.s32 %v2293, %v2295
        %v2297 = vrot.slane %v2283, %v2296
        %v2298 = vcombine.low %v2262, %v2264
        %v2299 = vcombine.high %v2262, %v2264
        %v2301 = vunpack.c.l.s4 1983009808
        %v2302 = vunpack.c.0.s8 %v2301
        %v2303 = vlaneseq
        %v2304 = vshrl.u32 %v2303, 7
        %v2305 = vsub.s32 %v2302, %v2304
        %v2306 = vrot.slane %v2298, %v2305
        %v2308 = vunpack.c.l.s4 1983009808
        %v2309 = vunpack.c.0.s8 %v2308
        %v2310 = vlaneseq
        %v2311 = vshrl.u32 %v2310, 7
        %v2312 = vsub.s32 %v2309, %v2311
        %v2313 = vrot.slane %v2299, %v2312
        %v2314 = vcombine.low %v2263, %v2265
        %v2315 = vcombine.high %v2263, %v2265
        %v2317 = vunpack.c.l.s4 1983009808
        %v2318 = vunpack.c.0.s8 %v2317
        %v2319 = vlaneseq
        %v2320 = vshrl.u32 %v2319, 7
        %v2321 = vsub.s32 %v2318, %v2320
        %v2322 = vrot.slane %v2314, %v2321
        %v2324 = vunpack.c.l.s4 1983009808
        %v2325 = vunpack.c.0.s8 %v2324
        %v2326 = vlaneseq
        %v2327 = vshrl.u32 %v2326, 7
        %v2328 = vsub.s32 %v2325, %v2327
        %v2329 = vrot.slane %v2315, %v2328
        %v2330 = vcombine.low %v2274, %v2290
        %v2331 = vcombine.high %v2274, %v2290
        %v2333 = vunpack.c.l.s4 1934713408
        %v2334 = vunpack.c.0.s8 %v2333
        %v2335 = vlaneseq
        %v2336 = vshrl.u32 %v2335, 7
        %v2337 = vsub.s32 %v2334, %v2336
        %v2338 = vrot.slane %v2330, %v2337
        %v2340 = vunpack.c.l.s4 1934713408
        %v2341 = vunpack.c.0.s8 %v2340
        %v2342 = vlaneseq
        %v2343 = vshrl.u32 %v2342, 7
        %v2344 = vsub.s32 %v2341, %v2343
        %v2345 = vrot.slane %v2331, %v2344
        %v2346 = vcombine.low %v2281, %v2297
        %v2348 = vunpack.c.l.s4 1934713408
        %v2349 = vunpack.c.0.s8 %v2348
        %v2350 = vlaneseq
        %v2351 = vshrl.u32 %v2350, 7
        %v2352 = vsub.s32 %v2349, %v2351
        %v2353 = vrot.slane %v2346, %v2352
        %v2354 = vcombine.low %v2306, %v2322
        %v2355 = vcombine.high %v2306, %v2322
        %v2357 = vunpack.c.l.s4 1934713408
        %v2358 = vunpack.c.0.s8 %v2357
        %v2359 = vlaneseq
        %v2360 = vshrl.u32 %v2359, 7
        %v2361 = vsub.s32 %v2358, %v2360
        %v2362 = vrot.slane %v2354, %v2361
        %v2364 = vunpack.c.l.s4 1934713408
        %v2365 = vunpack.c.0.s8 %v2364
        %v2366 = vlaneseq
        %v2367 = vshrl.u32 %v2366, 7
        %v2368 = vsub.s32 %v2365, %v2367
        %v2369 = vrot.slane %v2355, %v2368
        %v2370 = vcombine.low %v2313, %v2329
        %v2372 = vunpack.c.l.s4 1934713408
        %v2373 = vunpack.c.0.s8 %v2372
        %v2374 = vlaneseq
        %v2375 = vshrl.u32 %v2374, 7
        %v2376 = vsub.s32 %v2373, %v2375
        %v2377 = vrot.slane %v2370, %v2376
        %v2378 = vcombine.low %v2338, %v2362
        %v2379 = vcombine.high %v2338, %v2362
        %v2380 = vcombine.low %v2345, %v2369
        %v2381 = vcombine.high %v2345, %v2369
        %v2382 = vcombine.low %v2353, %v2377
        %v2383 = vcombine.high %v2353, %v2377
        %2385 = vrot.lane.b32.xlu0 %v2379, 8
        %v2386 = vpop.permute.xlu0 %2385
        %2389 = vrot.lane.b32.xlu0 %v2380, 16
        %v2390 = vpop.permute.xlu0 %2389
        %2393 = vrot.lane.b32.xlu0 %v2381, 24
        %v2394 = vpop.permute.xlu0 %2393
        %2397 = vrot.lane.b32.xlu0 %v2382, 32
        %v2398 = vpop.permute.xlu0 %2397
        %2401 = vrot.lane.b32.xlu0 %v2383, 40
        %v2402 = vpop.permute.xlu0 %2401
        %v2404 = vsel %vm1492, %v2378, %v2386
        %vm2405 = vcmask 130048
        %v2406 = vsel %vm2405, %v2404, %v2390
        %vm2407 = vcmask 195584
        %v2408 = vsel %vm2407, %v2406, %v2394
        %vm2409 = vcmask 261120
        %v2410 = vsel %vm2409, %v2408, %v2398
        %vm2411 = vcmask 326656
        %v2412 = vsel %vm2411, %v2410, %v2402
        %v2413 = vpack.c.bf16 %v2412, %v2412
        %v2414 = vld [vmem:[%s5] sm:$0xf]
        %v2415 = vld [vmem:[%s5 + $0x4] sm:$0xf]
        %v2416 = vld [vmem:[%s5 + $0x8] sm:$0xf]
        %v2417 = vld [vmem:[%s5 + $0xc] sm:$0xf]
        %v2418 = vld [vmem:[%s5 + $0x10] sm:$0xf]
        %v2419 = vld [vmem:[%s5 + $0x14] sm:$0xf]
        %v2420 = vld [vmem:[%s6] sm:$0x1]
        %v2422 = vlaneseq
        %v2423 = vshrl.u32 %v2422, 7
        %v2424 = vsub.s32 0, %v2423
        %v2425 = vrot.slane %v2420, %v2424
        %v2433 = vunpack.c.l.b16 %v2414
        %v2434 = vunpack.c.l.b16 %v2415
        %v2435 = vunpack.c.l.b16 %v2416
        %v2436 = vunpack.c.l.b16 %v2417
        %v2437 = vunpack.c.l.b16 %v2418
        %v2438 = vunpack.c.l.b16 %v2419
        %v2439 = vpack.c.b16 %v2434, %v2433
        %v2440 = vpack.c.b16 %v2436, %v2435
        %v2441 = vpack.c.b16 %v2438, %v2437
        %v2446 = vsel %vm557, %v2413, 0
        %2448 = vmatprep.subr.bf16.mxu0 0
        %2449 = vmatpush1.bf16.msra.mxu0 %v2439
        %2450 = vmatprep.subr.bf16.mxu0 0
        %2451 = vmatpush1.bf16.msra.mxu0 %v2440
        %2452 = vmatprep.subr.bf16.mxu0 0
        %2453 = vmatpush1.bf16.msra.mxu0 %v2441
        %2454 = vmatprep.subr.bf16.mxu0 0
        %2455 = vmatpush1.bf16.msra.mxu0 0
        %2456 = vmatprep.subr.bf16.mxu0 0
        %2457 = vmatpush1.bf16.msra.mxu0 0
        %2458 = vmatprep.subr.bf16.mxu0 0
        %2459 = vmatpush1.bf16.msra.mxu0 0
        %2460 = vmatprep.subr.bf16.mxu0 0
        %2461 = vmatpush1.bf16.msra.mxu0 0
        %2462 = vmatprep.subr.bf16.mxu0 0
        %2463 = vmatpush1.bf16.msra.mxu0 0
        %2464 = vmatprep.subr.bf16.mxu0 0
        %2465 = vmatpush1.bf16.msra.mxu0 0
        %2466 = vmatprep.subr.bf16.mxu0 0
        %2467 = vmatpush1.bf16.msra.mxu0 0
        %2468 = vmatprep.subr.bf16.mxu0 0
        %2469 = vmatpush1.bf16.msra.mxu0 0
        %2470 = vmatprep.subr.bf16.mxu0 0
        %2471 = vmatpush1.bf16.msra.mxu0 0
        %2472 = vmatprep.subr.bf16.mxu0 0
        %2473 = vmatpush1.bf16.msra.mxu0 0
        %2474 = vmatprep.subr.bf16.mxu0 0
        %2475 = vmatpush1.bf16.msra.mxu0 0
        %2476 = vmatprep.subr.bf16.mxu0 0
        %2477 = vmatpush1.bf16.msra.mxu0 0
        %2478 = vmatprep.subr.bf16.mxu0 0
        %2479 = vmatpush1.bf16.msra.mxu0 0
        %2480 = vmatprep.mubr.bf16.mxu0 0
        %2481 = vmatmul.mubr.bf16.gmra.mrb[0].mxu0 %v2446
        %v2482 = vpop.f32.mrb[0].mxu0
        %v2483 = vadd.f32 %v2425, %v2482
        %v2484 = vpop.f32.mrb[0].mxu0
        %v2485 = vpop.f32.mrb[0].mxu0
        %v2486 = vpop.f32.mrb[0].mxu0
        %2487 = vdwg.mxu0
        %v2488 = vadd.f32 %v585, %v2483
        %v2489 = vld [vmem:[%s7] sm:$0x1]
        %v2490 = vld [vmem:[%s8] sm:$0x1]
        %v2491 = vsel %vm557, %v2488, 0.0
        %2492 = vadd.xlane.f32.xlu0 %v2491
        %v2493 = vpop.xlane.xlu0 %2492
        %v2494 = vmul.f32 %v2493, %v561
        %v2495 = vsub.f32 %v2488, %v2494
        %v2496 = vmul.f32 %v2495, %v2495
        %v2497 = vsel %vm557, %v2496, 0.0
        %2498 = vadd.xlane.f32.xlu0 %v2497
        %v2499 = vpop.xlane.xlu0 %2498
        %v2500 = vmul.f32 %v2499, %v561
        %v2501 = vadd.f32 %v2500, 1e-05
        %v2502 = vrsqrt.pop %v2501
        %v2503 = vmul.f32 %v2495, %v2502
        %v2505 = vlaneseq
        %v2506 = vshrl.u32 %v2505, 7
        %v2507 = vsub.s32 0, %v2506
        %v2508 = vrot.slane %v2489, %v2507
        %v2510 = vmul.f32 %v2503, %v2508
        %v2512 = vlaneseq
        %v2513 = vshrl.u32 %v2512, 7
        %v2514 = vsub.s32 0, %v2513
        %v2515 = vrot.slane %v2490, %v2514
        %v2517 = vadd.f32 %v2510, %v2515
        %v2518 = vpack.c.bf16 %v2517, %v2517
        %v2519 = vld [vmem:[%s9] sm:$0xff]
        %v2520 = vld [vmem:[%s9 + $0x8] sm:$0xff]
        %v2521 = vld [vmem:[%s9 + $0x10] sm:$0xff]
        %v2522 = vld [vmem:[%s9 + $0x18] sm:$0xff]
        %v2523 = vld [vmem:[%s9 + $0x20] sm:$0xff]
        %v2524 = vld [vmem:[%s9 + $0x28] sm:$0xff]
        %v2525 = vld [vmem:[%s10] sm:$0x3]
        %v2527 = vlaneseq
        %v2528 = vshrl.u32 %v2527, 7
        %v2529 = vsub.s32 0, %v2528
        %v2530 = vrot.slane %v2525, %v2529
        %v2531 = vlaneseq
        %v2532 = vshrl.u32 %v2531, 7
        %v2533 = vsub.s32 1, %v2532
        %v2534 = vrot.slane %v2525, %v2533
        %v2543 = vunpack.c.l.b16 %v2519
        %v2544 = vunpack.c.h.b16 %v2519
        %v2545 = vunpack.c.l.b16 %v2520
        %v2546 = vunpack.c.h.b16 %v2520
        %v2547 = vunpack.c.l.b16 %v2521
        %v2548 = vunpack.c.h.b16 %v2521
        %v2549 = vunpack.c.l.b16 %v2522
        %v2550 = vunpack.c.h.b16 %v2522
        %v2551 = vunpack.c.l.b16 %v2523
        %v2552 = vunpack.c.h.b16 %v2523
        %v2553 = vunpack.c.l.b16 %v2524
        %v2554 = vunpack.c.h.b16 %v2524
        %v2555 = vpack.c.b16 %v2545, %v2543
        %v2556 = vpack.c.b16 %v2546, %v2544
        %v2557 = vpack.c.b16 %v2549, %v2547
        %v2558 = vpack.c.b16 %v2550, %v2548
        %v2559 = vpack.c.b16 %v2553, %v2551
        %v2560 = vpack.c.b16 %v2554, %v2552
        %v2568 = vsel %vm557, %v2518, 0
        %2570 = vmatprep.subr.bf16.mxu0 %v2556
        %2571 = vmatpush1.bf16.msra.mxu0 %v2555
        %2572 = vmatprep.subr.bf16.mxu0 %v2558
        %2573 = vmatpush1.bf16.msra.mxu0 %v2557
        %2574 = vmatprep.subr.bf16.mxu0 %v2560
        %2575 = vmatpush1.bf16.msra.mxu0 %v2559
        %2576 = vmatprep.subr.bf16.mxu0 0
        %2577 = vmatpush1.bf16.msra.mxu0 0
        %2578 = vmatprep.subr.bf16.mxu0 0
        %2579 = vmatpush1.bf16.msra.mxu0 0
        %2580 = vmatprep.subr.bf16.mxu0 0
        %2581 = vmatpush1.bf16.msra.mxu0 0
        %2582 = vmatprep.subr.bf16.mxu0 0
        %2583 = vmatpush1.bf16.msra.mxu0 0
        %2584 = vmatprep.subr.bf16.mxu0 0
        %2585 = vmatpush1.bf16.msra.mxu0 0
        %2586 = vmatprep.subr.bf16.mxu0 0
        %2587 = vmatpush1.bf16.msra.mxu0 0
        %2588 = vmatprep.subr.bf16.mxu0 0
        %2589 = vmatpush1.bf16.msra.mxu0 0
        %2590 = vmatprep.subr.bf16.mxu0 0
        %2591 = vmatpush1.bf16.msra.mxu0 0
        %2592 = vmatprep.subr.bf16.mxu0 0
        %2593 = vmatpush1.bf16.msra.mxu0 0
        %2594 = vmatprep.subr.bf16.mxu0 0
        %2595 = vmatpush1.bf16.msra.mxu0 0
        %2596 = vmatprep.subr.bf16.mxu0 0
        %2597 = vmatpush1.bf16.msra.mxu0 0
        %2598 = vmatprep.subr.bf16.mxu0 0
        %2599 = vmatpush1.bf16.msra.mxu0 0
        %2600 = vmatprep.subr.bf16.mxu0 0
        %2601 = vmatpush1.bf16.msra.mxu0 0
        %2602 = vmatprep.mubr.bf16.mxu0 0
        %2603 = vmatmul.mubr.bf16.gmra.mrb[0].mxu0 %v2568
        %v2604 = vpop.f32.mrb[0].mxu0
        %v2605 = vadd.f32 %v2530, %v2604
        %v2606 = vpop.f32.mrb[0].mxu0
        %v2607 = vadd.f32 %v2534, %v2606
        %v2608 = vpop.f32.mrb[0].mxu0
        %v2609 = vpop.f32.mrb[0].mxu0
        %2610 = vdwg.mxu0
        %v2611 = vmax.f32 %v2605, 0.0
        %v2612 = vmax.f32 %v2607, 0.0
        %v2613 = vpack.c.bf16 %v2611, %v2611
        %v2614 = vpack.c.bf16 %v2612, %v2612
        %v2615 = vld [vmem:[%s11] sm:$0xf]
        %v2616 = vld [vmem:[%s11 + $0x4] sm:$0xf]
        %v2617 = vld [vmem:[%s11 + $0x8] sm:$0xf]
        %v2618 = vld [vmem:[%s11 + $0xc] sm:$0xf]
        %v2619 = vld [vmem:[%s11 + $0x10] sm:$0xf]
        %v2620 = vld [vmem:[%s11 + $0x14] sm:$0xf]
        %v2621 = vld [vmem:[%s11 + $0x18] sm:$0xf]
        %v2622 = vld [vmem:[%s11 + $0x1c] sm:$0xf]
        %v2623 = vld [vmem:[%s11 + $0x20] sm:$0xf]
        %v2624 = vld [vmem:[%s11 + $0x24] sm:$0xf]
        %v2625 = vld [vmem:[%s11 + $0x28] sm:$0xf]
        %v2626 = vld [vmem:[%s11 + $0x2c] sm:$0xf]
        %v2627 = vld [vmem:[%s11 + $0x30] sm:$0xf]
        %v2628 = vld [vmem:[%s11 + $0x34] sm:$0xf]
        %v2629 = vld [vmem:[%s11 + $0x38] sm:$0xf]
        %v2630 = vld [vmem:[%s11 + $0x3c] sm:$0xf]
        %v2631 = vld [vmem:[%s11 + $0x40] sm:$0xf]
        %v2632 = vld [vmem:[%s11 + $0x44] sm:$0xf]
        %v2633 = vld [vmem:[%s11 + $0x48] sm:$0xf]
        %v2634 = vld [vmem:[%s11 + $0x4c] sm:$0xf]
        %v2635 = vld [vmem:[%s11 + $0x50] sm:$0xf]
        %v2636 = vld [vmem:[%s11 + $0x54] sm:$0xf]
        %v2637 = vld [vmem:[%s11 + $0x58] sm:$0xf]
        %v2638 = vld [vmem:[%s11 + $0x5c] sm:$0xf]
        %v2639 = vld [vmem:[%s12] sm:$0x1]
        %v2641 = vlaneseq
        %v2642 = vshrl.u32 %v2641, 7
        %v2643 = vsub.s32 0, %v2642
        %v2644 = vrot.slane %v2639, %v2643
        %v2670 = vunpack.c.l.b16 %v2615
        %v2671 = vunpack.c.l.b16 %v2616
        %v2672 = vunpack.c.l.b16 %v2617
        %v2673 = vunpack.c.l.b16 %v2618
        %v2674 = vunpack.c.l.b16 %v2619
        %v2675 = vunpack.c.l.b16 %v2620
        %v2676 = vunpack.c.l.b16 %v2621
        %v2677 = vunpack.c.l.b16 %v2622
        %v2678 = vunpack.c.l.b16 %v2623
        %v2679 = vunpack.c.l.b16 %v2624
        %v2680 = vunpack.c.l.b16 %v2625
        %v2681 = vunpack.c.l.b16 %v2626
        %v2682 = vunpack.c.l.b16 %v2627
        %v2683 = vunpack.c.l.b16 %v2628
        %v2684 = vunpack.c.l.b16 %v2629
        %v2685 = vunpack.c.l.b16 %v2630
        %v2686 = vunpack.c.l.b16 %v2631
        %v2687 = vunpack.c.l.b16 %v2632
        %v2688 = vunpack.c.l.b16 %v2633
        %v2689 = vunpack.c.l.b16 %v2634
        %v2690 = vunpack.c.l.b16 %v2635
        %v2691 = vunpack.c.l.b16 %v2636
        %v2692 = vunpack.c.l.b16 %v2637
        %v2693 = vunpack.c.l.b16 %v2638
        %v2694 = vpack.c.b16 %v2671, %v2670
        %v2695 = vpack.c.b16 %v2673, %v2672
        %v2696 = vpack.c.b16 %v2675, %v2674
        %v2697 = vpack.c.b16 %v2677, %v2676
        %v2698 = vpack.c.b16 %v2679, %v2678
        %v2699 = vpack.c.b16 %v2681, %v2680
        %v2700 = vpack.c.b16 %v2683, %v2682
        %v2701 = vpack.c.b16 %v2685, %v2684
        %v2702 = vpack.c.b16 %v2687, %v2686
        %v2703 = vpack.c.b16 %v2689, %v2688
        %v2704 = vpack.c.b16 %v2691, %v2690
        %v2705 = vpack.c.b16 %v2693, %v2692
        %vm2718 = vcmask 523264
        %v2720 = vsel %vm2718, %v2614, 0
        %2722 = vmatprep.subr.bf16.mxu0 0
        %2723 = vmatpush1.bf16.msra.mxu0 %v2694
        %2724 = vmatprep.subr.bf16.mxu0 0
        %2725 = vmatpush1.bf16.msra.mxu0 %v2695
        %2726 = vmatprep.subr.bf16.mxu0 0
        %2727 = vmatpush1.bf16.msra.mxu0 %v2696
        %2728 = vmatprep.subr.bf16.mxu0 0
        %2729 = vmatpush1.bf16.msra.mxu0 %v2697
        %2730 = vmatprep.subr.bf16.mxu0 0
        %2731 = vmatpush1.bf16.msra.mxu0 %v2698
        %2732 = vmatprep.subr.bf16.mxu0 0
        %2733 = vmatpush1.bf16.msra.mxu0 %v2699
        %2734 = vmatprep.subr.bf16.mxu0 0
        %2735 = vmatpush1.bf16.msra.mxu0 %v2700
        %2736 = vmatprep.subr.bf16.mxu0 0
        %2737 = vmatpush1.bf16.msra.mxu0 %v2701
        %2738 = vmatprep.subr.bf16.mxu0 0
        %2739 = vmatpush1.bf16.msra.mxu0 %v2702
        %2740 = vmatprep.subr.bf16.mxu0 0
        %2741 = vmatpush1.bf16.msra.mxu0 %v2703
        %2742 = vmatprep.subr.bf16.mxu0 0
        %2743 = vmatpush1.bf16.msra.mxu0 %v2704
        %2744 = vmatprep.subr.bf16.mxu0 0
        %2745 = vmatpush1.bf16.msra.mxu0 %v2705
        %2746 = vmatprep.subr.bf16.mxu0 0
        %2747 = vmatpush1.bf16.msra.mxu0 0
        %2748 = vmatprep.subr.bf16.mxu0 0
        %2749 = vmatpush1.bf16.msra.mxu0 0
        %2750 = vmatprep.subr.bf16.mxu0 0
        %2751 = vmatpush1.bf16.msra.mxu0 0
        %2752 = vmatprep.subr.bf16.mxu0 0
        %2753 = vmatpush1.bf16.msra.mxu0 0
        %2754 = vmatprep.mubr.bf16.mxu0 %v2720
        %2755 = vmatmul.mubr.bf16.gmra.mrb[0].mxu0 %v2613
        %v2756 = vpop.f32.mrb[0].mxu0
        %v2757 = vadd.f32 %v2644, %v2756
        %v2758 = vpop.f32.mrb[0].mxu0
        %v2759 = vpop.f32.mrb[0].mxu0
        %v2760 = vpop.f32.mrb[0].mxu0
        %2761 = vdwg.mxu0
        %v2762 = vadd.f32 %v2517, %v2757
        %s2763 = scalar_lea.vmem %s2, 1
        %v2764 = vld [vmem:[%s2763] sm:$0x1]
        %s2765 = scalar_lea.vmem %s3, 1
        %v2766 = vld [vmem:[%s2765] sm:$0x1]
        %v2767 = vsel %vm557, %v2762, 0.0
        %2768 = vadd.xlane.f32.xlu0 %v2767
        %v2769 = vpop.xlane.xlu0 %2768
        %v2770 = vmul.f32 %v2769, %v561
        %v2771 = vsub.f32 %v2762, %v2770
        %v2772 = vmul.f32 %v2771, %v2771
        %v2773 = vsel %vm557, %v2772, 0.0
        %2774 = vadd.xlane.f32.xlu0 %v2773
        %v2775 = vpop.xlane.xlu0 %2774
        %v2776 = vmul.f32 %v2775, %v561
        %v2777 = vadd.f32 %v2776, 1e-05
        %v2778 = vrsqrt.pop %v2777
        %v2779 = vmul.f32 %v2771, %v2778
        %v2781 = vlaneseq
        %v2782 = vshrl.u32 %v2781, 7
        %v2783 = vsub.s32 0, %v2782
        %v2784 = vrot.slane %v2764, %v2783
        %v2786 = vmul.f32 %v2779, %v2784
        %v2788 = vlaneseq
        %v2789 = vshrl.u32 %v2788, 7
        %v2790 = vsub.s32 0, %v2789
        %v2791 = vrot.slane %v2766, %v2790
        %v2793 = vadd.f32 %v2786, %v2791
        %v2794 = vpack.c.bf16 %v2793, %v2793
        %s2795 = scalar_lea.vmem %s4, 48
        %v2796 = vld [vmem:[%s2795] sm:$0xff]
        %v2797 = vld [vmem:[%s2795 + $0x8] sm:$0xff]
        %v2798 = vld [vmem:[%s2795 + $0x10] sm:$0xff]
        %v2799 = vld [vmem:[%s2795 + $0x18] sm:$0xff]
        %v2800 = vld [vmem:[%s2795 + $0x20] sm:$0xff]
        %v2801 = vld [vmem:[%s2795 + $0x28] sm:$0xff]
        %v2808 = vunpack.c.l.b16 %v2796
        %v2809 = vunpack.c.h.b16 %v2796
        %v2810 = vunpack.c.l.b16 %v2797
        %v2811 = vunpack.c.h.b16 %v2797
        %v2812 = vunpack.c.l.b16 %v2798
        %v2813 = vunpack.c.h.b16 %v2798
        %v2814 = vunpack.c.l.b16 %v2799
        %v2815 = vunpack.c.h.b16 %v2799
        %v2816 = vunpack.c.l.b16 %v2800
        %v2817 = vunpack.c.h.b16 %v2800
        %v2818 = vunpack.c.l.b16 %v2801
        %v2819 = vunpack.c.h.b16 %v2801
        %v2820 = vpack.c.b16 %v2810, %v2808
        %v2821 = vpack.c.b16 %v2811, %v2809
        %v2822 = vpack.c.b16 %v2814, %v2812
        %v2823 = vpack.c.b16 %v2815, %v2813
        %v2824 = vpack.c.b16 %v2818, %v2816
        %v2825 = vpack.c.b16 %v2819, %v2817
        %v2833 = vsel %vm557, %v2794, 0
        %2835 = vmatprep.subr.bf16.mxu0 %v2821
        %2836 = vmatpush1.bf16.msra.mxu0 %v2820
        %2837 = vmatprep.subr.bf16.mxu0 %v2823
        %2838 = vmatpush1.bf16.msra.mxu0 %v2822
        %2839 = vmatprep.subr.bf16.mxu0 %v2825
        %2840 = vmatpush1.bf16.msra.mxu0 %v2824
        %2841 = vmatprep.subr.bf16.mxu0 0
        %2842 = vmatpush1.bf16.msra.mxu0 0
        %2843 = vmatprep.subr.bf16.mxu0 0
        %2844 = vmatpush1.bf16.msra.mxu0 0
        %2845 = vmatprep.subr.bf16.mxu0 0
        %2846 = vmatpush1.bf16.msra.mxu0 0
        %2847 = vmatprep.subr.bf16.mxu0 0
        %2848 = vmatpush1.bf16.msra.mxu0 0
        %2849 = vmatprep.subr.bf16.mxu0 0
        %2850 = vmatpush1.bf16.msra.mxu0 0
        %2851 = vmatprep.subr.bf16.mxu0 0
        %2852 = vmatpush1.bf16.msra.mxu0 0
        %2853 = vmatprep.subr.bf16.mxu0 0
        %2854 = vmatpush1.bf16.msra.mxu0 0
        %2855 = vmatprep.subr.bf16.mxu0 0
        %2856 = vmatpush1.bf16.msra.mxu0 0
        %2857 = vmatprep.subr.bf16.mxu0 0
        %2858 = vmatpush1.bf16.msra.mxu0 0
        %2859 = vmatprep.subr.bf16.mxu0 0
        %2860 = vmatpush1.bf16.msra.mxu0 0
        %2861 = vmatprep.subr.bf16.mxu0 0
        %2862 = vmatpush1.bf16.msra.mxu0 0
        %2863 = vmatprep.subr.bf16.mxu0 0
        %2864 = vmatpush1.bf16.msra.mxu0 0
        %2865 = vmatprep.subr.bf16.mxu0 0
        %2866 = vmatpush1.bf16.msra.mxu0 0
        %2867 = vmatprep.mubr.bf16.mxu0 0
        %2868 = vmatmul.mubr.bf16.gmra.mrb[0].mxu0 %v2833
        %v2869 = vpop.f32.mrb[0].mxu0
        %v2870 = vadd.f32 0.0, %v2869
        %v2871 = vpop.f32.mrb[0].mxu0
        %v2872 = vadd.f32 0.0, %v2871
        %v2873 = vpop.f32.mrb[0].mxu0
        %v2874 = vpop.f32.mrb[0].mxu0
        %2875 = vdwg.mxu0
        %2877 = vrot.lane.b32.xlu0 %v2870, 120
        %v2878 = vpop.permute.xlu0 %2877
        %2880 = vrot.lane.b32.xlu0 %v2870, 112
        %v2881 = vpop.permute.xlu0 %2880
        %2883 = vrot.lane.b32.xlu0 %v2870, 104
        %v2884 = vpop.permute.xlu0 %2883
        %2886 = vrot.lane.b32.xlu0 %v2870, 96
        %v2887 = vpop.permute.xlu0 %2886
        %2889 = vrot.lane.b32.xlu0 %v2870, 88
        %v2890 = vpop.permute.xlu0 %2889
        %v2892 = vcombine.low %v2870, %v2881
        %v2893 = vcombine.high %v2870, %v2881
        %v2895 = vunpack.c.l.s4 1983009808
        %v2896 = vunpack.c.0.s8 %v2895
        %v2897 = vlaneseq
        %v2898 = vshrl.u32 %v2897, 7
        %v2899 = vsub.s32 %v2896, %v2898
        %v2900 = vrot.slane %v2892, %v2899
        %v2902 = vunpack.c.l.s4 1983009808
        %v2903 = vunpack.c.0.s8 %v2902
        %v2904 = vlaneseq
        %v2905 = vshrl.u32 %v2904, 7
        %v2906 = vsub.s32 %v2903, %v2905
        %v2907 = vrot.slane %v2893, %v2906
        %v2908 = vcombine.low %v2878, %v2884
        %v2909 = vcombine.high %v2878, %v2884
        %v2911 = vunpack.c.l.s4 1983009808
        %v2912 = vunpack.c.0.s8 %v2911
        %v2913 = vlaneseq
        %v2914 = vshrl.u32 %v2913, 7
        %v2915 = vsub.s32 %v2912, %v2914
        %v2916 = vrot.slane %v2908, %v2915
        %v2918 = vunpack.c.l.s4 1983009808
        %v2919 = vunpack.c.0.s8 %v2918
        %v2920 = vlaneseq
        %v2921 = vshrl.u32 %v2920, 7
        %v2922 = vsub.s32 %v2919, %v2921
        %v2923 = vrot.slane %v2909, %v2922
        %v2924 = vcombine.high %v2887, 0.0
        %v2926 = vunpack.c.l.s4 1983009808
        %v2927 = vunpack.c.0.s8 %v2926
        %v2928 = vlaneseq
        %v2929 = vshrl.u32 %v2928, 7
        %v2930 = vsub.s32 %v2927, %v2929
        %v2931 = vrot.slane %v2887, %v2930
        %v2933 = vunpack.c.l.s4 1983009808
        %v2934 = vunpack.c.0.s8 %v2933
        %v2935 = vlaneseq
        %v2936 = vshrl.u32 %v2935, 7
        %v2937 = vsub.s32 %v2934, %v2936
        %v2938 = vrot.slane %v2924, %v2937
        %v2939 = vcombine.high %v2890, 0.0
        %v2941 = vunpack.c.l.s4 1983009808
        %v2942 = vunpack.c.0.s8 %v2941
        %v2943 = vlaneseq
        %v2944 = vshrl.u32 %v2943, 7
        %v2945 = vsub.s32 %v2942, %v2944
        %v2946 = vrot.slane %v2890, %v2945
        %v2948 = vunpack.c.l.s4 1983009808
        %v2949 = vunpack.c.0.s8 %v2948
        %v2950 = vlaneseq
        %v2951 = vshrl.u32 %v2950, 7
        %v2952 = vsub.s32 %v2949, %v2951
        %v2953 = vrot.slane %v2939, %v2952
        %v2954 = vcombine.low %v2900, %v2916
        %v2955 = vcombine.high %v2900, %v2916
        %v2957 = vunpack.c.l.s4 1934713408
        %v2958 = vunpack.c.0.s8 %v2957
        %v2959 = vlaneseq
        %v2960 = vshrl.u32 %v2959, 7
        %v2961 = vsub.s32 %v2958, %v2960
        %v2962 = vrot.slane %v2954, %v2961
        %v2964 = vunpack.c.l.s4 1934713408
        %v2965 = vunpack.c.0.s8 %v2964
        %v2966 = vlaneseq
        %v2967 = vshrl.u32 %v2966, 7
        %v2968 = vsub.s32 %v2965, %v2967
        %v2969 = vrot.slane %v2955, %v2968
        %v2970 = vcombine.low %v2907, %v2923
        %v2971 = vcombine.high %v2907, %v2923
        %v2973 = vunpack.c.l.s4 1934713408
        %v2974 = vunpack.c.0.s8 %v2973
        %v2975 = vlaneseq
        %v2976 = vshrl.u32 %v2975, 7
        %v2977 = vsub.s32 %v2974, %v2976
        %v2978 = vrot.slane %v2970, %v2977
        %v2980 = vunpack.c.l.s4 1934713408
        %v2981 = vunpack.c.0.s8 %v2980
        %v2982 = vlaneseq
        %v2983 = vshrl.u32 %v2982, 7
        %v2984 = vsub.s32 %v2981, %v2983
        %v2985 = vrot.slane %v2971, %v2984
        %v2986 = vcombine.low %v2931, %v2946
        %v2987 = vcombine.high %v2931, %v2946
        %v2989 = vunpack.c.l.s4 1934713408
        %v2990 = vunpack.c.0.s8 %v2989
        %v2991 = vlaneseq
        %v2992 = vshrl.u32 %v2991, 7
        %v2993 = vsub.s32 %v2990, %v2992
        %v2994 = vrot.slane %v2986, %v2993
        %v2996 = vunpack.c.l.s4 1934713408
        %v2997 = vunpack.c.0.s8 %v2996
        %v2998 = vlaneseq
        %v2999 = vshrl.u32 %v2998, 7
        %v3000 = vsub.s32 %v2997, %v2999
        %v3001 = vrot.slane %v2987, %v3000
        %v3002 = vcombine.low %v2938, %v2953
        %v3003 = vcombine.high %v2938, %v2953
        %v3005 = vunpack.c.l.s4 1934713408
        %v3006 = vunpack.c.0.s8 %v3005
        %v3007 = vlaneseq
        %v3008 = vshrl.u32 %v3007, 7
        %v3009 = vsub.s32 %v3006, %v3008
        %v3010 = vrot.slane %v3002, %v3009
        %v3012 = vunpack.c.l.s4 1934713408
        %v3013 = vunpack.c.0.s8 %v3012
        %v3014 = vlaneseq
        %v3015 = vshrl.u32 %v3014, 7
        %v3016 = vsub.s32 %v3013, %v3015
        %v3017 = vrot.slane %v3003, %v3016
        %v3018 = vcombine.low %v2962, %v2994
        %v3019 = vcombine.high %v2962, %v2994
        %v3020 = vcombine.low %v2969, %v3001
        %v3021 = vcombine.high %v2969, %v3001
        %v3022 = vcombine.low %v2978, %v3010
        %v3023 = vcombine.high %v2978, %v3010
        %v3024 = vcombine.low %v2985, %v3017
        %v3025 = vcombine.high %v2985, %v3017
        %v3026 = vcombine.low %v3018, %v3020
        %v3027 = vcombine.high %v3018, %v3020
        %v3029 = vunpack.c.l.s4 1983009808
        %v3030 = vunpack.c.0.s8 %v3029
        %v3031 = vlaneseq
        %v3032 = vshrl.u32 %v3031, 7
        %v3033 = vsub.s32 %v3030, %v3032
        %v3034 = vrot.slane %v3026, %v3033
        %v3036 = vunpack.c.l.s4 1983009808
        %v3037 = vunpack.c.0.s8 %v3036
        %v3038 = vlaneseq
        %v3039 = vshrl.u32 %v3038, 7
        %v3040 = vsub.s32 %v3037, %v3039
        %v3041 = vrot.slane %v3027, %v3040
        %v3042 = vcombine.low %v3019, %v3021
        %v3043 = vcombine.high %v3019, %v3021
        %v3045 = vunpack.c.l.s4 1983009808
        %v3046 = vunpack.c.0.s8 %v3045
        %v3047 = vlaneseq
        %v3048 = vshrl.u32 %v3047, 7
        %v3049 = vsub.s32 %v3046, %v3048
        %v3050 = vrot.slane %v3042, %v3049
        %v3052 = vunpack.c.l.s4 1983009808
        %v3053 = vunpack.c.0.s8 %v3052
        %v3054 = vlaneseq
        %v3055 = vshrl.u32 %v3054, 7
        %v3056 = vsub.s32 %v3053, %v3055
        %v3057 = vrot.slane %v3043, %v3056
        %v3058 = vcombine.low %v3022, %v3024
        %v3059 = vcombine.high %v3022, %v3024
        %v3061 = vunpack.c.l.s4 1983009808
        %v3062 = vunpack.c.0.s8 %v3061
        %v3063 = vlaneseq
        %v3064 = vshrl.u32 %v3063, 7
        %v3065 = vsub.s32 %v3062, %v3064
        %v3066 = vrot.slane %v3058, %v3065
        %v3068 = vunpack.c.l.s4 1983009808
        %v3069 = vunpack.c.0.s8 %v3068
        %v3070 = vlaneseq
        %v3071 = vshrl.u32 %v3070, 7
        %v3072 = vsub.s32 %v3069, %v3071
        %v3073 = vrot.slane %v3059, %v3072
        %v3074 = vcombine.low %v3023, %v3025
        %v3075 = vcombine.high %v3023, %v3025
        %v3077 = vunpack.c.l.s4 1983009808
        %v3078 = vunpack.c.0.s8 %v3077
        %v3079 = vlaneseq
        %v3080 = vshrl.u32 %v3079, 7
        %v3081 = vsub.s32 %v3078, %v3080
        %v3082 = vrot.slane %v3074, %v3081
        %v3084 = vunpack.c.l.s4 1983009808
        %v3085 = vunpack.c.0.s8 %v3084
        %v3086 = vlaneseq
        %v3087 = vshrl.u32 %v3086, 7
        %v3088 = vsub.s32 %v3085, %v3087
        %v3089 = vrot.slane %v3075, %v3088
        %v3090 = vcombine.low %v3034, %v3050
        %v3091 = vcombine.high %v3034, %v3050
        %v3093 = vunpack.c.l.s4 1934713408
        %v3094 = vunpack.c.0.s8 %v3093
        %v3095 = vlaneseq
        %v3096 = vshrl.u32 %v3095, 7
        %v3097 = vsub.s32 %v3094, %v3096
        %v3098 = vrot.slane %v3090, %v3097
        %v3100 = vunpack.c.l.s4 1934713408
        %v3101 = vunpack.c.0.s8 %v3100
        %v3102 = vlaneseq
        %v3103 = vshrl.u32 %v3102, 7
        %v3104 = vsub.s32 %v3101, %v3103
        %v3105 = vrot.slane %v3091, %v3104
        %v3106 = vcombine.low %v3041, %v3057
        %v3108 = vunpack.c.l.s4 1934713408
        %v3109 = vunpack.c.0.s8 %v3108
        %v3110 = vlaneseq
        %v3111 = vshrl.u32 %v3110, 7
        %v3112 = vsub.s32 %v3109, %v3111
        %v3113 = vrot.slane %v3106, %v3112
        %v3114 = vcombine.low %v3066, %v3082
        %v3115 = vcombine.high %v3066, %v3082
        %v3117 = vunpack.c.l.s4 1934713408
        %v3118 = vunpack.c.0.s8 %v3117
        %v3119 = vlaneseq
        %v3120 = vshrl.u32 %v3119, 7
        %v3121 = vsub.s32 %v3118, %v3120
        %v3122 = vrot.slane %v3114, %v3121
        %v3124 = vunpack.c.l.s4 1934713408
        %v3125 = vunpack.c.0.s8 %v3124
        %v3126 = vlaneseq
        %v3127 = vshrl.u32 %v3126, 7
        %v3128 = vsub.s32 %v3125, %v3127
        %v3129 = vrot.slane %v3115, %v3128
        %v3130 = vcombine.low %v3073, %v3089
        %v3132 = vunpack.c.l.s4 1934713408
        %v3133 = vunpack.c.0.s8 %v3132
        %v3134 = vlaneseq
        %v3135 = vshrl.u32 %v3134, 7
        %v3136 = vsub.s32 %v3133, %v3135
        %v3137 = vrot.slane %v3130, %v3136
        %v3138 = vcombine.low %v3098, %v3122
        %v3139 = vcombine.high %v3098, %v3122
        %v3140 = vcombine.low %v3105, %v3129
        %v3141 = vcombine.high %v3105, %v3129
        %v3142 = vcombine.low %v3113, %v3137
        %v3143 = vcombine.high %v3113, %v3137
        %3144 = vrot.lane.b32.xlu0 %v2870, 80
        %v3145 = vpop.permute.xlu0 %3144
        %3146 = vrot.lane.b32.xlu0 %v2878, 80
        %v3147 = vpop.permute.xlu0 %3146
        %3148 = vrot.lane.b32.xlu0 %v2881, 80
        %v3149 = vpop.permute.xlu0 %3148
        %3150 = vrot.lane.b32.xlu0 %v2884, 80
        %v3151 = vpop.permute.xlu0 %3150
        %3152 = vrot.lane.b32.xlu0 %v2887, 80
        %v3153 = vpop.permute.xlu0 %3152
        %3154 = vrot.lane.b32.xlu0 %v2890, 80
        %v3155 = vpop.permute.xlu0 %3154
        %v3162 = vcombine.low %v3145, %v3149
        %v3163 = vcombine.high %v3145, %v3149
        %v3165 = vunpack.c.l.s4 1983009808
        %v3166 = vunpack.c.0.s8 %v3165
        %v3167 = vlaneseq
        %v3168 = vshrl.u32 %v3167, 7
        %v3169 = vsub.s32 %v3166, %v3168
        %v3170 = vrot.slane %v3162, %v3169
        %v3172 = vunpack.c.l.s4 1983009808
        %v3173 = vunpack.c.0.s8 %v3172
        %v3174 = vlaneseq
        %v3175 = vshrl.u32 %v3174, 7
        %v3176 = vsub.s32 %v3173, %v3175
        %v3177 = vrot.slane %v3163, %v3176
        %v3178 = vcombine.low %v3147, %v3151
        %v3179 = vcombine.high %v3147, %v3151
        %v3181 = vunpack.c.l.s4 1983009808
        %v3182 = vunpack.c.0.s8 %v3181
        %v3183 = vlaneseq
        %v3184 = vshrl.u32 %v3183, 7
        %v3185 = vsub.s32 %v3182, %v3184
        %v3186 = vrot.slane %v3178, %v3185
        %v3188 = vunpack.c.l.s4 1983009808
        %v3189 = vunpack.c.0.s8 %v3188
        %v3190 = vlaneseq
        %v3191 = vshrl.u32 %v3190, 7
        %v3192 = vsub.s32 %v3189, %v3191
        %v3193 = vrot.slane %v3179, %v3192
        %v3194 = vcombine.high %v3153, 0.0
        %v3196 = vunpack.c.l.s4 1983009808
        %v3197 = vunpack.c.0.s8 %v3196
        %v3198 = vlaneseq
        %v3199 = vshrl.u32 %v3198, 7
        %v3200 = vsub.s32 %v3197, %v3199
        %v3201 = vrot.slane %v3153, %v3200
        %v3203 = vunpack.c.l.s4 1983009808
        %v3204 = vunpack.c.0.s8 %v3203
        %v3205 = vlaneseq
        %v3206 = vshrl.u32 %v3205, 7
        %v3207 = vsub.s32 %v3204, %v3206
        %v3208 = vrot.slane %v3194, %v3207
        %v3209 = vcombine.high %v3155, 0.0
        %v3211 = vunpack.c.l.s4 1983009808
        %v3212 = vunpack.c.0.s8 %v3211
        %v3213 = vlaneseq
        %v3214 = vshrl.u32 %v3213, 7
        %v3215 = vsub.s32 %v3212, %v3214
        %v3216 = vrot.slane %v3155, %v3215
        %v3218 = vunpack.c.l.s4 1983009808
        %v3219 = vunpack.c.0.s8 %v3218
        %v3220 = vlaneseq
        %v3221 = vshrl.u32 %v3220, 7
        %v3222 = vsub.s32 %v3219, %v3221
        %v3223 = vrot.slane %v3209, %v3222
        %v3224 = vcombine.low %v3170, %v3186
        %v3225 = vcombine.high %v3170, %v3186
        %v3227 = vunpack.c.l.s4 1934713408
        %v3228 = vunpack.c.0.s8 %v3227
        %v3229 = vlaneseq
        %v3230 = vshrl.u32 %v3229, 7
        %v3231 = vsub.s32 %v3228, %v3230
        %v3232 = vrot.slane %v3224, %v3231
        %v3234 = vunpack.c.l.s4 1934713408
        %v3235 = vunpack.c.0.s8 %v3234
        %v3236 = vlaneseq
        %v3237 = vshrl.u32 %v3236, 7
        %v3238 = vsub.s32 %v3235, %v3237
        %v3239 = vrot.slane %v3225, %v3238
        %v3240 = vcombine.low %v3177, %v3193
        %v3241 = vcombine.high %v3177, %v3193
        %v3243 = vunpack.c.l.s4 1934713408
        %v3244 = vunpack.c.0.s8 %v3243
        %v3245 = vlaneseq
        %v3246 = vshrl.u32 %v3245, 7
        %v3247 = vsub.s32 %v3244, %v3246
        %v3248 = vrot.slane %v3240, %v3247
        %v3250 = vunpack.c.l.s4 1934713408
        %v3251 = vunpack.c.0.s8 %v3250
        %v3252 = vlaneseq
        %v3253 = vshrl.u32 %v3252, 7
        %v3254 = vsub.s32 %v3251, %v3253
        %v3255 = vrot.slane %v3241, %v3254
        %v3256 = vcombine.low %v3201, %v3216
        %v3257 = vcombine.high %v3201, %v3216
        %v3259 = vunpack.c.l.s4 1934713408
        %v3260 = vunpack.c.0.s8 %v3259
        %v3261 = vlaneseq
        %v3262 = vshrl.u32 %v3261, 7
        %v3263 = vsub.s32 %v3260, %v3262
        %v3264 = vrot.slane %v3256, %v3263
        %v3266 = vunpack.c.l.s4 1934713408
        %v3267 = vunpack.c.0.s8 %v3266
        %v3268 = vlaneseq
        %v3269 = vshrl.u32 %v3268, 7
        %v3270 = vsub.s32 %v3267, %v3269
        %v3271 = vrot.slane %v3257, %v3270
        %v3272 = vcombine.low %v3208, %v3223
        %v3273 = vcombine.high %v3208, %v3223
        %v3275 = vunpack.c.l.s4 1934713408
        %v3276 = vunpack.c.0.s8 %v3275
        %v3277 = vlaneseq
        %v3278 = vshrl.u32 %v3277, 7
        %v3279 = vsub.s32 %v3276, %v3278
        %v3280 = vrot.slane %v3272, %v3279
        %v3282 = vunpack.c.l.s4 1934713408
        %v3283 = vunpack.c.0.s8 %v3282
        %v3284 = vlaneseq
        %v3285 = vshrl.u32 %v3284, 7
        %v3286 = vsub.s32 %v3283, %v3285
        %v3287 = vrot.slane %v3273, %v3286
        %v3288 = vcombine.low %v3232, %v3264
        %v3289 = vcombine.high %v3232, %v3264
        %v3290 = vcombine.low %v3239, %v3271
        %v3291 = vcombine.high %v3239, %v3271
        %v3292 = vcombine.low %v3248, %v3280
        %v3293 = vcombine.high %v3248, %v3280
        %v3294 = vcombine.low %v3255, %v3287
        %v3295 = vcombine.high %v3255, %v3287
        %v3296 = vcombine.low %v3288, %v3290
        %v3297 = vcombine.high %v3288, %v3290
        %v3299 = vunpack.c.l.s4 1983009808
        %v3300 = vunpack.c.0.s8 %v3299
        %v3301 = vlaneseq
        %v3302 = vshrl.u32 %v3301, 7
        %v3303 = vsub.s32 %v3300, %v3302
        %v3304 = vrot.slane %v3296, %v3303
        %v3306 = vunpack.c.l.s4 1983009808
        %v3307 = vunpack.c.0.s8 %v3306
        %v3308 = vlaneseq
        %v3309 = vshrl.u32 %v3308, 7
        %v3310 = vsub.s32 %v3307, %v3309
        %v3311 = vrot.slane %v3297, %v3310
        %v3312 = vcombine.low %v3289, %v3291
        %v3313 = vcombine.high %v3289, %v3291
        %v3315 = vunpack.c.l.s4 1983009808
        %v3316 = vunpack.c.0.s8 %v3315
        %v3317 = vlaneseq
        %v3318 = vshrl.u32 %v3317, 7
        %v3319 = vsub.s32 %v3316, %v3318
        %v3320 = vrot.slane %v3312, %v3319
        %v3322 = vunpack.c.l.s4 1983009808
        %v3323 = vunpack.c.0.s8 %v3322
        %v3324 = vlaneseq
        %v3325 = vshrl.u32 %v3324, 7
        %v3326 = vsub.s32 %v3323, %v3325
        %v3327 = vrot.slane %v3313, %v3326
        %v3328 = vcombine.low %v3292, %v3294
        %v3329 = vcombine.high %v3292, %v3294
        %v3331 = vunpack.c.l.s4 1983009808
        %v3332 = vunpack.c.0.s8 %v3331
        %v3333 = vlaneseq
        %v3334 = vshrl.u32 %v3333, 7
        %v3335 = vsub.s32 %v3332, %v3334
        %v3336 = vrot.slane %v3328, %v3335
        %v3338 = vunpack.c.l.s4 1983009808
        %v3339 = vunpack.c.0.s8 %v3338
        %v3340 = vlaneseq
        %v3341 = vshrl.u32 %v3340, 7
        %v3342 = vsub.s32 %v3339, %v3341
        %v3343 = vrot.slane %v3329, %v3342
        %v3344 = vcombine.low %v3293, %v3295
        %v3345 = vcombine.high %v3293, %v3295
        %v3347 = vunpack.c.l.s4 1983009808
        %v3348 = vunpack.c.0.s8 %v3347
        %v3349 = vlaneseq
        %v3350 = vshrl.u32 %v3349, 7
        %v3351 = vsub.s32 %v3348, %v3350
        %v3352 = vrot.slane %v3344, %v3351
        %v3354 = vunpack.c.l.s4 1983009808
        %v3355 = vunpack.c.0.s8 %v3354
        %v3356 = vlaneseq
        %v3357 = vshrl.u32 %v3356, 7
        %v3358 = vsub.s32 %v3355, %v3357
        %v3359 = vrot.slane %v3345, %v3358
        %v3360 = vcombine.low %v3304, %v3320
        %v3361 = vcombine.high %v3304, %v3320
        %v3363 = vunpack.c.l.s4 1934713408
        %v3364 = vunpack.c.0.s8 %v3363
        %v3365 = vlaneseq
        %v3366 = vshrl.u32 %v3365, 7
        %v3367 = vsub.s32 %v3364, %v3366
        %v3368 = vrot.slane %v3360, %v3367
        %v3370 = vunpack.c.l.s4 1934713408
        %v3371 = vunpack.c.0.s8 %v3370
        %v3372 = vlaneseq
        %v3373 = vshrl.u32 %v3372, 7
        %v3374 = vsub.s32 %v3371, %v3373
        %v3375 = vrot.slane %v3361, %v3374
        %v3376 = vcombine.low %v3311, %v3327
        %v3378 = vunpack.c.l.s4 1934713408
        %v3379 = vunpack.c.0.s8 %v3378
        %v3380 = vlaneseq
        %v3381 = vshrl.u32 %v3380, 7
        %v3382 = vsub.s32 %v3379, %v3381
        %v3383 = vrot.slane %v3376, %v3382
        %v3384 = vcombine.low %v3336, %v3352
        %v3385 = vcombine.high %v3336, %v3352
        %v3387 = vunpack.c.l.s4 1934713408
        %v3388 = vunpack.c.0.s8 %v3387
        %v3389 = vlaneseq
        %v3390 = vshrl.u32 %v3389, 7
        %v3391 = vsub.s32 %v3388, %v3390
        %v3392 = vrot.slane %v3384, %v3391
        %v3394 = vunpack.c.l.s4 1934713408
        %v3395 = vunpack.c.0.s8 %v3394
        %v3396 = vlaneseq
        %v3397 = vshrl.u32 %v3396, 7
        %v3398 = vsub.s32 %v3395, %v3397
        %v3399 = vrot.slane %v3385, %v3398
        %v3400 = vcombine.low %v3343, %v3359
        %v3402 = vunpack.c.l.s4 1934713408
        %v3403 = vunpack.c.0.s8 %v3402
        %v3404 = vlaneseq
        %v3405 = vshrl.u32 %v3404, 7
        %v3406 = vsub.s32 %v3403, %v3405
        %v3407 = vrot.slane %v3400, %v3406
        %v3408 = vcombine.low %v3368, %v3392
        %v3409 = vcombine.high %v3368, %v3392
        %v3410 = vcombine.low %v3375, %v3399
        %v3411 = vcombine.high %v3375, %v3399
        %v3412 = vcombine.low %v3383, %v3407
        %v3413 = vcombine.high %v3383, %v3407
        %3415 = vrot.lane.b32.xlu0 %v2872, 96
        %v3416 = vpop.permute.xlu0 %3415
        %3417 = vrot.lane.b32.xlu0 %v2872, 88
        %v3418 = vpop.permute.xlu0 %3417
        %3419 = vrot.lane.b32.xlu0 %v2870, 32
        %v3420 = vpop.permute.xlu0 %3419
        %3421 = vrot.lane.b32.xlu0 %v2878, 32
        %v3422 = vpop.permute.xlu0 %3421
        %3423 = vrot.lane.b32.xlu0 %v2881, 32
        %v3424 = vpop.permute.xlu0 %3423
        %3425 = vrot.lane.b32.xlu0 %v2884, 32
        %v3426 = vpop.permute.xlu0 %3425
        %3427 = vrot.lane.b32.xlu0 %v3416, 32
        %v3428 = vpop.permute.xlu0 %3427
        %3429 = vrot.lane.b32.xlu0 %v3418, 32
        %v3430 = vpop.permute.xlu0 %3429
        %v3437 = vcombine.low %v3420, %v3424
        %v3438 = vcombine.high %v3420, %v3424
        %v3440 = vunpack.c.l.s4 1983009808
        %v3441 = vunpack.c.0.s8 %v3440
        %v3442 = vlaneseq
        %v3443 = vshrl.u32 %v3442, 7
        %v3444 = vsub.s32 %v3441, %v3443
        %v3445 = vrot.slane %v3437, %v3444
        %v3447 = vunpack.c.l.s4 1983009808
        %v3448 = vunpack.c.0.s8 %v3447
        %v3449 = vlaneseq
        %v3450 = vshrl.u32 %v3449, 7
        %v3451 = vsub.s32 %v3448, %v3450
        %v3452 = vrot.slane %v3438, %v3451
        %v3453 = vcombine.low %v3422, %v3426
        %v3454 = vcombine.high %v3422, %v3426
        %v3456 = vunpack.c.l.s4 1983009808
        %v3457 = vunpack.c.0.s8 %v3456
        %v3458 = vlaneseq
        %v3459 = vshrl.u32 %v3458, 7
        %v3460 = vsub.s32 %v3457, %v3459
        %v3461 = vrot.slane %v3453, %v3460
        %v3463 = vunpack.c.l.s4 1983009808
        %v3464 = vunpack.c.0.s8 %v3463
        %v3465 = vlaneseq
        %v3466 = vshrl.u32 %v3465, 7
        %v3467 = vsub.s32 %v3464, %v3466
        %v3468 = vrot.slane %v3454, %v3467
        %v3469 = vcombine.high %v3428, 0.0
        %v3471 = vunpack.c.l.s4 1983009808
        %v3472 = vunpack.c.0.s8 %v3471
        %v3473 = vlaneseq
        %v3474 = vshrl.u32 %v3473, 7
        %v3475 = vsub.s32 %v3472, %v3474
        %v3476 = vrot.slane %v3428, %v3475
        %v3478 = vunpack.c.l.s4 1983009808
        %v3479 = vunpack.c.0.s8 %v3478
        %v3480 = vlaneseq
        %v3481 = vshrl.u32 %v3480, 7
        %v3482 = vsub.s32 %v3479, %v3481
        %v3483 = vrot.slane %v3469, %v3482
        %v3484 = vcombine.high %v3430, 0.0
        %v3486 = vunpack.c.l.s4 1983009808
        %v3487 = vunpack.c.0.s8 %v3486
        %v3488 = vlaneseq
        %v3489 = vshrl.u32 %v3488, 7
        %v3490 = vsub.s32 %v3487, %v3489
        %v3491 = vrot.slane %v3430, %v3490
        %v3493 = vunpack.c.l.s4 1983009808
        %v3494 = vunpack.c.0.s8 %v3493
        %v3495 = vlaneseq
        %v3496 = vshrl.u32 %v3495, 7
        %v3497 = vsub.s32 %v3494, %v3496
        %v3498 = vrot.slane %v3484, %v3497
        %v3499 = vcombine.low %v3445, %v3461
        %v3500 = vcombine.high %v3445, %v3461
        %v3502 = vunpack.c.l.s4 1934713408
        %v3503 = vunpack.c.0.s8 %v3502
        %v3504 = vlaneseq
        %v3505 = vshrl.u32 %v3504, 7
        %v3506 = vsub.s32 %v3503, %v3505
        %v3507 = vrot.slane %v3499, %v3506
        %v3509 = vunpack.c.l.s4 1934713408
        %v3510 = vunpack.c.0.s8 %v3509
        %v3511 = vlaneseq
        %v3512 = vshrl.u32 %v3511, 7
        %v3513 = vsub.s32 %v3510, %v3512
        %v3514 = vrot.slane %v3500, %v3513
        %v3515 = vcombine.low %v3452, %v3468
        %v3516 = vcombine.high %v3452, %v3468
        %v3518 = vunpack.c.l.s4 1934713408
        %v3519 = vunpack.c.0.s8 %v3518
        %v3520 = vlaneseq
        %v3521 = vshrl.u32 %v3520, 7
        %v3522 = vsub.s32 %v3519, %v3521
        %v3523 = vrot.slane %v3515, %v3522
        %v3525 = vunpack.c.l.s4 1934713408
        %v3526 = vunpack.c.0.s8 %v3525
        %v3527 = vlaneseq
        %v3528 = vshrl.u32 %v3527, 7
        %v3529 = vsub.s32 %v3526, %v3528
        %v3530 = vrot.slane %v3516, %v3529
        %v3531 = vcombine.low %v3476, %v3491
        %v3532 = vcombine.high %v3476, %v3491
        %v3534 = vunpack.c.l.s4 1934713408
        %v3535 = vunpack.c.0.s8 %v3534
        %v3536 = vlaneseq
        %v3537 = vshrl.u32 %v3536, 7
        %v3538 = vsub.s32 %v3535, %v3537
        %v3539 = vrot.slane %v3531, %v3538
        %v3541 = vunpack.c.l.s4 1934713408
        %v3542 = vunpack.c.0.s8 %v3541
        %v3543 = vlaneseq
        %v3544 = vshrl.u32 %v3543, 7
        %v3545 = vsub.s32 %v3542, %v3544
        %v3546 = vrot.slane %v3532, %v3545
        %v3547 = vcombine.low %v3483, %v3498
        %v3548 = vcombine.high %v3483, %v3498
        %v3550 = vunpack.c.l.s4 1934713408
        %v3551 = vunpack.c.0.s8 %v3550
        %v3552 = vlaneseq
        %v3553 = vshrl.u32 %v3552, 7
        %v3554 = vsub.s32 %v3551, %v3553
        %v3555 = vrot.slane %v3547, %v3554
        %v3557 = vunpack.c.l.s4 1934713408
        %v3558 = vunpack.c.0.s8 %v3557
        %v3559 = vlaneseq
        %v3560 = vshrl.u32 %v3559, 7
        %v3561 = vsub.s32 %v3558, %v3560
        %v3562 = vrot.slane %v3548, %v3561
        %v3563 = vcombine.low %v3507, %v3539
        %v3564 = vcombine.high %v3507, %v3539
        %v3565 = vcombine.low %v3514, %v3546
        %v3566 = vcombine.high %v3514, %v3546
        %v3567 = vcombine.low %v3523, %v3555
        %v3568 = vcombine.high %v3523, %v3555
        %v3569 = vcombine.low %v3530, %v3562
        %v3570 = vcombine.high %v3530, %v3562
        %v3571 = vcombine.low %v3563, %v3565
        %v3572 = vcombine.high %v3563, %v3565
        %v3574 = vunpack.c.l.s4 1983009808
        %v3575 = vunpack.c.0.s8 %v3574
        %v3576 = vlaneseq
        %v3577 = vshrl.u32 %v3576, 7
        %v3578 = vsub.s32 %v3575, %v3577
        %v3579 = vrot.slane %v3571, %v3578
        %v3581 = vunpack.c.l.s4 1983009808
        %v3582 = vunpack.c.0.s8 %v3581
        %v3583 = vlaneseq
        %v3584 = vshrl.u32 %v3583, 7
        %v3585 = vsub.s32 %v3582, %v3584
        %v3586 = vrot.slane %v3572, %v3585
        %v3587 = vcombine.low %v3564, %v3566
        %v3588 = vcombine.high %v3564, %v3566
        %v3590 = vunpack.c.l.s4 1983009808
        %v3591 = vunpack.c.0.s8 %v3590
        %v3592 = vlaneseq
        %v3593 = vshrl.u32 %v3592, 7
        %v3594 = vsub.s32 %v3591, %v3593
        %v3595 = vrot.slane %v3587, %v3594
        %v3597 = vunpack.c.l.s4 1983009808
        %v3598 = vunpack.c.0.s8 %v3597
        %v3599 = vlaneseq
        %v3600 = vshrl.u32 %v3599, 7
        %v3601 = vsub.s32 %v3598, %v3600
        %v3602 = vrot.slane %v3588, %v3601
        %v3603 = vcombine.low %v3567, %v3569
        %v3604 = vcombine.high %v3567, %v3569
        %v3606 = vunpack.c.l.s4 1983009808
        %v3607 = vunpack.c.0.s8 %v3606
        %v3608 = vlaneseq
        %v3609 = vshrl.u32 %v3608, 7
        %v3610 = vsub.s32 %v3607, %v3609
        %v3611 = vrot.slane %v3603, %v3610
        %v3613 = vunpack.c.l.s4 1983009808
        %v3614 = vunpack.c.0.s8 %v3613
        %v3615 = vlaneseq
        %v3616 = vshrl.u32 %v3615, 7
        %v3617 = vsub.s32 %v3614, %v3616
        %v3618 = vrot.slane %v3604, %v3617
        %v3619 = vcombine.low %v3568, %v3570
        %v3620 = vcombine.high %v3568, %v3570
        %v3622 = vunpack.c.l.s4 1983009808
        %v3623 = vunpack.c.0.s8 %v3622
        %v3624 = vlaneseq
        %v3625 = vshrl.u32 %v3624, 7
        %v3626 = vsub.s32 %v3623, %v3625
        %v3627 = vrot.slane %v3619, %v3626
        %v3629 = vunpack.c.l.s4 1983009808
        %v3630 = vunpack.c.0.s8 %v3629
        %v3631 = vlaneseq
        %v3632 = vshrl.u32 %v3631, 7
        %v3633 = vsub.s32 %v3630, %v3632
        %v3634 = vrot.slane %v3620, %v3633
        %v3635 = vcombine.low %v3579, %v3595
        %v3636 = vcombine.high %v3579, %v3595
        %v3638 = vunpack.c.l.s4 1934713408
        %v3639 = vunpack.c.0.s8 %v3638
        %v3640 = vlaneseq
        %v3641 = vshrl.u32 %v3640, 7
        %v3642 = vsub.s32 %v3639, %v3641
        %v3643 = vrot.slane %v3635, %v3642
        %v3645 = vunpack.c.l.s4 1934713408
        %v3646 = vunpack.c.0.s8 %v3645
        %v3647 = vlaneseq
        %v3648 = vshrl.u32 %v3647, 7
        %v3649 = vsub.s32 %v3646, %v3648
        %v3650 = vrot.slane %v3636, %v3649
        %v3651 = vcombine.low %v3586, %v3602
        %v3653 = vunpack.c.l.s4 1934713408
        %v3654 = vunpack.c.0.s8 %v3653
        %v3655 = vlaneseq
        %v3656 = vshrl.u32 %v3655, 7
        %v3657 = vsub.s32 %v3654, %v3656
        %v3658 = vrot.slane %v3651, %v3657
        %v3659 = vcombine.low %v3611, %v3627
        %v3660 = vcombine.high %v3611, %v3627
        %v3662 = vunpack.c.l.s4 1934713408
        %v3663 = vunpack.c.0.s8 %v3662
        %v3664 = vlaneseq
        %v3665 = vshrl.u32 %v3664, 7
        %v3666 = vsub.s32 %v3663, %v3665
        %v3667 = vrot.slane %v3659, %v3666
        %v3669 = vunpack.c.l.s4 1934713408
        %v3670 = vunpack.c.0.s8 %v3669
        %v3671 = vlaneseq
        %v3672 = vshrl.u32 %v3671, 7
        %v3673 = vsub.s32 %v3670, %v3672
        %v3674 = vrot.slane %v3660, %v3673
        %v3675 = vcombine.low %v3618, %v3634
        %v3677 = vunpack.c.l.s4 1934713408
        %v3678 = vunpack.c.0.s8 %v3677
        %v3679 = vlaneseq
        %v3680 = vshrl.u32 %v3679, 7
        %v3681 = vsub.s32 %v3678, %v3680
        %v3682 = vrot.slane %v3675, %v3681
        %v3683 = vcombine.low %v3643, %v3667
        %v3684 = vcombine.high %v3643, %v3667
        %v3685 = vcombine.low %v3650, %v3674
        %v3686 = vcombine.high %v3650, %v3674
        %v3687 = vcombine.low %v3658, %v3682
        %v3688 = vcombine.high %v3658, %v3682
        %v3689 = vpack.c.bf16 %v3138, %v3138
        %v3690 = vpack.c.bf16 %v3139, %v3139
        %v3691 = vpack.c.bf16 %v3140, %v3140
        %v3692 = vpack.c.bf16 %v3141, %v3141
        %v3693 = vpack.c.bf16 %v3142, %v3142
        %v3694 = vpack.c.bf16 %v3143, %v3143
        %v3695 = vpack.c.bf16 %v3408, %v3408
        %v3696 = vpack.c.bf16 %v3409, %v3409
        %v3697 = vpack.c.bf16 %v3410, %v3410
        %v3698 = vpack.c.bf16 %v3411, %v3411
        %v3699 = vpack.c.bf16 %v3412, %v3412
        %v3700 = vpack.c.bf16 %v3413, %v3413
        %v3702 = vsel %vm1492, %v3689, 0
        %v3705 = vsel %vm1492, %v3695, 0
        %3707 = vmatprep.subr.bf16.mxu0 0
        %3708 = vmatpush1.bf16.xpose.msra.mxu0 %v3705
        %3709 = vmatprep.subr.bf16.mxu0 0
        %3710 = vmatpush1.bf16.xpose.msra.mxu0 0
        %3711 = vmatprep.subr.bf16.mxu0 0
        %3712 = vmatpush1.bf16.xpose.msra.mxu0 0
        %3713 = vmatprep.subr.bf16.mxu0 0
        %3714 = vmatpush1.bf16.xpose.msra.mxu0 0
        %3715 = vmatprep.subr.bf16.mxu0 0
        %3716 = vmatpush1.bf16.xpose.msra.mxu0 0
        %3717 = vmatprep.subr.bf16.mxu0 0
        %3718 = vmatpush1.bf16.xpose.msra.mxu0 0
        %3719 = vmatprep.subr.bf16.mxu0 0
        %3720 = vmatpush1.bf16.xpose.msra.mxu0 0
        %3721 = vmatprep.subr.bf16.mxu0 0
        %3722 = vmatpush1.bf16.xpose.msra.mxu0 0
        %3723 = vmatprep.subr.bf16.mxu0 0
        %3724 = vmatpush1.bf16.xpose.msra.mxu0 0
        %3725 = vmatprep.subr.bf16.mxu0 0
        %3726 = vmatpush1.bf16.xpose.msra.mxu0 0
        %3727 = vmatprep.subr.bf16.mxu0 0
        %3728 = vmatpush1.bf16.xpose.msra.mxu0 0
        %3729 = vmatprep.subr.bf16.mxu0 0
        %3730 = vmatpush1.bf16.xpose.msra.mxu0 0
        %3731 = vmatprep.subr.bf16.mxu0 0
        %3732 = vmatpush1.bf16.xpose.msra.mxu0 0
        %3733 = vmatprep.subr.bf16.mxu0 0
        %3734 = vmatpush1.bf16.xpose.msra.mxu0 0
        %3735 = vmatprep.subr.bf16.mxu0 0
        %3736 = vmatpush1.bf16.xpose.msra.mxu0 0
        %3737 = vmatprep.subr.bf16.mxu0 0
        %3738 = vmatpush1.bf16.xpose.msra.mxu0 0
        %3739 = vmatprep.mubr.bf16.mxu0 0
        %3740 = vmatmul.mubr.bf16.gmra.mrb[0].mxu0 %v3702
        %v3741 = vpop.f32.mrb[0].mxu0
        %v3742 = vadd.f32 0.0, %v3741
        %v3743 = vpop.f32.mrb[0].mxu0
        %v3744 = vpop.f32.mrb[0].mxu0
        %v3745 = vpop.f32.mrb[0].mxu0
        %3746 = vdwg.mxu0
        %v3748 = vsel %vm1492, %v3690, 0
        %v3751 = vsel %vm1492, %v3696, 0
        %3753 = vmatprep.subr.bf16.mxu0 0
        %3754 = vmatpush1.bf16.xpose.msra.mxu0 %v3751
        %3755 = vmatprep.subr.bf16.mxu0 0
        %3756 = vmatpush1.bf16.xpose.msra.mxu0 0
        %3757 = vmatprep.subr.bf16.mxu0 0
        %3758 = vmatpush1.bf16.xpose.msra.mxu0 0
        %3759 = vmatprep.subr.bf16.mxu0 0
        %3760 = vmatpush1.bf16.xpose.msra.mxu0 0
        %3761 = vmatprep.subr.bf16.mxu0 0
        %3762 = vmatpush1.bf16.xpose.msra.mxu0 0
        %3763 = vmatprep.subr.bf16.mxu0 0
        %3764 = vmatpush1.bf16.xpose.msra.mxu0 0
        %3765 = vmatprep.subr.bf16.mxu0 0
        %3766 = vmatpush1.bf16.xpose.msra.mxu0 0
        %3767 = vmatprep.subr.bf16.mxu0 0
        %3768 = vmatpush1.bf16.xpose.msra.mxu0 0
        %3769 = vmatprep.subr.bf16.mxu0 0
        %3770 = vmatpush1.bf16.xpose.msra.mxu0 0
        %3771 = vmatprep.subr.bf16.mxu0 0
        %3772 = vmatpush1.bf16.xpose.msra.mxu0 0
        %3773 = vmatprep.subr.bf16.mxu0 0
        %3774 = vmatpush1.bf16.xpose.msra.mxu0 0
        %3775 = vmatprep.subr.bf16.mxu0 0
        %3776 = vmatpush1.bf16.xpose.msra.mxu0 0
        %3777 = vmatprep.subr.bf16.mxu0 0
        %3778 = vmatpush1.bf16.xpose.msra.mxu0 0
        %3779 = vmatprep.subr.bf16.mxu0 0
        %3780 = vmatpush1.bf16.xpose.msra.mxu0 0
        %3781 = vmatprep.subr.bf16.mxu0 0
        %3782 = vmatpush1.bf16.xpose.msra.mxu0 0
        %3783 = vmatprep.subr.bf16.mxu0 0
        %3784 = vmatpush1.bf16.xpose.msra.mxu0 0
        %3785 = vmatprep.mubr.bf16.mxu0 0
        %3786 = vmatmul.mubr.bf16.gmra.mrb[0].mxu0 %v3748
        %v3787 = vpop.f32.mrb[0].mxu0
        %v3788 = vadd.f32 0.0, %v3787
        %v3789 = vpop.f32.mrb[0].mxu0
        %v3790 = vpop.f32.mrb[0].mxu0
        %v3791 = vpop.f32.mrb[0].mxu0
        %3792 = vdwg.mxu0
        %v3794 = vsel %vm1492, %v3691, 0
        %v3797 = vsel %vm1492, %v3697, 0
        %3799 = vmatprep.subr.bf16.mxu0 0
        %3800 = vmatpush1.bf16.xpose.msra.mxu0 %v3797
        %3801 = vmatprep.subr.bf16.mxu0 0
        %3802 = vmatpush1.bf16.xpose.msra.mxu0 0
        %3803 = vmatprep.subr.bf16.mxu0 0
        %3804 = vmatpush1.bf16.xpose.msra.mxu0 0
        %3805 = vmatprep.subr.bf16.mxu0 0
        %3806 = vmatpush1.bf16.xpose.msra.mxu0 0
        %3807 = vmatprep.subr.bf16.mxu0 0
        %3808 = vmatpush1.bf16.xpose.msra.mxu0 0
        %3809 = vmatprep.subr.bf16.mxu0 0
        %3810 = vmatpush1.bf16.xpose.msra.mxu0 0
        %3811 = vmatprep.subr.bf16.mxu0 0
        %3812 = vmatpush1.bf16.xpose.msra.mxu0 0
        %3813 = vmatprep.subr.bf16.mxu0 0
        %3814 = vmatpush1.bf16.xpose.msra.mxu0 0
        %3815 = vmatprep.subr.bf16.mxu0 0
        %3816 = vmatpush1.bf16.xpose.msra.mxu0 0
        %3817 = vmatprep.subr.bf16.mxu0 0
        %3818 = vmatpush1.bf16.xpose.msra.mxu0 0
        %3819 = vmatprep.subr.bf16.mxu0 0
        %3820 = vmatpush1.bf16.xpose.msra.mxu0 0
        %3821 = vmatprep.subr.bf16.mxu0 0
        %3822 = vmatpush1.bf16.xpose.msra.mxu0 0
        %3823 = vmatprep.subr.bf16.mxu0 0
        %3824 = vmatpush1.bf16.xpose.msra.mxu0 0
        %3825 = vmatprep.subr.bf16.mxu0 0
        %3826 = vmatpush1.bf16.xpose.msra.mxu0 0
        %3827 = vmatprep.subr.bf16.mxu0 0
        %3828 = vmatpush1.bf16.xpose.msra.mxu0 0
        %3829 = vmatprep.subr.bf16.mxu0 0
        %3830 = vmatpush1.bf16.xpose.msra.mxu0 0
        %3831 = vmatprep.mubr.bf16.mxu0 0
        %3832 = vmatmul.mubr.bf16.gmra.mrb[0].mxu0 %v3794
        %v3833 = vpop.f32.mrb[0].mxu0
        %v3834 = vadd.f32 0.0, %v3833
        %v3835 = vpop.f32.mrb[0].mxu0
        %v3836 = vpop.f32.mrb[0].mxu0
        %v3837 = vpop.f32.mrb[0].mxu0
        %3838 = vdwg.mxu0
        %v3840 = vsel %vm1492, %v3692, 0
        %v3843 = vsel %vm1492, %v3698, 0
        %3845 = vmatprep.subr.bf16.mxu0 0
        %3846 = vmatpush1.bf16.xpose.msra.mxu0 %v3843
        %3847 = vmatprep.subr.bf16.mxu0 0
        %3848 = vmatpush1.bf16.xpose.msra.mxu0 0
        %3849 = vmatprep.subr.bf16.mxu0 0
        %3850 = vmatpush1.bf16.xpose.msra.mxu0 0
        %3851 = vmatprep.subr.bf16.mxu0 0
        %3852 = vmatpush1.bf16.xpose.msra.mxu0 0
        %3853 = vmatprep.subr.bf16.mxu0 0
        %3854 = vmatpush1.bf16.xpose.msra.mxu0 0
        %3855 = vmatprep.subr.bf16.mxu0 0
        %3856 = vmatpush1.bf16.xpose.msra.mxu0 0
        %3857 = vmatprep.subr.bf16.mxu0 0
        %3858 = vmatpush1.bf16.xpose.msra.mxu0 0
        %3859 = vmatprep.subr.bf16.mxu0 0
        %3860 = vmatpush1.bf16.xpose.msra.mxu0 0
        %3861 = vmatprep.subr.bf16.mxu0 0
        %3862 = vmatpush1.bf16.xpose.msra.mxu0 0
        %3863 = vmatprep.subr.bf16.mxu0 0
        %3864 = vmatpush1.bf16.xpose.msra.mxu0 0
        %3865 = vmatprep.subr.bf16.mxu0 0
        %3866 = vmatpush1.bf16.xpose.msra.mxu0 0
        %3867 = vmatprep.subr.bf16.mxu0 0
        %3868 = vmatpush1.bf16.xpose.msra.mxu0 0
        %3869 = vmatprep.subr.bf16.mxu0 0
        %3870 = vmatpush1.bf16.xpose.msra.mxu0 0
        %3871 = vmatprep.subr.bf16.mxu0 0
        %3872 = vmatpush1.bf16.xpose.msra.mxu0 0
        %3873 = vmatprep.subr.bf16.mxu0 0
        %3874 = vmatpush1.bf16.xpose.msra.mxu0 0
        %3875 = vmatprep.subr.bf16.mxu0 0
        %3876 = vmatpush1.bf16.xpose.msra.mxu0 0
        %3877 = vmatprep.mubr.bf16.mxu0 0
        %3878 = vmatmul.mubr.bf16.gmra.mrb[0].mxu0 %v3840
        %v3879 = vpop.f32.mrb[0].mxu0
        %v3880 = vadd.f32 0.0, %v3879
        %v3881 = vpop.f32.mrb[0].mxu0
        %v3882 = vpop.f32.mrb[0].mxu0
        %v3883 = vpop.f32.mrb[0].mxu0
        %3884 = vdwg.mxu0
        %v3886 = vsel %vm1492, %v3693, 0
        %v3889 = vsel %vm1492, %v3699, 0
        %3891 = vmatprep.subr.bf16.mxu0 0
        %3892 = vmatpush1.bf16.xpose.msra.mxu0 %v3889
        %3893 = vmatprep.subr.bf16.mxu0 0
        %3894 = vmatpush1.bf16.xpose.msra.mxu0 0
        %3895 = vmatprep.subr.bf16.mxu0 0
        %3896 = vmatpush1.bf16.xpose.msra.mxu0 0
        %3897 = vmatprep.subr.bf16.mxu0 0
        %3898 = vmatpush1.bf16.xpose.msra.mxu0 0
        %3899 = vmatprep.subr.bf16.mxu0 0
        %3900 = vmatpush1.bf16.xpose.msra.mxu0 0
        %3901 = vmatprep.subr.bf16.mxu0 0
        %3902 = vmatpush1.bf16.xpose.msra.mxu0 0
        %3903 = vmatprep.subr.bf16.mxu0 0
        %3904 = vmatpush1.bf16.xpose.msra.mxu0 0
        %3905 = vmatprep.subr.bf16.mxu0 0
        %3906 = vmatpush1.bf16.xpose.msra.mxu0 0
        %3907 = vmatprep.subr.bf16.mxu0 0
        %3908 = vmatpush1.bf16.xpose.msra.mxu0 0
        %3909 = vmatprep.subr.bf16.mxu0 0
        %3910 = vmatpush1.bf16.xpose.msra.mxu0 0
        %3911 = vmatprep.subr.bf16.mxu0 0
        %3912 = vmatpush1.bf16.xpose.msra.mxu0 0
        %3913 = vmatprep.subr.bf16.mxu0 0
        %3914 = vmatpush1.bf16.xpose.msra.mxu0 0
        %3915 = vmatprep.subr.bf16.mxu0 0
        %3916 = vmatpush1.bf16.xpose.msra.mxu0 0
        %3917 = vmatprep.subr.bf16.mxu0 0
        %3918 = vmatpush1.bf16.xpose.msra.mxu0 0
        %3919 = vmatprep.subr.bf16.mxu0 0
        %3920 = vmatpush1.bf16.xpose.msra.mxu0 0
        %3921 = vmatprep.subr.bf16.mxu0 0
        %3922 = vmatpush1.bf16.xpose.msra.mxu0 0
        %3923 = vmatprep.mubr.bf16.mxu0 0
        %3924 = vmatmul.mubr.bf16.gmra.mrb[0].mxu0 %v3886
        %v3925 = vpop.f32.mrb[0].mxu0
        %v3926 = vadd.f32 0.0, %v3925
        %v3927 = vpop.f32.mrb[0].mxu0
        %v3928 = vpop.f32.mrb[0].mxu0
        %v3929 = vpop.f32.mrb[0].mxu0
        %3930 = vdwg.mxu0
        %v3932 = vsel %vm1492, %v3694, 0
        %v3935 = vsel %vm1492, %v3700, 0
        %3937 = vmatprep.subr.bf16.mxu0 0
        %3938 = vmatpush1.bf16.xpose.msra.mxu0 %v3935
        %3939 = vmatprep.subr.bf16.mxu0 0
        %3940 = vmatpush1.bf16.xpose.msra.mxu0 0
        %3941 = vmatprep.subr.bf16.mxu0 0
        %3942 = vmatpush1.bf16.xpose.msra.mxu0 0
        %3943 = vmatprep.subr.bf16.mxu0 0
        %3944 = vmatpush1.bf16.xpose.msra.mxu0 0
        %3945 = vmatprep.subr.bf16.mxu0 0
        %3946 = vmatpush1.bf16.xpose.msra.mxu0 0
        %3947 = vmatprep.subr.bf16.mxu0 0
        %3948 = vmatpush1.bf16.xpose.msra.mxu0 0
        %3949 = vmatprep.subr.bf16.mxu0 0
        %3950 = vmatpush1.bf16.xpose.msra.mxu0 0
        %3951 = vmatprep.subr.bf16.mxu0 0
        %3952 = vmatpush1.bf16.xpose.msra.mxu0 0
        %3953 = vmatprep.subr.bf16.mxu0 0
        %3954 = vmatpush1.bf16.xpose.msra.mxu0 0
        %3955 = vmatprep.subr.bf16.mxu0 0
        %3956 = vmatpush1.bf16.xpose.msra.mxu0 0
        %3957 = vmatprep.subr.bf16.mxu0 0
        %3958 = vmatpush1.bf16.xpose.msra.mxu0 0
        %3959 = vmatprep.subr.bf16.mxu0 0
        %3960 = vmatpush1.bf16.xpose.msra.mxu0 0
        %3961 = vmatprep.subr.bf16.mxu0 0
        %3962 = vmatpush1.bf16.xpose.msra.mxu0 0
        %3963 = vmatprep.subr.bf16.mxu0 0
        %3964 = vmatpush1.bf16.xpose.msra.mxu0 0
        %3965 = vmatprep.subr.bf16.mxu0 0
        %3966 = vmatpush1.bf16.xpose.msra.mxu0 0
        %3967 = vmatprep.subr.bf16.mxu0 0
        %3968 = vmatpush1.bf16.xpose.msra.mxu0 0
        %3969 = vmatprep.mubr.bf16.mxu0 0
        %3970 = vmatmul.mubr.bf16.gmra.mrb[0].mxu0 %v3932
        %v3971 = vpop.f32.mrb[0].mxu0
        %v3972 = vadd.f32 0.0, %v3971
        %v3973 = vpop.f32.mrb[0].mxu0
        %v3974 = vpop.f32.mrb[0].mxu0
        %v3975 = vpop.f32.mrb[0].mxu0
        %3976 = vdwg.mxu0
        %v3977 = vsel %vm1770, %v3742, -1e+30
        %v3978 = vsel %vm1770, %v3788, -1e+30
        %v3979 = vsel %vm1770, %v3834, -1e+30
        %v3980 = vsel %vm1770, %v3880, -1e+30
        %v3981 = vsel %vm1770, %v3926, -1e+30
        %v3982 = vsel %vm1770, %v3972, -1e+30
        %v3983 = vsel %vm1492, %v3977, -inf
        %3984 = vmax.xlane.f32.xlu0 %v3983
        %v3985 = vpop.xlane.xlu0 %3984
        %v3986 = vsel %vm1492, %v3978, -inf
        %3987 = vmax.xlane.f32.xlu0 %v3986
        %v3988 = vpop.xlane.xlu0 %3987
        %v3989 = vsel %vm1492, %v3979, -inf
        %3990 = vmax.xlane.f32.xlu0 %v3989
        %v3991 = vpop.xlane.xlu0 %3990
        %v3992 = vsel %vm1492, %v3980, -inf
        %3993 = vmax.xlane.f32.xlu0 %v3992
        %v3994 = vpop.xlane.xlu0 %3993
        %v3995 = vsel %vm1492, %v3981, -inf
        %3996 = vmax.xlane.f32.xlu0 %v3995
        %v3997 = vpop.xlane.xlu0 %3996
        %v3998 = vsel %vm1492, %v3982, -inf
        %3999 = vmax.xlane.f32.xlu0 %v3998
        %v4000 = vpop.xlane.xlu0 %3999
        %v4001 = vsub.f32 %v3977, %v3985
        %v4002 = vsub.f32 %v3978, %v3988
        %v4003 = vsub.f32 %v3979, %v3991
        %v4004 = vsub.f32 %v3980, %v3994
        %v4005 = vsub.f32 %v3981, %v3997
        %v4006 = vsub.f32 %v3982, %v4000
        %v4007 = vmul.f32 %v4001, 1.442695
        %v4008 = vpow.pop %v4007
        %v4009 = vmul.f32 %v4002, 1.442695
        %v4010 = vpow.pop %v4009
        %v4011 = vmul.f32 %v4003, 1.442695
        %v4012 = vpow.pop %v4011
        %v4013 = vmul.f32 %v4004, 1.442695
        %v4014 = vpow.pop %v4013
        %v4015 = vmul.f32 %v4005, 1.442695
        %v4016 = vpow.pop %v4015
        %v4017 = vmul.f32 %v4006, 1.442695
        %v4018 = vpow.pop %v4017
        %v4019 = vsel %vm1492, %v4008, 0.0
        %4020 = vadd.xlane.f32.xlu0 %v4019
        %v4021 = vpop.xlane.xlu0 %4020
        %v4022 = vsel %vm1492, %v4010, 0.0
        %4023 = vadd.xlane.f32.xlu0 %v4022
        %v4024 = vpop.xlane.xlu0 %4023
        %v4025 = vsel %vm1492, %v4012, 0.0
        %4026 = vadd.xlane.f32.xlu0 %v4025
        %v4027 = vpop.xlane.xlu0 %4026
        %v4028 = vsel %vm1492, %v4014, 0.0
        %4029 = vadd.xlane.f32.xlu0 %v4028
        %v4030 = vpop.xlane.xlu0 %4029
        %v4031 = vsel %vm1492, %v4016, 0.0
        %4032 = vadd.xlane.f32.xlu0 %v4031
        %v4033 = vpop.xlane.xlu0 %4032
        %v4034 = vsel %vm1492, %v4018, 0.0
        %4035 = vadd.xlane.f32.xlu0 %v4034
        %v4036 = vpop.xlane.xlu0 %4035
        %v4037 = vrcp.pop %v4021
        %v4038 = vrcp.pop %v4024
        %v4039 = vrcp.pop %v4027
        %v4040 = vrcp.pop %v4030
        %v4041 = vrcp.pop %v4033
        %v4042 = vrcp.pop %v4036
        %v4043 = vmul.f32 %v4008, %v4037
        %v4044 = vmul.f32 %v4010, %v4038
        %v4045 = vmul.f32 %v4012, %v4039
        %v4046 = vmul.f32 %v4014, %v4040
        %v4047 = vmul.f32 %v4016, %v4041
        %v4048 = vmul.f32 %v4018, %v4042
        %v4049 = vpack.c.bf16 %v4043, %v4043
        %v4050 = vpack.c.bf16 %v4044, %v4044
        %v4051 = vpack.c.bf16 %v4045, %v4045
        %v4052 = vpack.c.bf16 %v4046, %v4046
        %v4053 = vpack.c.bf16 %v4047, %v4047
        %v4054 = vpack.c.bf16 %v4048, %v4048
        %v4055 = vpack.c.bf16 %v3683, %v3683
        %v4056 = vpack.c.bf16 %v3684, %v3684
        %v4057 = vpack.c.bf16 %v3685, %v3685
        %v4058 = vpack.c.bf16 %v3686, %v3686
        %v4059 = vpack.c.bf16 %v3687, %v3687
        %v4060 = vpack.c.bf16 %v3688, %v3688
        %v4062 = vsel %vm1492, %v4049, 0
        %v4065 = vsel %vm1858, %v4055, 0
        %4067 = vmatprep.subr.bf16.mxu0 0
        %4068 = vmatpush1.bf16.msra.mxu0 %v4065
        %4069 = vmatprep.subr.bf16.mxu0 0
        %4070 = vmatpush1.bf16.msra.mxu0 0
        %4071 = vmatprep.subr.bf16.mxu0 0
        %4072 = vmatpush1.bf16.msra.mxu0 0
        %4073 = vmatprep.subr.bf16.mxu0 0
        %4074 = vmatpush1.bf16.msra.mxu0 0
        %4075 = vmatprep.subr.bf16.mxu0 0
        %4076 = vmatpush1.bf16.msra.mxu0 0
        %4077 = vmatprep.subr.bf16.mxu0 0
        %4078 = vmatpush1.bf16.msra.mxu0 0
        %4079 = vmatprep.subr.bf16.mxu0 0
        %4080 = vmatpush1.bf16.msra.mxu0 0
        %4081 = vmatprep.subr.bf16.mxu0 0
        %4082 = vmatpush1.bf16.msra.mxu0 0
        %4083 = vmatprep.subr.bf16.mxu0 0
        %4084 = vmatpush1.bf16.msra.mxu0 0
        %4085 = vmatprep.subr.bf16.mxu0 0
        %4086 = vmatpush1.bf16.msra.mxu0 0
        %4087 = vmatprep.subr.bf16.mxu0 0
        %4088 = vmatpush1.bf16.msra.mxu0 0
        %4089 = vmatprep.subr.bf16.mxu0 0
        %4090 = vmatpush1.bf16.msra.mxu0 0
        %4091 = vmatprep.subr.bf16.mxu0 0
        %4092 = vmatpush1.bf16.msra.mxu0 0
        %4093 = vmatprep.subr.bf16.mxu0 0
        %4094 = vmatpush1.bf16.msra.mxu0 0
        %4095 = vmatprep.subr.bf16.mxu0 0
        %4096 = vmatpush1.bf16.msra.mxu0 0
        %4097 = vmatprep.subr.bf16.mxu0 0
        %4098 = vmatpush1.bf16.msra.mxu0 0
        %4099 = vmatprep.mubr.bf16.mxu0 0
        %4100 = vmatmul.mubr.bf16.gmra.mrb[0].mxu0 %v4062
        %v4101 = vpop.f32.mrb[0].mxu0
        %v4102 = vadd.f32 0.0, %v4101
        %v4103 = vpop.f32.mrb[0].mxu0
        %v4104 = vpop.f32.mrb[0].mxu0
        %v4105 = vpop.f32.mrb[0].mxu0
        %4106 = vdwg.mxu0
        %v4108 = vsel %vm1492, %v4050, 0
        %v4111 = vsel %vm1858, %v4056, 0
        %4113 = vmatprep.subr.bf16.mxu0 0
        %4114 = vmatpush1.bf16.msra.mxu0 %v4111
        %4115 = vmatprep.subr.bf16.mxu0 0
        %4116 = vmatpush1.bf16.msra.mxu0 0
        %4117 = vmatprep.subr.bf16.mxu0 0
        %4118 = vmatpush1.bf16.msra.mxu0 0
        %4119 = vmatprep.subr.bf16.mxu0 0
        %4120 = vmatpush1.bf16.msra.mxu0 0
        %4121 = vmatprep.subr.bf16.mxu0 0
        %4122 = vmatpush1.bf16.msra.mxu0 0
        %4123 = vmatprep.subr.bf16.mxu0 0
        %4124 = vmatpush1.bf16.msra.mxu0 0
        %4125 = vmatprep.subr.bf16.mxu0 0
        %4126 = vmatpush1.bf16.msra.mxu0 0
        %4127 = vmatprep.subr.bf16.mxu0 0
        %4128 = vmatpush1.bf16.msra.mxu0 0
        %4129 = vmatprep.subr.bf16.mxu0 0
        %4130 = vmatpush1.bf16.msra.mxu0 0
        %4131 = vmatprep.subr.bf16.mxu0 0
        %4132 = vmatpush1.bf16.msra.mxu0 0
        %4133 = vmatprep.subr.bf16.mxu0 0
        %4134 = vmatpush1.bf16.msra.mxu0 0
        %4135 = vmatprep.subr.bf16.mxu0 0
        %4136 = vmatpush1.bf16.msra.mxu0 0
        %4137 = vmatprep.subr.bf16.mxu0 0
        %4138 = vmatpush1.bf16.msra.mxu0 0
        %4139 = vmatprep.subr.bf16.mxu0 0
        %4140 = vmatpush1.bf16.msra.mxu0 0
        %4141 = vmatprep.subr.bf16.mxu0 0
        %4142 = vmatpush1.bf16.msra.mxu0 0
        %4143 = vmatprep.subr.bf16.mxu0 0
        %4144 = vmatpush1.bf16.msra.mxu0 0
        %4145 = vmatprep.mubr.bf16.mxu0 0
        %4146 = vmatmul.mubr.bf16.gmra.mrb[0].mxu0 %v4108
        %v4147 = vpop.f32.mrb[0].mxu0
        %v4148 = vadd.f32 0.0, %v4147
        %v4149 = vpop.f32.mrb[0].mxu0
        %v4150 = vpop.f32.mrb[0].mxu0
        %v4151 = vpop.f32.mrb[0].mxu0
        %4152 = vdwg.mxu0
        %v4154 = vsel %vm1492, %v4051, 0
        %v4157 = vsel %vm1858, %v4057, 0
        %4159 = vmatprep.subr.bf16.mxu0 0
        %4160 = vmatpush1.bf16.msra.mxu0 %v4157
        %4161 = vmatprep.subr.bf16.mxu0 0
        %4162 = vmatpush1.bf16.msra.mxu0 0
        %4163 = vmatprep.subr.bf16.mxu0 0
        %4164 = vmatpush1.bf16.msra.mxu0 0
        %4165 = vmatprep.subr.bf16.mxu0 0
        %4166 = vmatpush1.bf16.msra.mxu0 0
        %4167 = vmatprep.subr.bf16.mxu0 0
        %4168 = vmatpush1.bf16.msra.mxu0 0
        %4169 = vmatprep.subr.bf16.mxu0 0
        %4170 = vmatpush1.bf16.msra.mxu0 0
        %4171 = vmatprep.subr.bf16.mxu0 0
        %4172 = vmatpush1.bf16.msra.mxu0 0
        %4173 = vmatprep.subr.bf16.mxu0 0
        %4174 = vmatpush1.bf16.msra.mxu0 0
        %4175 = vmatprep.subr.bf16.mxu0 0
        %4176 = vmatpush1.bf16.msra.mxu0 0
        %4177 = vmatprep.subr.bf16.mxu0 0
        %4178 = vmatpush1.bf16.msra.mxu0 0
        %4179 = vmatprep.subr.bf16.mxu0 0
        %4180 = vmatpush1.bf16.msra.mxu0 0
        %4181 = vmatprep.subr.bf16.mxu0 0
        %4182 = vmatpush1.bf16.msra.mxu0 0
        %4183 = vmatprep.subr.bf16.mxu0 0
        %4184 = vmatpush1.bf16.msra.mxu0 0
        %4185 = vmatprep.subr.bf16.mxu0 0
        %4186 = vmatpush1.bf16.msra.mxu0 0
        %4187 = vmatprep.subr.bf16.mxu0 0
        %4188 = vmatpush1.bf16.msra.mxu0 0
        %4189 = vmatprep.subr.bf16.mxu0 0
        %4190 = vmatpush1.bf16.msra.mxu0 0
        %4191 = vmatprep.mubr.bf16.mxu0 0
        %4192 = vmatmul.mubr.bf16.gmra.mrb[0].mxu0 %v4154
        %v4193 = vpop.f32.mrb[0].mxu0
        %v4194 = vadd.f32 0.0, %v4193
        %v4195 = vpop.f32.mrb[0].mxu0
        %v4196 = vpop.f32.mrb[0].mxu0
        %v4197 = vpop.f32.mrb[0].mxu0
        %4198 = vdwg.mxu0
        %v4200 = vsel %vm1492, %v4052, 0
        %v4203 = vsel %vm1858, %v4058, 0
        %4205 = vmatprep.subr.bf16.mxu0 0
        %4206 = vmatpush1.bf16.msra.mxu0 %v4203
        %4207 = vmatprep.subr.bf16.mxu0 0
        %4208 = vmatpush1.bf16.msra.mxu0 0
        %4209 = vmatprep.subr.bf16.mxu0 0
        %4210 = vmatpush1.bf16.msra.mxu0 0
        %4211 = vmatprep.subr.bf16.mxu0 0
        %4212 = vmatpush1.bf16.msra.mxu0 0
        %4213 = vmatprep.subr.bf16.mxu0 0
        %4214 = vmatpush1.bf16.msra.mxu0 0
        %4215 = vmatprep.subr.bf16.mxu0 0
        %4216 = vmatpush1.bf16.msra.mxu0 0
        %4217 = vmatprep.subr.bf16.mxu0 0
        %4218 = vmatpush1.bf16.msra.mxu0 0
        %4219 = vmatprep.subr.bf16.mxu0 0
        %4220 = vmatpush1.bf16.msra.mxu0 0
        %4221 = vmatprep.subr.bf16.mxu0 0
        %4222 = vmatpush1.bf16.msra.mxu0 0
        %4223 = vmatprep.subr.bf16.mxu0 0
        %4224 = vmatpush1.bf16.msra.mxu0 0
        %4225 = vmatprep.subr.bf16.mxu0 0
        %4226 = vmatpush1.bf16.msra.mxu0 0
        %4227 = vmatprep.subr.bf16.mxu0 0
        %4228 = vmatpush1.bf16.msra.mxu0 0
        %4229 = vmatprep.subr.bf16.mxu0 0
        %4230 = vmatpush1.bf16.msra.mxu0 0
        %4231 = vmatprep.subr.bf16.mxu0 0
        %4232 = vmatpush1.bf16.msra.mxu0 0
        %4233 = vmatprep.subr.bf16.mxu0 0
        %4234 = vmatpush1.bf16.msra.mxu0 0
        %4235 = vmatprep.subr.bf16.mxu0 0
        %4236 = vmatpush1.bf16.msra.mxu0 0
        %4237 = vmatprep.mubr.bf16.mxu0 0
        %4238 = vmatmul.mubr.bf16.gmra.mrb[0].mxu0 %v4200
        %v4239 = vpop.f32.mrb[0].mxu0
        %v4240 = vadd.f32 0.0, %v4239
        %v4241 = vpop.f32.mrb[0].mxu0
        %v4242 = vpop.f32.mrb[0].mxu0
        %v4243 = vpop.f32.mrb[0].mxu0
        %4244 = vdwg.mxu0
        %v4246 = vsel %vm1492, %v4053, 0
        %v4249 = vsel %vm1858, %v4059, 0
        %4251 = vmatprep.subr.bf16.mxu0 0
        %4252 = vmatpush1.bf16.msra.mxu0 %v4249
        %4253 = vmatprep.subr.bf16.mxu0 0
        %4254 = vmatpush1.bf16.msra.mxu0 0
        %4255 = vmatprep.subr.bf16.mxu0 0
        %4256 = vmatpush1.bf16.msra.mxu0 0
        %4257 = vmatprep.subr.bf16.mxu0 0
        %4258 = vmatpush1.bf16.msra.mxu0 0
        %4259 = vmatprep.subr.bf16.mxu0 0
        %4260 = vmatpush1.bf16.msra.mxu0 0
        %4261 = vmatprep.subr.bf16.mxu0 0
        %4262 = vmatpush1.bf16.msra.mxu0 0
        %4263 = vmatprep.subr.bf16.mxu0 0
        %4264 = vmatpush1.bf16.msra.mxu0 0
        %4265 = vmatprep.subr.bf16.mxu0 0
        %4266 = vmatpush1.bf16.msra.mxu0 0
        %4267 = vmatprep.subr.bf16.mxu0 0
        %4268 = vmatpush1.bf16.msra.mxu0 0
        %4269 = vmatprep.subr.bf16.mxu0 0
        %4270 = vmatpush1.bf16.msra.mxu0 0
        %4271 = vmatprep.subr.bf16.mxu0 0
        %4272 = vmatpush1.bf16.msra.mxu0 0
        %4273 = vmatprep.subr.bf16.mxu0 0
        %4274 = vmatpush1.bf16.msra.mxu0 0
        %4275 = vmatprep.subr.bf16.mxu0 0
        %4276 = vmatpush1.bf16.msra.mxu0 0
        %4277 = vmatprep.subr.bf16.mxu0 0
        %4278 = vmatpush1.bf16.msra.mxu0 0
        %4279 = vmatprep.subr.bf16.mxu0 0
        %4280 = vmatpush1.bf16.msra.mxu0 0
        %4281 = vmatprep.subr.bf16.mxu0 0
        %4282 = vmatpush1.bf16.msra.mxu0 0
        %4283 = vmatprep.mubr.bf16.mxu0 0
        %4284 = vmatmul.mubr.bf16.gmra.mrb[0].mxu0 %v4246
        %v4285 = vpop.f32.mrb[0].mxu0
        %v4286 = vadd.f32 0.0, %v4285
        %v4287 = vpop.f32.mrb[0].mxu0
        %v4288 = vpop.f32.mrb[0].mxu0
        %v4289 = vpop.f32.mrb[0].mxu0
        %4290 = vdwg.mxu0
        %v4292 = vsel %vm1492, %v4054, 0
        %v4295 = vsel %vm1858, %v4060, 0
        %4297 = vmatprep.subr.bf16.mxu0 0
        %4298 = vmatpush1.bf16.msra.mxu0 %v4295
        %4299 = vmatprep.subr.bf16.mxu0 0
        %4300 = vmatpush1.bf16.msra.mxu0 0
        %4301 = vmatprep.subr.bf16.mxu0 0
        %4302 = vmatpush1.bf16.msra.mxu0 0
        %4303 = vmatprep.subr.bf16.mxu0 0
        %4304 = vmatpush1.bf16.msra.mxu0 0
        %4305 = vmatprep.subr.bf16.mxu0 0
        %4306 = vmatpush1.bf16.msra.mxu0 0
        %4307 = vmatprep.subr.bf16.mxu0 0
        %4308 = vmatpush1.bf16.msra.mxu0 0
        %4309 = vmatprep.subr.bf16.mxu0 0
        %4310 = vmatpush1.bf16.msra.mxu0 0
        %4311 = vmatprep.subr.bf16.mxu0 0
        %4312 = vmatpush1.bf16.msra.mxu0 0
        %4313 = vmatprep.subr.bf16.mxu0 0
        %4314 = vmatpush1.bf16.msra.mxu0 0
        %4315 = vmatprep.subr.bf16.mxu0 0
        %4316 = vmatpush1.bf16.msra.mxu0 0
        %4317 = vmatprep.subr.bf16.mxu0 0
        %4318 = vmatpush1.bf16.msra.mxu0 0
        %4319 = vmatprep.subr.bf16.mxu0 0
        %4320 = vmatpush1.bf16.msra.mxu0 0
        %4321 = vmatprep.subr.bf16.mxu0 0
        %4322 = vmatpush1.bf16.msra.mxu0 0
        %4323 = vmatprep.subr.bf16.mxu0 0
        %4324 = vmatpush1.bf16.msra.mxu0 0
        %4325 = vmatprep.subr.bf16.mxu0 0
        %4326 = vmatpush1.bf16.msra.mxu0 0
        %4327 = vmatprep.subr.bf16.mxu0 0
        %4328 = vmatpush1.bf16.msra.mxu0 0
        %4329 = vmatprep.mubr.bf16.mxu0 0
        %4330 = vmatmul.mubr.bf16.gmra.mrb[0].mxu0 %v4292
        %v4331 = vpop.f32.mrb[0].mxu0
        %v4332 = vadd.f32 0.0, %v4331
        %v4333 = vpop.f32.mrb[0].mxu0
        %v4334 = vpop.f32.mrb[0].mxu0
        %v4335 = vpop.f32.mrb[0].mxu0
        %4336 = vdwg.mxu0
        %v4337 = vcombine.low %v4102, %v4194
        %v4338 = vcombine.high %v4102, %v4194
        %v4340 = vunpack.c.l.s4 1983009808
        %v4341 = vunpack.c.0.s8 %v4340
        %v4342 = vlaneseq
        %v4343 = vshrl.u32 %v4342, 7
        %v4344 = vsub.s32 %v4341, %v4343
        %v4345 = vrot.slane %v4337, %v4344
        %v4347 = vunpack.c.l.s4 1983009808
        %v4348 = vunpack.c.0.s8 %v4347
        %v4349 = vlaneseq
        %v4350 = vshrl.u32 %v4349, 7
        %v4351 = vsub.s32 %v4348, %v4350
        %v4352 = vrot.slane %v4338, %v4351
        %v4353 = vcombine.low %v4148, %v4240
        %v4354 = vcombine.high %v4148, %v4240
        %v4356 = vunpack.c.l.s4 1983009808
        %v4357 = vunpack.c.0.s8 %v4356
        %v4358 = vlaneseq
        %v4359 = vshrl.u32 %v4358, 7
        %v4360 = vsub.s32 %v4357, %v4359
        %v4361 = vrot.slane %v4353, %v4360
        %v4363 = vunpack.c.l.s4 1983009808
        %v4364 = vunpack.c.0.s8 %v4363
        %v4365 = vlaneseq
        %v4366 = vshrl.u32 %v4365, 7
        %v4367 = vsub.s32 %v4364, %v4366
        %v4368 = vrot.slane %v4354, %v4367
        %v4369 = vcombine.high %v4286, 0.0
        %v4371 = vunpack.c.l.s4 1983009808
        %v4372 = vunpack.c.0.s8 %v4371
        %v4373 = vlaneseq
        %v4374 = vshrl.u32 %v4373, 7
        %v4375 = vsub.s32 %v4372, %v4374
        %v4376 = vrot.slane %v4286, %v4375
        %v4378 = vunpack.c.l.s4 1983009808
        %v4379 = vunpack.c.0.s8 %v4378
        %v4380 = vlaneseq
        %v4381 = vshrl.u32 %v4380, 7
        %v4382 = vsub.s32 %v4379, %v4381
        %v4383 = vrot.slane %v4369, %v4382
        %v4384 = vcombine.high %v4332, 0.0
        %v4386 = vunpack.c.l.s4 1983009808
        %v4387 = vunpack.c.0.s8 %v4386
        %v4388 = vlaneseq
        %v4389 = vshrl.u32 %v4388, 7
        %v4390 = vsub.s32 %v4387, %v4389
        %v4391 = vrot.slane %v4332, %v4390
        %v4393 = vunpack.c.l.s4 1983009808
        %v4394 = vunpack.c.0.s8 %v4393
        %v4395 = vlaneseq
        %v4396 = vshrl.u32 %v4395, 7
        %v4397 = vsub.s32 %v4394, %v4396
        %v4398 = vrot.slane %v4384, %v4397
        %v4399 = vcombine.low %v4345, %v4361
        %v4400 = vcombine.high %v4345, %v4361
        %v4402 = vunpack.c.l.s4 1934713408
        %v4403 = vunpack.c.0.s8 %v4402
        %v4404 = vlaneseq
        %v4405 = vshrl.u32 %v4404, 7
        %v4406 = vsub.s32 %v4403, %v4405
        %v4407 = vrot.slane %v4399, %v4406
        %v4409 = vunpack.c.l.s4 1934713408
        %v4410 = vunpack.c.0.s8 %v4409
        %v4411 = vlaneseq
        %v4412 = vshrl.u32 %v4411, 7
        %v4413 = vsub.s32 %v4410, %v4412
        %v4414 = vrot.slane %v4400, %v4413
        %v4415 = vcombine.low %v4352, %v4368
        %v4416 = vcombine.high %v4352, %v4368
        %v4418 = vunpack.c.l.s4 1934713408
        %v4419 = vunpack.c.0.s8 %v4418
        %v4420 = vlaneseq
        %v4421 = vshrl.u32 %v4420, 7
        %v4422 = vsub.s32 %v4419, %v4421
        %v4423 = vrot.slane %v4415, %v4422
        %v4425 = vunpack.c.l.s4 1934713408
        %v4426 = vunpack.c.0.s8 %v4425
        %v4427 = vlaneseq
        %v4428 = vshrl.u32 %v4427, 7
        %v4429 = vsub.s32 %v4426, %v4428
        %v4430 = vrot.slane %v4416, %v4429
        %v4431 = vcombine.low %v4376, %v4391
        %v4432 = vcombine.high %v4376, %v4391
        %v4434 = vunpack.c.l.s4 1934713408
        %v4435 = vunpack.c.0.s8 %v4434
        %v4436 = vlaneseq
        %v4437 = vshrl.u32 %v4436, 7
        %v4438 = vsub.s32 %v4435, %v4437
        %v4439 = vrot.slane %v4431, %v4438
        %v4441 = vunpack.c.l.s4 1934713408
        %v4442 = vunpack.c.0.s8 %v4441
        %v4443 = vlaneseq
        %v4444 = vshrl.u32 %v4443, 7
        %v4445 = vsub.s32 %v4442, %v4444
        %v4446 = vrot.slane %v4432, %v4445
        %v4447 = vcombine.low %v4383, %v4398
        %v4448 = vcombine.high %v4383, %v4398
        %v4450 = vunpack.c.l.s4 1934713408
        %v4451 = vunpack.c.0.s8 %v4450
        %v4452 = vlaneseq
        %v4453 = vshrl.u32 %v4452, 7
        %v4454 = vsub.s32 %v4451, %v4453
        %v4455 = vrot.slane %v4447, %v4454
        %v4457 = vunpack.c.l.s4 1934713408
        %v4458 = vunpack.c.0.s8 %v4457
        %v4459 = vlaneseq
        %v4460 = vshrl.u32 %v4459, 7
        %v4461 = vsub.s32 %v4458, %v4460
        %v4462 = vrot.slane %v4448, %v4461
        %v4463 = vcombine.low %v4407, %v4439
        %v4464 = vcombine.high %v4407, %v4439
        %v4465 = vcombine.low %v4414, %v4446
        %v4466 = vcombine.high %v4414, %v4446
        %v4467 = vcombine.low %v4423, %v4455
        %v4468 = vcombine.high %v4423, %v4455
        %v4469 = vcombine.low %v4430, %v4462
        %v4470 = vcombine.high %v4430, %v4462
        %v4471 = vcombine.low %v4463, %v4465
        %v4472 = vcombine.high %v4463, %v4465
        %v4474 = vunpack.c.l.s4 1983009808
        %v4475 = vunpack.c.0.s8 %v4474
        %v4476 = vlaneseq
        %v4477 = vshrl.u32 %v4476, 7
        %v4478 = vsub.s32 %v4475, %v4477
        %v4479 = vrot.slane %v4471, %v4478
        %v4481 = vunpack.c.l.s4 1983009808
        %v4482 = vunpack.c.0.s8 %v4481
        %v4483 = vlaneseq
        %v4484 = vshrl.u32 %v4483, 7
        %v4485 = vsub.s32 %v4482, %v4484
        %v4486 = vrot.slane %v4472, %v4485
        %v4487 = vcombine.low %v4464, %v4466
        %v4488 = vcombine.high %v4464, %v4466
        %v4490 = vunpack.c.l.s4 1983009808
        %v4491 = vunpack.c.0.s8 %v4490
        %v4492 = vlaneseq
        %v4493 = vshrl.u32 %v4492, 7
        %v4494 = vsub.s32 %v4491, %v4493
        %v4495 = vrot.slane %v4487, %v4494
        %v4497 = vunpack.c.l.s4 1983009808
        %v4498 = vunpack.c.0.s8 %v4497
        %v4499 = vlaneseq
        %v4500 = vshrl.u32 %v4499, 7
        %v4501 = vsub.s32 %v4498, %v4500
        %v4502 = vrot.slane %v4488, %v4501
        %v4503 = vcombine.low %v4467, %v4469
        %v4504 = vcombine.high %v4467, %v4469
        %v4506 = vunpack.c.l.s4 1983009808
        %v4507 = vunpack.c.0.s8 %v4506
        %v4508 = vlaneseq
        %v4509 = vshrl.u32 %v4508, 7
        %v4510 = vsub.s32 %v4507, %v4509
        %v4511 = vrot.slane %v4503, %v4510
        %v4513 = vunpack.c.l.s4 1983009808
        %v4514 = vunpack.c.0.s8 %v4513
        %v4515 = vlaneseq
        %v4516 = vshrl.u32 %v4515, 7
        %v4517 = vsub.s32 %v4514, %v4516
        %v4518 = vrot.slane %v4504, %v4517
        %v4519 = vcombine.low %v4468, %v4470
        %v4520 = vcombine.high %v4468, %v4470
        %v4522 = vunpack.c.l.s4 1983009808
        %v4523 = vunpack.c.0.s8 %v4522
        %v4524 = vlaneseq
        %v4525 = vshrl.u32 %v4524, 7
        %v4526 = vsub.s32 %v4523, %v4525
        %v4527 = vrot.slane %v4519, %v4526
        %v4529 = vunpack.c.l.s4 1983009808
        %v4530 = vunpack.c.0.s8 %v4529
        %v4531 = vlaneseq
        %v4532 = vshrl.u32 %v4531, 7
        %v4533 = vsub.s32 %v4530, %v4532
        %v4534 = vrot.slane %v4520, %v4533
        %v4535 = vcombine.low %v4479, %v4495
        %v4536 = vcombine.high %v4479, %v4495
        %v4538 = vunpack.c.l.s4 1934713408
        %v4539 = vunpack.c.0.s8 %v4538
        %v4540 = vlaneseq
        %v4541 = vshrl.u32 %v4540, 7
        %v4542 = vsub.s32 %v4539, %v4541
        %v4543 = vrot.slane %v4535, %v4542
        %v4545 = vunpack.c.l.s4 1934713408
        %v4546 = vunpack.c.0.s8 %v4545
        %v4547 = vlaneseq
        %v4548 = vshrl.u32 %v4547, 7
        %v4549 = vsub.s32 %v4546, %v4548
        %v4550 = vrot.slane %v4536, %v4549
        %v4551 = vcombine.low %v4486, %v4502
        %v4553 = vunpack.c.l.s4 1934713408
        %v4554 = vunpack.c.0.s8 %v4553
        %v4555 = vlaneseq
        %v4556 = vshrl.u32 %v4555, 7
        %v4557 = vsub.s32 %v4554, %v4556
        %v4558 = vrot.slane %v4551, %v4557
        %v4559 = vcombine.low %v4511, %v4527
        %v4560 = vcombine.high %v4511, %v4527
        %v4562 = vunpack.c.l.s4 1934713408
        %v4563 = vunpack.c.0.s8 %v4562
        %v4564 = vlaneseq
        %v4565 = vshrl.u32 %v4564, 7
        %v4566 = vsub.s32 %v4563, %v4565
        %v4567 = vrot.slane %v4559, %v4566
        %v4569 = vunpack.c.l.s4 1934713408
        %v4570 = vunpack.c.0.s8 %v4569
        %v4571 = vlaneseq
        %v4572 = vshrl.u32 %v4571, 7
        %v4573 = vsub.s32 %v4570, %v4572
        %v4574 = vrot.slane %v4560, %v4573
        %v4575 = vcombine.low %v4518, %v4534
        %v4577 = vunpack.c.l.s4 1934713408
        %v4578 = vunpack.c.0.s8 %v4577
        %v4579 = vlaneseq
        %v4580 = vshrl.u32 %v4579, 7
        %v4581 = vsub.s32 %v4578, %v4580
        %v4582 = vrot.slane %v4575, %v4581
        %v4583 = vcombine.low %v4543, %v4567
        %v4584 = vcombine.high %v4543, %v4567
        %v4585 = vcombine.low %v4550, %v4574
        %v4586 = vcombine.high %v4550, %v4574
        %v4587 = vcombine.low %v4558, %v4582
        %v4588 = vcombine.high %v4558, %v4582
        %4590 = vrot.lane.b32.xlu0 %v4584, 8
        %v4591 = vpop.permute.xlu0 %4590
        %4594 = vrot.lane.b32.xlu0 %v4585, 16
        %v4595 = vpop.permute.xlu0 %4594
        %4598 = vrot.lane.b32.xlu0 %v4586, 24
        %v4599 = vpop.permute.xlu0 %4598
        %4602 = vrot.lane.b32.xlu0 %v4587, 32
        %v4603 = vpop.permute.xlu0 %4602
        %4606 = vrot.lane.b32.xlu0 %v4588, 40
        %v4607 = vpop.permute.xlu0 %4606
        %v4609 = vsel %vm1492, %v4583, %v4591
        %v4610 = vsel %vm2405, %v4609, %v4595
        %v4611 = vsel %vm2407, %v4610, %v4599
        %v4612 = vsel %vm2409, %v4611, %v4603
        %v4613 = vsel %vm2411, %v4612, %v4607
        %v4614 = vpack.c.bf16 %v4613, %v4613
        %s4615 = scalar_lea.vmem %s5, 24
        %v4616 = vld [vmem:[%s4615] sm:$0xf]
        %v4617 = vld [vmem:[%s4615 + $0x4] sm:$0xf]
        %v4618 = vld [vmem:[%s4615 + $0x8] sm:$0xf]
        %v4619 = vld [vmem:[%s4615 + $0xc] sm:$0xf]
        %v4620 = vld [vmem:[%s4615 + $0x10] sm:$0xf]
        %v4621 = vld [vmem:[%s4615 + $0x14] sm:$0xf]
        %s4622 = scalar_lea.vmem %s6, 1
        %v4623 = vld [vmem:[%s4622] sm:$0x1]
        %v4625 = vlaneseq
        %v4626 = vshrl.u32 %v4625, 7
        %v4627 = vsub.s32 0, %v4626
        %v4628 = vrot.slane %v4623, %v4627
        %v4636 = vunpack.c.l.b16 %v4616
        %v4637 = vunpack.c.l.b16 %v4617
        %v4638 = vunpack.c.l.b16 %v4618
        %v4639 = vunpack.c.l.b16 %v4619
        %v4640 = vunpack.c.l.b16 %v4620
        %v4641 = vunpack.c.l.b16 %v4621
        %v4642 = vpack.c.b16 %v4637, %v4636
        %v4643 = vpack.c.b16 %v4639, %v4638
        %v4644 = vpack.c.b16 %v4641, %v4640
        %v4649 = vsel %vm557, %v4614, 0
        %4651 = vmatprep.subr.bf16.mxu0 0
        %4652 = vmatpush1.bf16.msra.mxu0 %v4642
        %4653 = vmatprep.subr.bf16.mxu0 0
        %4654 = vmatpush1.bf16.msra.mxu0 %v4643
        %4655 = vmatprep.subr.bf16.mxu0 0
        %4656 = vmatpush1.bf16.msra.mxu0 %v4644
        %4657 = vmatprep.subr.bf16.mxu0 0
        %4658 = vmatpush1.bf16.msra.mxu0 0
        %4659 = vmatprep.subr.bf16.mxu0 0
        %4660 = vmatpush1.bf16.msra.mxu0 0
        %4661 = vmatprep.subr.bf16.mxu0 0
        %4662 = vmatpush1.bf16.msra.mxu0 0
        %4663 = vmatprep.subr.bf16.mxu0 0
        %4664 = vmatpush1.bf16.msra.mxu0 0
        %4665 = vmatprep.subr.bf16.mxu0 0
        %4666 = vmatpush1.bf16.msra.mxu0 0
        %4667 = vmatprep.subr.bf16.mxu0 0
        %4668 = vmatpush1.bf16.msra.mxu0 0
        %4669 = vmatprep.subr.bf16.mxu0 0
        %4670 = vmatpush1.bf16.msra.mxu0 0
        %4671 = vmatprep.subr.bf16.mxu0 0
        %4672 = vmatpush1.bf16.msra.mxu0 0
        %4673 = vmatprep.subr.bf16.mxu0 0
        %4674 = vmatpush1.bf16.msra.mxu0 0
        %4675 = vmatprep.subr.bf16.mxu0 0
        %4676 = vmatpush1.bf16.msra.mxu0 0
        %4677 = vmatprep.subr.bf16.mxu0 0
        %4678 = vmatpush1.bf16.msra.mxu0 0
        %4679 = vmatprep.subr.bf16.mxu0 0
        %4680 = vmatpush1.bf16.msra.mxu0 0
        %4681 = vmatprep.subr.bf16.mxu0 0
        %4682 = vmatpush1.bf16.msra.mxu0 0
        %4683 = vmatprep.mubr.bf16.mxu0 0
        %4684 = vmatmul.mubr.bf16.gmra.mrb[0].mxu0 %v4649
        %v4685 = vpop.f32.mrb[0].mxu0
        %v4686 = vadd.f32 %v4628, %v4685
        %v4687 = vpop.f32.mrb[0].mxu0
        %v4688 = vpop.f32.mrb[0].mxu0
        %v4689 = vpop.f32.mrb[0].mxu0
        %4690 = vdwg.mxu0
        %v4691 = vadd.f32 %v2793, %v4686
        %s4692 = scalar_lea.vmem %s7, 1
        %v4693 = vld [vmem:[%s4692] sm:$0x1]
        %s4694 = scalar_lea.vmem %s8, 1
        %v4695 = vld [vmem:[%s4694] sm:$0x1]
        %v4696 = vsel %vm557, %v4691, 0.0
        %4697 = vadd.xlane.f32.xlu0 %v4696
        %v4698 = vpop.xlane.xlu0 %4697
        %v4699 = vmul.f32 %v4698, %v561
        %v4700 = vsub.f32 %v4691, %v4699
        %v4701 = vmul.f32 %v4700, %v4700
        %v4702 = vsel %vm557, %v4701, 0.0
        %4703 = vadd.xlane.f32.xlu0 %v4702
        %v4704 = vpop.xlane.xlu0 %4703
        %v4705 = vmul.f32 %v4704, %v561
        %v4706 = vadd.f32 %v4705, 1e-05
        %v4707 = vrsqrt.pop %v4706
        %v4708 = vmul.f32 %v4700, %v4707
        %v4710 = vlaneseq
        %v4711 = vshrl.u32 %v4710, 7
        %v4712 = vsub.s32 0, %v4711
        %v4713 = vrot.slane %v4693, %v4712
        %v4715 = vmul.f32 %v4708, %v4713
        %v4717 = vlaneseq
        %v4718 = vshrl.u32 %v4717, 7
        %v4719 = vsub.s32 0, %v4718
        %v4720 = vrot.slane %v4695, %v4719
        %v4722 = vadd.f32 %v4715, %v4720
        %v4723 = vpack.c.bf16 %v4722, %v4722
        %s4724 = scalar_lea.vmem %s9, 48
        %v4725 = vld [vmem:[%s4724] sm:$0xff]
        %v4726 = vld [vmem:[%s4724 + $0x8] sm:$0xff]
        %v4727 = vld [vmem:[%s4724 + $0x10] sm:$0xff]
        %v4728 = vld [vmem:[%s4724 + $0x18] sm:$0xff]
        %v4729 = vld [vmem:[%s4724 + $0x20] sm:$0xff]
        %v4730 = vld [vmem:[%s4724 + $0x28] sm:$0xff]
        %s4731 = scalar_lea.vmem %s10, 2
        %v4732 = vld [vmem:[%s4731] sm:$0x3]
        %v4734 = vlaneseq
        %v4735 = vshrl.u32 %v4734, 7
        %v4736 = vsub.s32 0, %v4735
        %v4737 = vrot.slane %v4732, %v4736
        %v4738 = vlaneseq
        %v4739 = vshrl.u32 %v4738, 7
        %v4740 = vsub.s32 1, %v4739
        %v4741 = vrot.slane %v4732, %v4740
        %v4750 = vunpack.c.l.b16 %v4725
        %v4751 = vunpack.c.h.b16 %v4725
        %v4752 = vunpack.c.l.b16 %v4726
        %v4753 = vunpack.c.h.b16 %v4726
        %v4754 = vunpack.c.l.b16 %v4727
        %v4755 = vunpack.c.h.b16 %v4727
        %v4756 = vunpack.c.l.b16 %v4728
        %v4757 = vunpack.c.h.b16 %v4728
        %v4758 = vunpack.c.l.b16 %v4729
        %v4759 = vunpack.c.h.b16 %v4729
        %v4760 = vunpack.c.l.b16 %v4730
        %v4761 = vunpack.c.h.b16 %v4730
        %v4762 = vpack.c.b16 %v4752, %v4750
        %v4763 = vpack.c.b16 %v4753, %v4751
        %v4764 = vpack.c.b16 %v4756, %v4754
        %v4765 = vpack.c.b16 %v4757, %v4755
        %v4766 = vpack.c.b16 %v4760, %v4758
        %v4767 = vpack.c.b16 %v4761, %v4759
        %v4775 = vsel %vm557, %v4723, 0
        %4777 = vmatprep.subr.bf16.mxu0 %v4763
        %4778 = vmatpush1.bf16.msra.mxu0 %v4762
        %4779 = vmatprep.subr.bf16.mxu0 %v4765
        %4780 = vmatpush1.bf16.msra.mxu0 %v4764
        %4781 = vmatprep.subr.bf16.mxu0 %v4767
        %4782 = vmatpush1.bf16.msra.mxu0 %v4766
        %4783 = vmatprep.subr.bf16.mxu0 0
        %4784 = vmatpush1.bf16.msra.mxu0 0
        %4785 = vmatprep.subr.bf16.mxu0 0
        %4786 = vmatpush1.bf16.msra.mxu0 0
        %4787 = vmatprep.subr.bf16.mxu0 0
        %4788 = vmatpush1.bf16.msra.mxu0 0
        %4789 = vmatprep.subr.bf16.mxu0 0
        %4790 = vmatpush1.bf16.msra.mxu0 0
        %4791 = vmatprep.subr.bf16.mxu0 0
        %4792 = vmatpush1.bf16.msra.mxu0 0
        %4793 = vmatprep.subr.bf16.mxu0 0
        %4794 = vmatpush1.bf16.msra.mxu0 0
        %4795 = vmatprep.subr.bf16.mxu0 0
        %4796 = vmatpush1.bf16.msra.mxu0 0
        %4797 = vmatprep.subr.bf16.mxu0 0
        %4798 = vmatpush1.bf16.msra.mxu0 0
        %4799 = vmatprep.subr.bf16.mxu0 0
        %4800 = vmatpush1.bf16.msra.mxu0 0
        %4801 = vmatprep.subr.bf16.mxu0 0
        %4802 = vmatpush1.bf16.msra.mxu0 0
        %4803 = vmatprep.subr.bf16.mxu0 0
        %4804 = vmatpush1.bf16.msra.mxu0 0
        %4805 = vmatprep.subr.bf16.mxu0 0
        %4806 = vmatpush1.bf16.msra.mxu0 0
        %4807 = vmatprep.subr.bf16.mxu0 0
        %4808 = vmatpush1.bf16.msra.mxu0 0
        %4809 = vmatprep.mubr.bf16.mxu0 0
        %4810 = vmatmul.mubr.bf16.gmra.mrb[0].mxu0 %v4775
        %v4811 = vpop.f32.mrb[0].mxu0
        %v4812 = vadd.f32 %v4737, %v4811
        %v4813 = vpop.f32.mrb[0].mxu0
        %v4814 = vadd.f32 %v4741, %v4813
        %v4815 = vpop.f32.mrb[0].mxu0
        %v4816 = vpop.f32.mrb[0].mxu0
        %4817 = vdwg.mxu0
        %v4818 = vmax.f32 %v4812, 0.0
        %v4819 = vmax.f32 %v4814, 0.0
        %v4820 = vpack.c.bf16 %v4818, %v4818
        %v4821 = vpack.c.bf16 %v4819, %v4819
        %s4822 = scalar_lea.vmem %s11, 96
        %v4823 = vld [vmem:[%s4822] sm:$0xf]
        %v4824 = vld [vmem:[%s4822 + $0x4] sm:$0xf]
        %v4825 = vld [vmem:[%s4822 + $0x8] sm:$0xf]
        %v4826 = vld [vmem:[%s4822 + $0xc] sm:$0xf]
        %v4827 = vld [vmem:[%s4822 + $0x10] sm:$0xf]
        %v4828 = vld [vmem:[%s4822 + $0x14] sm:$0xf]
        %v4829 = vld [vmem:[%s4822 + $0x18] sm:$0xf]
        %v4830 = vld [vmem:[%s4822 + $0x1c] sm:$0xf]
        %v4831 = vld [vmem:[%s4822 + $0x20] sm:$0xf]
        %v4832 = vld [vmem:[%s4822 + $0x24] sm:$0xf]
        %v4833 = vld [vmem:[%s4822 + $0x28] sm:$0xf]
        %v4834 = vld [vmem:[%s4822 + $0x2c] sm:$0xf]
        %v4835 = vld [vmem:[%s4822 + $0x30] sm:$0xf]
        %v4836 = vld [vmem:[%s4822 + $0x34] sm:$0xf]
        %v4837 = vld [vmem:[%s4822 + $0x38] sm:$0xf]
        %v4838 = vld [vmem:[%s4822 + $0x3c] sm:$0xf]
        %v4839 = vld [vmem:[%s4822 + $0x40] sm:$0xf]
        %v4840 = vld [vmem:[%s4822 + $0x44] sm:$0xf]
        %v4841 = vld [vmem:[%s4822 + $0x48] sm:$0xf]
        %v4842 = vld [vmem:[%s4822 + $0x4c] sm:$0xf]
        %v4843 = vld [vmem:[%s4822 + $0x50] sm:$0xf]
        %v4844 = vld [vmem:[%s4822 + $0x54] sm:$0xf]
        %v4845 = vld [vmem:[%s4822 + $0x58] sm:$0xf]
        %v4846 = vld [vmem:[%s4822 + $0x5c] sm:$0xf]
        %s4847 = scalar_lea.vmem %s12, 1
        %v4848 = vld [vmem:[%s4847] sm:$0x1]
        %v4850 = vlaneseq
        %v4851 = vshrl.u32 %v4850, 7
        %v4852 = vsub.s32 0, %v4851
        %v4853 = vrot.slane %v4848, %v4852
        %v4879 = vunpack.c.l.b16 %v4823
        %v4880 = vunpack.c.l.b16 %v4824
        %v4881 = vunpack.c.l.b16 %v4825
        %v4882 = vunpack.c.l.b16 %v4826
        %v4883 = vunpack.c.l.b16 %v4827
        %v4884 = vunpack.c.l.b16 %v4828
        %v4885 = vunpack.c.l.b16 %v4829
        %v4886 = vunpack.c.l.b16 %v4830
        %v4887 = vunpack.c.l.b16 %v4831
        %v4888 = vunpack.c.l.b16 %v4832
        %v4889 = vunpack.c.l.b16 %v4833
        %v4890 = vunpack.c.l.b16 %v4834
        %v4891 = vunpack.c.l.b16 %v4835
        %v4892 = vunpack.c.l.b16 %v4836
        %v4893 = vunpack.c.l.b16 %v4837
        %v4894 = vunpack.c.l.b16 %v4838
        %v4895 = vunpack.c.l.b16 %v4839
        %v4896 = vunpack.c.l.b16 %v4840
        %v4897 = vunpack.c.l.b16 %v4841
        %v4898 = vunpack.c.l.b16 %v4842
        %v4899 = vunpack.c.l.b16 %v4843
        %v4900 = vunpack.c.l.b16 %v4844
        %v4901 = vunpack.c.l.b16 %v4845
        %v4902 = vunpack.c.l.b16 %v4846
        %v4903 = vpack.c.b16 %v4880, %v4879
        %v4904 = vpack.c.b16 %v4882, %v4881
        %v4905 = vpack.c.b16 %v4884, %v4883
        %v4906 = vpack.c.b16 %v4886, %v4885
        %v4907 = vpack.c.b16 %v4888, %v4887
        %v4908 = vpack.c.b16 %v4890, %v4889
        %v4909 = vpack.c.b16 %v4892, %v4891
        %v4910 = vpack.c.b16 %v4894, %v4893
        %v4911 = vpack.c.b16 %v4896, %v4895
        %v4912 = vpack.c.b16 %v4898, %v4897
        %v4913 = vpack.c.b16 %v4900, %v4899
        %v4914 = vpack.c.b16 %v4902, %v4901
        %v4928 = vsel %vm2718, %v4821, 0
        %4930 = vmatprep.subr.bf16.mxu0 0
        %4931 = vmatpush1.bf16.msra.mxu0 %v4903
        %4932 = vmatprep.subr.bf16.mxu0 0
        %4933 = vmatpush1.bf16.msra.mxu0 %v4904
        %4934 = vmatprep.subr.bf16.mxu0 0
        %4935 = vmatpush1.bf16.msra.mxu0 %v4905
        %4936 = vmatprep.subr.bf16.mxu0 0
        %4937 = vmatpush1.bf16.msra.mxu0 %v4906
        %4938 = vmatprep.subr.bf16.mxu0 0
        %4939 = vmatpush1.bf16.msra.mxu0 %v4907
        %4940 = vmatprep.subr.bf16.mxu0 0
        %4941 = vmatpush1.bf16.msra.mxu0 %v4908
        %4942 = vmatprep.subr.bf16.mxu0 0
        %4943 = vmatpush1.bf16.msra.mxu0 %v4909
        %4944 = vmatprep.subr.bf16.mxu0 0
        %4945 = vmatpush1.bf16.msra.mxu0 %v4910
        %4946 = vmatprep.subr.bf16.mxu0 0
        %4947 = vmatpush1.bf16.msra.mxu0 %v4911
        %4948 = vmatprep.subr.bf16.mxu0 0
        %4949 = vmatpush1.bf16.msra.mxu0 %v4912
        %4950 = vmatprep.subr.bf16.mxu0 0
        %4951 = vmatpush1.bf16.msra.mxu0 %v4913
        %4952 = vmatprep.subr.bf16.mxu0 0
        %4953 = vmatpush1.bf16.msra.mxu0 %v4914
        %4954 = vmatprep.subr.bf16.mxu0 0
        %4955 = vmatpush1.bf16.msra.mxu0 0
        %4956 = vmatprep.subr.bf16.mxu0 0
        %4957 = vmatpush1.bf16.msra.mxu0 0
        %4958 = vmatprep.subr.bf16.mxu0 0
        %4959 = vmatpush1.bf16.msra.mxu0 0
        %4960 = vmatprep.subr.bf16.mxu0 0
        %4961 = vmatpush1.bf16.msra.mxu0 0
        %4962 = vmatprep.mubr.bf16.mxu0 %v4928
        %4963 = vmatmul.mubr.bf16.gmra.mrb[0].mxu0 %v4820
        %v4964 = vpop.f32.mrb[0].mxu0
        %v4965 = vadd.f32 %v4853, %v4964
        %v4966 = vpop.f32.mrb[0].mxu0
        %v4967 = vpop.f32.mrb[0].mxu0
        %v4968 = vpop.f32.mrb[0].mxu0
        %4969 = vdwg.mxu0
        %v4970 = vadd.f32 %v4722, %v4965
        %v4971 = vld [vmem:[%s13] sm:$0x1]
        %v4972 = vld [vmem:[%s14] sm:$0x1]
        %v4973 = vsel %vm557, %v4970, 0.0
        %4974 = vadd.xlane.f32.xlu0 %v4973
        %v4975 = vpop.xlane.xlu0 %4974
        %v4976 = vmul.f32 %v4975, %v561
        %v4977 = vsub.f32 %v4970, %v4976
        %v4978 = vmul.f32 %v4977, %v4977
        %v4979 = vsel %vm557, %v4978, 0.0
        %4980 = vadd.xlane.f32.xlu0 %v4979
        %v4981 = vpop.xlane.xlu0 %4980
        %v4982 = vmul.f32 %v4981, %v561
        %v4983 = vadd.f32 %v4982, 1e-05
        %v4984 = vrsqrt.pop %v4983
        %v4985 = vmul.f32 %v4977, %v4984
        %v4987 = vlaneseq
        %v4988 = vshrl.u32 %v4987, 7
        %v4989 = vsub.s32 0, %v4988
        %v4990 = vrot.slane %v4971, %v4989
        %v4992 = vmul.f32 %v4985, %v4990
        %v4994 = vlaneseq
        %v4995 = vshrl.u32 %v4994, 7
        %v4996 = vsub.s32 0, %v4995
        %v4997 = vrot.slane %v4972, %v4996
        %v4999 = vadd.f32 %v4992, %v4997
        %v5000 = vpack.c.bf16 %v4999, %v4999
        %v5001 = vld [vmem:[%s15] sm:$0xf]
        %v5002 = vld [vmem:[%s15 + $0x4] sm:$0xf]
        %v5003 = vld [vmem:[%s15 + $0x8] sm:$0xf]
        %v5004 = vld [vmem:[%s15 + $0xc] sm:$0xf]
        %v5005 = vld [vmem:[%s15 + $0x10] sm:$0xf]
        %v5006 = vld [vmem:[%s15 + $0x14] sm:$0xf]
        %v5007 = vld [vmem:[%s16] sm:$0x1]
        %v5009 = vlaneseq
        %v5010 = vshrl.u32 %v5009, 7
        %v5011 = vsub.s32 0, %v5010
        %v5012 = vrot.slane %v5007, %v5011
        %v5020 = vunpack.c.l.b16 %v5001
        %v5021 = vunpack.c.l.b16 %v5002
        %v5022 = vunpack.c.l.b16 %v5003
        %v5023 = vunpack.c.l.b16 %v5004
        %v5024 = vunpack.c.l.b16 %v5005
        %v5025 = vunpack.c.l.b16 %v5006
        %v5026 = vpack.c.b16 %v5021, %v5020
        %v5027 = vpack.c.b16 %v5023, %v5022
        %v5028 = vpack.c.b16 %v5025, %v5024
        %v5033 = vsel %vm557, %v5000, 0
        %5035 = vmatprep.subr.bf16.mxu0 0
        %5036 = vmatpush1.bf16.msra.mxu0 %v5026
        %5037 = vmatprep.subr.bf16.mxu0 0
        %5038 = vmatpush1.bf16.msra.mxu0 %v5027
        %5039 = vmatprep.subr.bf16.mxu0 0
        %5040 = vmatpush1.bf16.msra.mxu0 %v5028
        %5041 = vmatprep.subr.bf16.mxu0 0
        %5042 = vmatpush1.bf16.msra.mxu0 0
        %5043 = vmatprep.subr.bf16.mxu0 0
        %5044 = vmatpush1.bf16.msra.mxu0 0
        %5045 = vmatprep.subr.bf16.mxu0 0
        %5046 = vmatpush1.bf16.msra.mxu0 0
        %5047 = vmatprep.subr.bf16.mxu0 0
        %5048 = vmatpush1.bf16.msra.mxu0 0
        %5049 = vmatprep.subr.bf16.mxu0 0
        %5050 = vmatpush1.bf16.msra.mxu0 0
        %5051 = vmatprep.subr.bf16.mxu0 0
        %5052 = vmatpush1.bf16.msra.mxu0 0
        %5053 = vmatprep.subr.bf16.mxu0 0
        %5054 = vmatpush1.bf16.msra.mxu0 0
        %5055 = vmatprep.subr.bf16.mxu0 0
        %5056 = vmatpush1.bf16.msra.mxu0 0
        %5057 = vmatprep.subr.bf16.mxu0 0
        %5058 = vmatpush1.bf16.msra.mxu0 0
        %5059 = vmatprep.subr.bf16.mxu0 0
        %5060 = vmatpush1.bf16.msra.mxu0 0
        %5061 = vmatprep.subr.bf16.mxu0 0
        %5062 = vmatpush1.bf16.msra.mxu0 0
        %5063 = vmatprep.subr.bf16.mxu0 0
        %5064 = vmatpush1.bf16.msra.mxu0 0
        %5065 = vmatprep.subr.bf16.mxu0 0
        %5066 = vmatpush1.bf16.msra.mxu0 0
        %5067 = vmatprep.mubr.bf16.mxu0 0
        %5068 = vmatmul.mubr.bf16.gmra.mrb[0].mxu0 %v5033
        %v5069 = vpop.f32.mrb[0].mxu0
        %v5070 = vadd.f32 %v5012, %v5069
        %v5071 = vpop.f32.mrb[0].mxu0
        %v5072 = vpop.f32.mrb[0].mxu0
        %v5073 = vpop.f32.mrb[0].mxu0
        %5074 = vdwg.mxu0
        %5075 = vst [vmem:[%s539] sm:$0xff] %v5070
        %s5076 = sand.u32 %s401, 1
        %s5077 = scalar_lea.sflag [#allocation3], %s5076
        %s5078 = sand.u32 %s401, 1
        %s5079 = smul.addr %s5078, 8
        %s5080 = scalar_lea.vmem [#allocation2], %s5079
        // Predicated region
        $region89: #{gpt_forward.1} parent=87 // pred_check
          %p5081 = pneg %p411
        $region90: #{gpt_forward.1} parent=87 // pred_check_branch
          %5083 = sbr.rel (%p5081) target = $region92
        $region91: #{gpt_forward.1} parent=87 // pred_region
          %s5085 = ssub.s32 128, 128
          %5086 = vsyncadd %s5077, %s5085
          %s5087 = smul.addr %s31, 128
          %s5088 = scalar_lea.hbm %s17, %s5087
          %s5090 = sshll.u32 %s5080, 4
          %s5091 = int_to_ptr.vmem [resolvable:$true] %s5090
          %5093 = dma.vmem_to_hbm [thread:$0]  %s5091, 128, %s5088, %s5077
        $region92: #{gpt_forward.1} parent=87 // pred_fallthru
          _
      $region88: #{gpt_forward.1} parent=5 // pred_fallthru
        _
      %p5094 = scmp.le.s32.totalorder 2, %s26
      // Predicated region
      $region93: #{gpt_forward.1} parent=5 // pred_check
        %p5095 = pneg %p5094
      $region94: #{gpt_forward.1} parent=5 // pred_check_branch
        %5097 = sbr.rel (%p5095) target = $region96
      $region95: #{gpt_forward.1} parent=5 // pred_region
        %s5098 = ssub.s32 %s26, 2
        // Predicated region
        $region97: #{gpt_forward.1} parent=95 // pred_check
          %p5099 = pneg %p417
        $region98: #{gpt_forward.1} parent=95 // pred_check_branch
          %5101 = sbr.rel (%p5099) target = $region100
        $region99: #{gpt_forward.1} parent=95 // pred_region
          %s5102 = sand.u32 %s402, 1
          %s5103 = scalar_lea.sflag [#allocation3], %s5102
          %s5104 = sand.u32 %s402, 1
          %s5105 = smul.addr %s5104, 8
          %s5106 = scalar_lea.vmem [#allocation2], %s5105
          %5107 = dma.done %s5103, 128
        $region100: #{gpt_forward.1} parent=95 // pred_fallthru
          _
      $region96: #{gpt_forward.1} parent=5 // pred_fallthru
        _
    $region6: #{gpt_forward.1} parent=1 // loop_footer
      %s30 = sadd.s32 1, %s26
    $region7: #{gpt_forward.1} parent=1 // loop_footer_branch
      %25 = sbr.rel target = $region3
    $region8: #{gpt_forward.1} parent=1 // loop_exit
      _
    %5108 = vsyncpa [#allocation3], 1
    %s5109 = scalar_lea.sflag [#allocation3], 1
    %5110 = vsyncpa %s5109, 1

</llo_original>
